<compile_context>
chip_gen: v5e
topology: v5e:2x2
jax: 0.10.0
libtpu: 0.0.40
codegen_flags: <defaults>
</compile_context>

<pallas_src>
import numpy as np
import jax
import jax.numpy as jnp
from jax.experimental import pallas as pl
from jax.experimental.pallas import tpu as pltpu

HIDDEN = 32     # FCNN hidden width (neurodiffeq FCNN default)
SUB = 8         # batch sublanes per vreg == hidden replication factor


def _make_kernel(degrees):
    degrees = [int(d) for d in degrees]
    max_deg = max(degrees)

    def kernel(r_ref, th_ref, w1_ref, b1_ref, w2_ref, b2_ref, w3_ref, b3_ref,
               o_ref):
        f32 = jnp.float32
        r = r_ref[...]                          # (8, TC)  batch on (sublane, lane)
        x = jnp.cos(th_ref[...])                # (8, TC)  cos(theta), dense

        # ---------------- FCNN (hidden replicated over 8 sublanes) ----------
        # Weights are block-diagonal (w ⊗ I8), so activation row h*8+s holds
        # hidden unit h for the batch elements on sublane s.  The MXU performs
        # 8x redundant (zero) MACs, but has large slack; tanh / bias / VPU work
        # is identical to the un-replicated formulation and fully dense.
        h1 = jnp.tanh(jnp.dot(w1_ref[...], r, preferred_element_type=f32)
                      + b1_ref[...])            # (256, TC)
        h2 = jnp.tanh(jnp.dot(w2_ref[...], h1, preferred_element_type=f32)
                      + b2_ref[...])            # (256, TC)
        R = (jnp.dot(w3_ref[...], h2, preferred_element_type=f32)
             + b3_ref[...])                     # (8L, TC); harmonic scales folded in

        # -------- Zonal harmonics: Legendre recursion on dense (8, TC) ------
        # Statically unrolled, recursion constants folded at trace time.
        P = {1: x}
        p_prev, p_curr = jnp.ones_like(x), x
        for l in range(2, max_deg + 1):
            # P_l = ((2l-1) x P_{l-1} - (l-1) P_{l-2}) / l
            p_next = (((2.0 * l - 1.0) / l) * x * p_curr
                      - ((l - 1.0) / l) * p_prev)
            P[l] = p_next
            p_prev, p_curr = p_curr, p_next

        # Weighted reduction over output channels.  Duplicate degrees are each
        # summed (matches the PyTorch reference); P_0 == 1 needs no multiply.
        acc = jnp.zeros_like(r)
        for i, d in enumerate(degrees):
            Ri = R[i * SUB:(i + 1) * SUB, :]    # sublane-aligned slice, (8, TC)
            acc = acc + (Ri if d == 0 else Ri * P[d])

        o_ref[...] = acc                        # (8, TC) dense store

    return kernel


def _prep_params(params, degrees):
    """Host-side weight prep: fold sqrt((2d+1)/4pi) into layer 3 and expand all
    layers to block-diagonal (w ⊗ I8) form so kernel activations carry the
    batch on (sublane, lane)."""
    w1, b1, w2, b2, w3, b3 = [np.asarray(p, np.float32) for p in params]
    degs = np.asarray([int(d) for d in degrees], np.float64)
    scale = np.sqrt((2.0 * degs + 1.0) / (4.0 * np.pi)).astype(np.float32)

    w3s = w3 * scale[:, None]                  # fold harmonic scale into row l
    b3s = b3.reshape(-1) * scale

    eye = np.eye(SUB, dtype=np.float32)
    w1k = np.kron(w1.reshape(HIDDEN, 1), eye)              # (256, 8)
    w2k = np.kron(w2, eye)                                  # (256, 256)
    w3k = np.kron(w3s, eye)                                 # (8L, 256)
    b1k = np.repeat(b1.reshape(-1), SUB)[:, None]           # (256, 1)
    b2k = np.repeat(b2.reshape(-1), SUB)[:, None]           # (256, 1)
    b3k = np.repeat(b3s, SUB)[:, None]                      # (8L, 1)
    return tuple(jnp.asarray(a) for a in (w1k, b1k, w2k, b2k, w3k, b3k))


def harmonics_nn_forward(params, degrees, r, theta, phi=None, *, tile_n=8192):
    """Fused HarmonicsNN forward.  r/theta/(phi) are (N, 1); returns (N, 1).

    `phi` is accepted for API parity but zonal harmonics ignore it, so it is
    never DMA'd into the kernel.  `tile_n` (batch elements per grid step) must
    be a multiple of 1024; sweep 8192-32768 for peak throughput.
    """
    del phi
    assert tile_n % (SUB * 128) == 0, "tile_n must be a multiple of 1024"
    w1k, b1k, w2k, b2k, w3k, b3k = _prep_params(params, degrees)
    L = len(degrees)
    N = r.shape[0]
    n_pad = pl.cdiv(N, tile_n) * tile_n
    n_cols = n_pad // SUB
    tc = tile_n // SUB

    f32 = jnp.float32

    # Dense (8, N_pad/8) slabs.  Zero-padded tail is harmless (cos(0)=1, tanh
    # finite) and is sliced off below.  The flat->2D mapping is a bijection
    # applied identically to inputs and output, and every batch element is
    # processed independently, so the element order is immaterial.
    def to_slab(v):
        flat = jnp.pad(v.reshape(-1).astype(f32), (0, n_pad - N))
        return flat.reshape(SUB, n_cols)

    r_slab, th_slab = to_slab(r), to_slab(theta)

    grid = (n_pad // tile_n,)
    data_spec = pl.BlockSpec((SUB, tc), lambda i: (0, i))
    pinned = lambda shape: pl.BlockSpec(shape, lambda i: (0, 0))  # VMEM-resident

    max_deg = max(int(d) for d in degrees)
    n_weights = sum(int(np.prod(a.shape))
                    for a in (w1k, b1k, w2k, b2k, w3k, b3k))
    cost = pl.CostEstimate(
        flops=int(2 * (n_pad // SUB) * (HIDDEN * SUB * SUB
                                        + (HIDDEN * SUB) ** 2
                                        + L * SUB * HIDDEN * SUB)
                  + n_pad * (4 * max_deg + 2 * L + 2)),
        transcendentals=int(n_pad * (2 * HIDDEN + 1)),   # 64 tanh + 1 cos / elem
        bytes_accessed=int(4 * (3 * n_pad + n_weights)),
    )

    out = pl.pallas_call(
        _make_kernel(degrees),
        out_shape=jax.ShapeDtypeStruct((SUB, n_cols), f32),
        grid=grid,
        in_specs=[
            data_spec,                          # r      (8, TC)
            data_spec,                          # theta  (8, TC)
            pinned(w1k.shape),                  # (256, 8)
            pinned(b1k.shape),                  # (256, 1)
            pinned(w2k.shape),                  # (256, 256)
            pinned(b2k.shape),                  # (256, 1)
            pinned(w3k.shape),                  # (8L, 256)
            pinned(b3k.shape),                  # (8L, 1)
        ],
        out_specs=data_spec,
        compiler_params=pltpu.CompilerParams(
            dimension_semantics=("parallel",),         # batch across TCs (v7x)
            vmem_limit_bytes=32 * 1024 * 1024),        # headroom for tile sweeps
        cost_estimate=cost,
    )(r_slab, th_slab, w1k, b1k, w2k, b2k, w3k, b3k)

    return out.reshape(-1)[:N].reshape(N, 1)


def _reference_np(params, degrees, r, theta):
    """Pure NumPy reference of the PyTorch forward (float32)."""
    w1, b1, w2, b2, w3, b3 = [np.asarray(p, np.float32) for p in params]
    r = np.asarray(r, np.float32)
    theta = np.asarray(theta, np.float32)
    h1 = np.tanh(r @ w1.reshape(HIDDEN, 1).T + b1.reshape(1, -1))
    h2 = np.tanh(h1 @ w2.T + b2.reshape(1, -1))
    R = h2 @ w3.T + b3.reshape(1, -1)                       # (N, L)
    x = np.cos(theta)[:, 0]
    max_deg = max(int(d) for d in degrees)
    P = [np.ones_like(x), x]
    for l in range(2, max_deg + 1):
        P.append(((2 * l - 1) * x * P[l - 1] - (l - 1) * P[l - 2]) / l)
    Y = np.stack([np.sqrt((2 * int(d) + 1) / (4 * np.pi)) * P[int(d)]
                  for d in degrees], axis=1)
    return (R * Y).sum(axis=1, keepdims=True)


if __name__ == "__main__":
    degrees = list(range(10))            # matches the pytest fixture
    L = len(degrees)

    key = jax.random.PRNGKey(0)
    ks = jax.random.split(key, 9)
    # PyTorch-style Linear init: uniform(-1/sqrt(fan_in), 1/sqrt(fan_in)).
    bnd = 1.0 / float(np.sqrt(HIDDEN))
    w1 = jax.random.uniform(ks[0], (HIDDEN, 1), jnp.float32, -1.0, 1.0)
    b1 = jax.random.uniform(ks[1], (HIDDEN,), jnp.float32, -1.0, 1.0)
    w2 = jax.random.uniform(ks[2], (HIDDEN, HIDDEN), jnp.float32, -bnd, bnd)
    b2 = jax.random.uniform(ks[3], (HIDDEN,), jnp.float32, -bnd, bnd)
    w3 = jax.random.uniform(ks[4], (L, HIDDEN), jnp.float32, -bnd, bnd)
    b3 = jax.random.uniform(ks[5], (L,), jnp.float32, -bnd, bnd)
    params = (w1, b1, w2, b2, w3, b3)

    # (300, 8192): default tile, heavy-padding single-step path.
    # (2500, 1024): multi-step grid (3 steps) exercising the pipeline.
    for n, tile in ((300, 8192), (2500, 1024)):
        r = jax.random.uniform(ks[6], (n, 1), jnp.float32, 0.1, 2.0)
        theta = jax.random.uniform(ks[7], (n, 1), jnp.float32, 0.0, float(np.pi))
        phi = jax.random.uniform(ks[8], (n, 1), jnp.float32, 0.0,
                                 float(2 * np.pi))

        out = harmonics_nn_forward(params, degrees, r, theta, phi, tile_n=tile)
        out = jax.block_until_ready(out)

        ref = _reference_np(params, degrees, r, theta)
        np.testing.assert_allclose(np.asarray(out), ref, rtol=2e-3, atol=2e-3)

    print("KERNEL_OK")
</pallas_src>

<mosaic_0001>
module attributes {stable_mosaic.version = 11 : i64} {
  func.func @kernel(%arg0: i32, %arg1: memref<8x1024xf32, #tpu.memory_space<vmem>>, %arg2: memref<8x1024xf32, #tpu.memory_space<vmem>>, %arg3: memref<256x8xf32, #tpu.memory_space<vmem>>, %arg4: memref<256x1xf32, #tpu.memory_space<vmem>>, %arg5: memref<256x256xf32, #tpu.memory_space<vmem>>, %arg6: memref<256x1xf32, #tpu.memory_space<vmem>>, %arg7: memref<80x256xf32, #tpu.memory_space<vmem>>, %arg8: memref<80x1xf32, #tpu.memory_space<vmem>>, %arg9: memref<8x1024xf32, #tpu.memory_space<vmem>>) attributes {dimension_semantics = [#tpu.dimension_semantics<parallel>], iteration_bounds = array<i64: 1>, scalar_prefetch = 0 : i64, scratch_operands = 0 : i64, tpu.core_type = #tpu.core_type<tc>, window_params = [{transform_indices = @transform_0, window_bounds = array<i64: 8, 1024>}, {transform_indices = @transform_1, window_bounds = array<i64: 8, 1024>}, {pipeline_mode = #tpu.pipeline_mode<synchronous>, transform_indices = @transform_2, window_bounds = array<i64: 256, 8>}, {pipeline_mode = #tpu.pipeline_mode<synchronous>, transform_indices = @transform_3, window_bounds = array<i64: 256, 1>}, {pipeline_mode = #tpu.pipeline_mode<synchronous>, transform_indices = @transform_4, window_bounds = array<i64: 256, 256>}, {pipeline_mode = #tpu.pipeline_mode<synchronous>, transform_indices = @transform_5, window_bounds = array<i64: 256, 1>}, {pipeline_mode = #tpu.pipeline_mode<synchronous>, transform_indices = @transform_6, window_bounds = array<i64: 80, 256>}, {pipeline_mode = #tpu.pipeline_mode<synchronous>, transform_indices = @transform_7, window_bounds = array<i64: 80, 1>}, {transform_indices = @transform_8, window_bounds = array<i64: 8, 1024>}]} {
    %c0 = arith.constant 0 : index
    %c0_0 = arith.constant 0 : index
    %0 = vector.load %arg1[%c0, %c0_0] : memref<8x1024xf32, #tpu.memory_space<vmem>>, vector<8x1024xf32>
    %c0_1 = arith.constant 0 : index
    %c0_2 = arith.constant 0 : index
    %1 = vector.load %arg2[%c0_1, %c0_2] : memref<8x1024xf32, #tpu.memory_space<vmem>>, vector<8x1024xf32>
    %2 = math.cos %1 : vector<8x1024xf32>
    %c0_3 = arith.constant 0 : index
    %c0_4 = arith.constant 0 : index
    %3 = vector.load %arg3[%c0_3, %c0_4] : memref<256x8xf32, #tpu.memory_space<vmem>>, vector<256x8xf32>
    %cst = arith.constant dense<0.000000e+00> : vector<256x1024xf32>
    %4 = tpu.matmul %3, %0, %cst {dimension_numbers = #tpu.dot_dimension_numbers<[1], [0], [0], [1], [0, 0, 1, 1], [], []>} : vector<256x8xf32>, vector<8x1024xf32>, vector<256x1024xf32> -> vector<256x1024xf32>
    %c0_5 = arith.constant 0 : index
    %c0_6 = arith.constant 0 : index
    %5 = vector.load %arg4[%c0_5, %c0_6] : memref<256x1xf32, #tpu.memory_space<vmem>>, vector<256x1xf32>
    %6 = vector.broadcast %5 : vector<256x1xf32> to vector<256x1024xf32>
    %7 = arith.addf %4, %6 : vector<256x1024xf32>
    %8 = math.tanh %7 : vector<256x1024xf32>
    %c0_7 = arith.constant 0 : index
    %c0_8 = arith.constant 0 : index
    %9 = vector.load %arg5[%c0_7, %c0_8] : memref<256x256xf32, #tpu.memory_space<vmem>>, vector<256x256xf32>
    %cst_9 = arith.constant dense<0.000000e+00> : vector<256x1024xf32>
    %10 = tpu.matmul %9, %8, %cst_9 {dimension_numbers = #tpu.dot_dimension_numbers<[1], [0], [0], [1], [0, 0, 1, 1], [], []>} : vector<256x256xf32>, vector<256x1024xf32>, vector<256x1024xf32> -> vector<256x1024xf32>
    %c0_10 = arith.constant 0 : index
    %c0_11 = arith.constant 0 : index
    %11 = vector.load %arg6[%c0_10, %c0_11] : memref<256x1xf32, #tpu.memory_space<vmem>>, vector<256x1xf32>
    %12 = vector.broadcast %11 : vector<256x1xf32> to vector<256x1024xf32>
    %13 = arith.addf %10, %12 : vector<256x1024xf32>
    %14 = math.tanh %13 : vector<256x1024xf32>
    %c0_12 = arith.constant 0 : index
    %c0_13 = arith.constant 0 : index
    %15 = vector.load %arg7[%c0_12, %c0_13] : memref<80x256xf32, #tpu.memory_space<vmem>>, vector<80x256xf32>
    %cst_14 = arith.constant dense<0.000000e+00> : vector<80x1024xf32>
    %16 = tpu.matmul %15, %14, %cst_14 {dimension_numbers = #tpu.dot_dimension_numbers<[1], [0], [0], [1], [0, 0, 1, 1], [], []>} : vector<80x256xf32>, vector<256x1024xf32>, vector<80x1024xf32> -> vector<80x1024xf32>
    %c0_15 = arith.constant 0 : index
    %c0_16 = arith.constant 0 : index
    %17 = vector.load %arg8[%c0_15, %c0_16] : memref<80x1xf32, #tpu.memory_space<vmem>>, vector<80x1xf32>
    %18 = vector.broadcast %17 : vector<80x1xf32> to vector<80x1024xf32>
    %19 = arith.addf %16, %18 : vector<80x1024xf32>
    %cst_17 = arith.constant 1.000000e+00 : f32
    %20 = vector.broadcast %cst_17 : f32 to vector<8x1024xf32>
    %cst_18 = arith.constant 1.500000e+00 : f32
    %21 = vector.broadcast %cst_18 : f32 to vector<8x1024xf32>
    %22 = arith.mulf %21, %2 : vector<8x1024xf32>
    %23 = arith.mulf %22, %2 : vector<8x1024xf32>
    %cst_19 = arith.constant 5.000000e-01 : f32
    %24 = vector.broadcast %cst_19 : f32 to vector<8x1024xf32>
    %25 = arith.mulf %24, %20 : vector<8x1024xf32>
    %26 = arith.subf %23, %25 : vector<8x1024xf32>
    %cst_20 = arith.constant 1.66666663 : f32
    %27 = vector.broadcast %cst_20 : f32 to vector<8x1024xf32>
    %28 = arith.mulf %27, %2 : vector<8x1024xf32>
    %29 = arith.mulf %28, %26 : vector<8x1024xf32>
    %cst_21 = arith.constant 0.666666686 : f32
    %30 = vector.broadcast %cst_21 : f32 to vector<8x1024xf32>
    %31 = arith.mulf %30, %2 : vector<8x1024xf32>
    %32 = arith.subf %29, %31 : vector<8x1024xf32>
    %cst_22 = arith.constant 1.750000e+00 : f32
    %33 = vector.broadcast %cst_22 : f32 to vector<8x1024xf32>
    %34 = arith.mulf %33, %2 : vector<8x1024xf32>
    %35 = arith.mulf %34, %32 : vector<8x1024xf32>
    %cst_23 = arith.constant 7.500000e-01 : f32
    %36 = vector.broadcast %cst_23 : f32 to vector<8x1024xf32>
    %37 = arith.mulf %36, %26 : vector<8x1024xf32>
    %38 = arith.subf %35, %37 : vector<8x1024xf32>
    %cst_24 = arith.constant 1.800000e+00 : f32
    %39 = vector.broadcast %cst_24 : f32 to vector<8x1024xf32>
    %40 = arith.mulf %39, %2 : vector<8x1024xf32>
    %41 = arith.mulf %40, %38 : vector<8x1024xf32>
    %cst_25 = arith.constant 8.000000e-01 : f32
    %42 = vector.broadcast %cst_25 : f32 to vector<8x1024xf32>
    %43 = arith.mulf %42, %32 : vector<8x1024xf32>
    %44 = arith.subf %41, %43 : vector<8x1024xf32>
    %cst_26 = arith.constant 1.83333337 : f32
    %45 = vector.broadcast %cst_26 : f32 to vector<8x1024xf32>
    %46 = arith.mulf %45, %2 : vector<8x1024xf32>
    %47 = arith.mulf %46, %44 : vector<8x1024xf32>
    %cst_27 = arith.constant 0.833333313 : f32
    %48 = vector.broadcast %cst_27 : f32 to vector<8x1024xf32>
    %49 = arith.mulf %48, %38 : vector<8x1024xf32>
    %50 = arith.subf %47, %49 : vector<8x1024xf32>
    %cst_28 = arith.constant 1.85714281 : f32
    %51 = vector.broadcast %cst_28 : f32 to vector<8x1024xf32>
    %52 = arith.mulf %51, %2 : vector<8x1024xf32>
    %53 = arith.mulf %52, %50 : vector<8x1024xf32>
    %cst_29 = arith.constant 0.857142865 : f32
    %54 = vector.broadcast %cst_29 : f32 to vector<8x1024xf32>
    %55 = arith.mulf %54, %44 : vector<8x1024xf32>
    %56 = arith.subf %53, %55 : vector<8x1024xf32>
    %cst_30 = arith.constant 1.875000e+00 : f32
    %57 = vector.broadcast %cst_30 : f32 to vector<8x1024xf32>
    %58 = arith.mulf %57, %2 : vector<8x1024xf32>
    %59 = arith.mulf %58, %56 : vector<8x1024xf32>
    %cst_31 = arith.constant 8.750000e-01 : f32
    %60 = vector.broadcast %cst_31 : f32 to vector<8x1024xf32>
    %61 = arith.mulf %60, %50 : vector<8x1024xf32>
    %62 = arith.subf %59, %61 : vector<8x1024xf32>
    %cst_32 = arith.constant 1.88888884 : f32
    %63 = vector.broadcast %cst_32 : f32 to vector<8x1024xf32>
    %64 = arith.mulf %63, %2 : vector<8x1024xf32>
    %65 = arith.mulf %64, %62 : vector<8x1024xf32>
    %cst_33 = arith.constant 0.888888895 : f32
    %66 = vector.broadcast %cst_33 : f32 to vector<8x1024xf32>
    %67 = arith.mulf %66, %56 : vector<8x1024xf32>
    %68 = arith.subf %65, %67 : vector<8x1024xf32>
    %cst_34 = arith.constant 0.000000e+00 : f32
    %69 = vector.broadcast %cst_34 : f32 to vector<8x1024xf32>
    %70 = vector.extract_strided_slice %19 {offsets = [0, 0], sizes = [8, 1024], strides = [1, 1]} : vector<80x1024xf32> to vector<8x1024xf32>
    %71 = arith.addf %69, %70 : vector<8x1024xf32>
    %72 = vector.extract_strided_slice %19 {offsets = [8, 0], sizes = [8, 1024], strides = [1, 1]} : vector<80x1024xf32> to vector<8x1024xf32>
    %73 = arith.mulf %72, %2 : vector<8x1024xf32>
    %74 = arith.addf %71, %73 : vector<8x1024xf32>
    %75 = vector.extract_strided_slice %19 {offsets = [16, 0], sizes = [8, 1024], strides = [1, 1]} : vector<80x1024xf32> to vector<8x1024xf32>
    %76 = arith.mulf %75, %26 : vector<8x1024xf32>
    %77 = arith.addf %74, %76 : vector<8x1024xf32>
    %78 = vector.extract_strided_slice %19 {offsets = [24, 0], sizes = [8, 1024], strides = [1, 1]} : vector<80x1024xf32> to vector<8x1024xf32>
    %79 = arith.mulf %78, %32 : vector<8x1024xf32>
    %80 = arith.addf %77, %79 : vector<8x1024xf32>
    %81 = vector.extract_strided_slice %19 {offsets = [32, 0], sizes = [8, 1024], strides = [1, 1]} : vector<80x1024xf32> to vector<8x1024xf32>
    %82 = arith.mulf %81, %38 : vector<8x1024xf32>
    %83 = arith.addf %80, %82 : vector<8x1024xf32>
    %84 = vector.extract_strided_slice %19 {offsets = [40, 0], sizes = [8, 1024], strides = [1, 1]} : vector<80x1024xf32> to vector<8x1024xf32>
    %85 = arith.mulf %84, %44 : vector<8x1024xf32>
    %86 = arith.addf %83, %85 : vector<8x1024xf32>
    %87 = vector.extract_strided_slice %19 {offsets = [48, 0], sizes = [8, 1024], strides = [1, 1]} : vector<80x1024xf32> to vector<8x1024xf32>
    %88 = arith.mulf %87, %50 : vector<8x1024xf32>
    %89 = arith.addf %86, %88 : vector<8x1024xf32>
    %90 = vector.extract_strided_slice %19 {offsets = [56, 0], sizes = [8, 1024], strides = [1, 1]} : vector<80x1024xf32> to vector<8x1024xf32>
    %91 = arith.mulf %90, %56 : vector<8x1024xf32>
    %92 = arith.addf %89, %91 : vector<8x1024xf32>
    %93 = vector.extract_strided_slice %19 {offsets = [64, 0], sizes = [8, 1024], strides = [1, 1]} : vector<80x1024xf32> to vector<8x1024xf32>
    %94 = arith.mulf %93, %62 : vector<8x1024xf32>
    %95 = arith.addf %92, %94 : vector<8x1024xf32>
    %96 = vector.extract_strided_slice %19 {offsets = [72, 0], sizes = [8, 1024], strides = [1, 1]} : vector<80x1024xf32> to vector<8x1024xf32>
    %97 = arith.mulf %96, %68 : vector<8x1024xf32>
    %98 = arith.addf %95, %97 : vector<8x1024xf32>
    %c0_35 = arith.constant 0 : index
    %c0_36 = arith.constant 0 : index
    %99 = vector.load %arg9[%c0_35, %c0_36] : memref<8x1024xf32, #tpu.memory_space<vmem>>, vector<8x1024xf32>
    tpu.vector_store %arg9[%c0_35, %c0_36], %98 {strides = array<i32>} : memref<8x1024xf32, #tpu.memory_space<vmem>>, vector<8x1024xf32>,
    return
  }
  func.func @transform_0(%arg0: i32) -> (i32, i32) {
    %c0_i32 = arith.constant 0 : i32
    %c0_i32_0 = arith.constant 0 : i32
    return %c0_i32, %arg0 : i32, i32
  }
  func.func @transform_1(%arg0: i32) -> (i32, i32) {
    %c0_i32 = arith.constant 0 : i32
    %c0_i32_0 = arith.constant 0 : i32
    return %c0_i32, %arg0 : i32, i32
  }
  func.func @transform_2(%arg0: i32) -> (i32, i32) {
    %c0_i32 = arith.constant 0 : i32
    %c0_i32_0 = arith.constant 0 : i32
    %c0_i32_1 = arith.constant 0 : i32
    return %c0_i32, %c0_i32_0 : i32, i32
  }
  func.func @transform_3(%arg0: i32) -> (i32, i32) {
    %c0_i32 = arith.constant 0 : i32
    %c0_i32_0 = arith.constant 0 : i32
    %c0_i32_1 = arith.constant 0 : i32
    return %c0_i32, %c0_i32_0 : i32, i32
  }
  func.func @transform_4(%arg0: i32) -> (i32, i32) {
    %c0_i32 = arith.constant 0 : i32
    %c0_i32_0 = arith.constant 0 : i32
    %c0_i32_1 = arith.constant 0 : i32
    return %c0_i32, %c0_i32_0 : i32, i32
  }
  func.func @transform_5(%arg0: i32) -> (i32, i32) {
    %c0_i32 = arith.constant 0 : i32
    %c0_i32_0 = arith.constant 0 : i32
    %c0_i32_1 = arith.constant 0 : i32
    return %c0_i32, %c0_i32_0 : i32, i32
  }
  func.func @transform_6(%arg0: i32) -> (i32, i32) {
    %c0_i32 = arith.constant 0 : i32
    %c0_i32_0 = arith.constant 0 : i32
    %c0_i32_1 = arith.constant 0 : i32
    return %c0_i32, %c0_i32_0 : i32, i32
  }
  func.func @transform_7(%arg0: i32) -> (i32, i32) {
    %c0_i32 = arith.constant 0 : i32
    %c0_i32_0 = arith.constant 0 : i32
    %c0_i32_1 = arith.constant 0 : i32
    return %c0_i32, %c0_i32_0 : i32, i32
  }
  func.func @transform_8(%arg0: i32) -> (i32, i32) {
    %c0_i32 = arith.constant 0 : i32
    %c0_i32_0 = arith.constant 0 : i32
    return %c0_i32, %arg0 : i32, i32
  }
}

</mosaic_0001>

<llo_original>
// kernel: tpu_custom_call.1
$region0: #{tpu_custom_call.1}
  #allocation0 [shape = 'u32[]', space=smem, size = 0x4, offset = 0x4, fixed_abs, tag = 'smem constant byte address 0x4 - core index']
  #allocation1 [shape = 'u32[72,128]{1,0:T(1,128)}', space=vmem, size = 0x9000, scoped, tag = 'internal scratch']
  %s0 = inlined_call_operand.vmem [shape: f32[8,1024], index: 0, kind: input, shape index: {}]
  %s1 = inlined_call_operand.vmem [shape: f32[8,1024], index: 1, kind: input, shape index: {}]
  %s2 = inlined_call_operand.vmem [shape: f32[256,8], index: 2, kind: input, shape index: {}]
  %s3 = inlined_call_operand.vmem [shape: f32[256,1], index: 3, kind: input, shape index: {}]
  %s4 = inlined_call_operand.vmem [shape: f32[256,256], index: 4, kind: input, shape index: {}]
  %s5 = inlined_call_operand.vmem [shape: f32[256,1], index: 5, kind: input, shape index: {}]
  %s6 = inlined_call_operand.vmem [shape: f32[80,256], index: 6, kind: input, shape index: {}]
  %s7 = inlined_call_operand.vmem [shape: f32[80,1], index: 7, kind: input, shape index: {}]
  %s8 = inlined_call_operand.hbm [shape: f32[8,1024], index: 8, kind: output, shape index: {}]
  %s9 = sld [smem:[#allocation0]]
  $region42: #{tpu_custom_call.1} parent=0
    _
  %s11 = ssub.s32 1, %s9
  %s12 = scalar_select 0, %s11, %s9
  $region1: #{tpu_custom_call.1} parent=0
    #allocation2 [shape = 'u8[32768]{0}', space=vmem, size = 0x8000, scoped, tag = 'output window, operand 0, single buffered']
    #allocation3 [shape = 's32[1]{0}', space=sflag, size = 0x4, scoped, tag = 'scoped memory for tpu_custom_call.1']
    %13 = vsyncpa [#allocation3], 0
    // Predicated region
    $region2: #{tpu_custom_call.1} parent=1 // pred_check
      _
    $region3: #{tpu_custom_call.1} parent=1 // pred_check_branch
      %15 = sbr.rel (0) target = $region5
    $region4: #{tpu_custom_call.1} parent=1 // pred_region
      _
    $region5: #{tpu_custom_call.1} parent=1 // pred_fallthru
      _
    // Predicated region
    $region6: #{tpu_custom_call.1} parent=1 // pred_check
      _
    $region7: #{tpu_custom_call.1} parent=1 // pred_check_branch
      %17 = sbr.rel (0) target = $region9
    $region8: #{tpu_custom_call.1} parent=1 // pred_region
      _
    $region9: #{tpu_custom_call.1} parent=1 // pred_fallthru
      _
    // Predicated region
    $region10: #{tpu_custom_call.1} parent=1 // pred_check
      _
    $region11: #{tpu_custom_call.1} parent=1 // pred_check_branch
      %19 = sbr.rel (0) target = $region13
    $region12: #{tpu_custom_call.1} parent=1 // pred_region
      _
    $region13: #{tpu_custom_call.1} parent=1 // pred_fallthru
      _
    // Predicated region
    $region14: #{tpu_custom_call.1} parent=1 // pred_check
      _
    $region15: #{tpu_custom_call.1} parent=1 // pred_check_branch
      %21 = sbr.rel (0) target = $region17
    $region16: #{tpu_custom_call.1} parent=1 // pred_region
      _
    $region17: #{tpu_custom_call.1} parent=1 // pred_fallthru
      _
    // Predicated region
    $region18: #{tpu_custom_call.1} parent=1 // pred_check
      _
    $region19: #{tpu_custom_call.1} parent=1 // pred_check_branch
      %23 = sbr.rel (0) target = $region21
    $region20: #{tpu_custom_call.1} parent=1 // pred_region
      _
    $region21: #{tpu_custom_call.1} parent=1 // pred_fallthru
      _
    // Predicated region
    $region22: #{tpu_custom_call.1} parent=1 // pred_check
      _
    $region23: #{tpu_custom_call.1} parent=1 // pred_check_branch
      %25 = sbr.rel (0) target = $region25
    $region24: #{tpu_custom_call.1} parent=1 // pred_region
      _
    $region25: #{tpu_custom_call.1} parent=1 // pred_fallthru
      _
    // Predicated region
    $region26: #{tpu_custom_call.1} parent=1 // pred_check
      _
    $region27: #{tpu_custom_call.1} parent=1 // pred_check_branch
      %27 = sbr.rel (0) target = $region29
    $region28: #{tpu_custom_call.1} parent=1 // pred_region
      _
    $region29: #{tpu_custom_call.1} parent=1 // pred_fallthru
      _
    // Predicated region
    $region30: #{tpu_custom_call.1} parent=1 // pred_check
      _
    $region31: #{tpu_custom_call.1} parent=1 // pred_check_branch
      %29 = sbr.rel (0) target = $region33
    $region32: #{tpu_custom_call.1} parent=1 // pred_region
      _
    $region33: #{tpu_custom_call.1} parent=1 // pred_fallthru
      _
    %v30 = vld [vmem:[%s0] sm:$0xff]
    %v31 = vld [vmem:[%s0 + $0x8] sm:$0xff]
    %v32 = vld [vmem:[%s0 + $0x10] sm:$0xff]
    %v33 = vld [vmem:[%s0 + $0x18] sm:$0xff]
    %v34 = vld [vmem:[%s0 + $0x20] sm:$0xff]
    %v35 = vld [vmem:[%s0 + $0x28] sm:$0xff]
    %v36 = vld [vmem:[%s0 + $0x30] sm:$0xff]
    %v37 = vld [vmem:[%s0 + $0x38] sm:$0xff]
    %v38 = vld [vmem:[%s1] sm:$0xff]
    %v39 = vld [vmem:[%s1 + $0x8] sm:$0xff]
    %v40 = vld [vmem:[%s1 + $0x10] sm:$0xff]
    %v41 = vld [vmem:[%s1 + $0x18] sm:$0xff]
    %v42 = vld [vmem:[%s1 + $0x20] sm:$0xff]
    %v43 = vld [vmem:[%s1 + $0x28] sm:$0xff]
    %v44 = vld [vmem:[%s1 + $0x30] sm:$0xff]
    %v45 = vld [vmem:[%s1 + $0x38] sm:$0xff]
    %v46 = vand.u32 2147483647, %v38
    %vm47 = vcmp.le.f32.partialorder %v46, 0.7853982
    %vm48 = vcmp.lt.s32.totalorder %v38, 0
    %v49 = vand.u32 %v38, 2139095040
    %v50 = vshrl.u32 %v49, 23
    %v51 = vsub.s32 %v50, 127
    %v52 = vand.u32 2147483647, %v38
    %v53 = vand.u32 %v52, 8388607
    %v54 = vor.u32 %v53, 8388608
    %v55 = vsub.s32 0, %v54
    %v56 = vadd.s32 %v51, 1
    %vm57 = vcmp.gt.s32.totalorder %v56, 0
    %v58 = vsel %vm57, %v56, 0
    %v59 = vshrl.u32 %v58, 5
    %v60 = vand.u32 %v58, 31
    %v61 = vsub.s32 32, %v60
    %v62 = vshrl.u32 683565275, %v61
    %v63 = vshll.u32 683565275, %v60
    %v64 = vshrl.u32 2475754826, %v61
    %v65 = vor.u32 %v63, %v64
    %v66 = vshll.u32 2475754826, %v60
    %v67 = vshrl.u32 2131351028, %v61
    %v68 = vor.u32 %v66, %v67
    %v69 = vshll.u32 2131351028, %v60
    %v70 = vshrl.u32 2102212464, %v61
    %v71 = vor.u32 %v69, %v70
    %v72 = vshll.u32 2102212464, %v60
    %v73 = vshrl.u32 920167782, %v61
    %v74 = vor.u32 %v72, %v73
    %v75 = vshll.u32 920167782, %v60
    %v76 = vshrl.u32 1326507024, %v61
    %v77 = vor.u32 %v75, %v76
    %vm78 = vcmp.lt.s32.totalorder %v59, 1
    %vm79 = vcmp.lt.s32.totalorder %v59, 2
    %vm80 = vcmp.lt.s32.totalorder %v59, 3
    %vm81 = vcmp.lt.s32.totalorder %v59, 4
    %v82 = vsel %vm78, %v62, %v65
    %v83 = vsel %vm81, %v71, 2102212464
    %v84 = vsel %vm80, %v68, %v83
    %v85 = vsel %vm79, %v82, %v84
    %v86 = vsel %vm78, %v65, %v68
    %v87 = vsel %vm81, %v74, 920167782
    %v88 = vsel %vm80, %v71, %v87
    %v89 = vsel %vm79, %v86, %v88
    %v90 = vsel %vm78, %v68, %v71
    %v91 = vsel %vm81, %v77, 1326507024
    %v92 = vsel %vm80, %v74, %v91
    %v93 = vsel %vm79, %v90, %v92
    %v94 = vshll.u32 %v54, 8
    %v95 = vand.u32 %v94, 65535
    %v96 = vshrl.u32 %v94, 16
    %v97 = vand.u32 %v93, 65535
    %v98 = vshrl.u32 %v93, 16
    %v99 = vmul.u32 %v95, %v97
    %v100 = vmul.u32 %v95, %v98
    %v101 = vmul.u32 %v96, %v97
    %v102 = vmul.u32 %v96, %v98
    %v103 = vshll.u32 %v100, 16
    %v104 = vshrl.u32 %v100, 16
    %v105 = vshll.u32 %v101, 16
    %v106 = vshrl.u32 %v101, 16
    %vm107 = vc.u32 %v99, %v103
    %v108 = vsel %vm107, 1, 0
    %v109 = vadd.s32 %v99, %v103
    %v110 = vadd.s32 %v102, %v108
    %vm111 = vc.u32 %v109, %v105
    %v112 = vsel %vm111, 1, 0
    %v113 = vadd.s32 %v109, %v105
    %v114 = vadd.s32 %v110, %v112
    %v115 = vadd.s32 %v114, %v104
    %v116 = vadd.s32 %v115, %v106
    %v117 = vand.u32 %v94, 65535
    %v118 = vshrl.u32 %v94, 16
    %v119 = vand.u32 %v89, 65535
    %v120 = vshrl.u32 %v89, 16
    %v121 = vmul.u32 %v117, %v119
    %v122 = vmul.u32 %v117, %v120
    %v123 = vmul.u32 %v118, %v119
    %v124 = vmul.u32 %v118, %v120
    %v125 = vshll.u32 %v122, 16
    %v126 = vshrl.u32 %v122, 16
    %v127 = vshll.u32 %v123, 16
    %v128 = vshrl.u32 %v123, 16
    %vm129 = vc.u32 %v121, %v125
    %v130 = vsel %vm129, 1, 0
    %v131 = vadd.s32 %v121, %v125
    %v132 = vadd.s32 %v124, %v130
    %vm133 = vc.u32 %v131, %v127
    %v134 = vsel %vm133, 1, 0
    %v135 = vadd.s32 %v131, %v127
    %v136 = vadd.s32 %v132, %v134
    %v137 = vadd.s32 %v136, %v126
    %v138 = vadd.s32 %v137, %v128
    %v139 = vmul.u32 %v94, %v85
    %v140 = vadd.s32 %v116, %v135
    %vm141 = vc.u32 %v116, %v135
    %v142 = vadd.s32 %v138, 1
    %v143 = vsel %vm141, %v142, %v138
    %v144 = vadd.s32 %v139, %v143
    %v145 = vadd.s32 %v144, 536870912
    %v146 = vshrl.u32 %v145, 30
    %v147 = vshll.u32 %v146, 30
    %v148 = vsub.s32 %v144, %v147
    %vm149 = vcmp.lt.s32.totalorder %v148, 0
    %v150 = vsub.s32 0, %v148
    %v151 = vsel %vm149, %v150, %v148
    %v152 = vclz %v151
    %v153 = vsub.s32 %v152, 2
    %vm154 = vcmp.gt.s32.totalorder 0, %v153
    %v155 = vsel %vm154, 0, %v153
    %v156 = vsub.s32 32, %v155
    %v157 = vshll.u32 %v148, %v155
    %v158 = vshrl.u32 %v140, %v156
    %v159 = vor.u32 %v157, %v158
    %v160 = vsub.s32 4294967266, %v155
    %v161 = vadd.s32 %v160, 127
    %v162 = vshll.u32 %v161, 23
    %v163 = vor.u32 4788187, %v162
    %v164 = vand.u32 2147483647, %v163
    %v166 = vcvt.s32.f32 %v159
    %v167 = vmul.f32 %v166, %v164
    %v168 = vxor.u32 %v167, 2147483648
    %v169 = vsel %vm48, %v168, %v167
    %v170 = vsub.s32 4, %v146
    %v171 = vsel %vm48, %v170, %v146
    %v172 = vsel %vm47, %v38, %v169
    %v173 = vsel %vm47, 0, %v171
    %v174 = vmul.f32 %v172, %v172
    %v175 = vmul.f32 %v174, -0.001358992
    %v176 = vadd.f32 %v175, 0.041655596
    %v177 = vmul.f32 %v174, %v176
    %v178 = vadd.f32 %v177, -0.4999988
    %v179 = vmul.f32 %v174, %v178
    %v180 = vadd.f32 1.0, %v179
    %v181 = vmul.f32 %v172, %v172
    %v182 = vmul.f32 %v181, -0.00019511016
    %v183 = vadd.f32 %v182, 0.008332121
    %v184 = vmul.f32 %v181, %v183
    %v185 = vadd.f32 %v184, -0.16666654
    %v186 = vmul.f32 %v181, %v185
    %v187 = vadd.f32 %v186, 1.0
    %v188 = vmul.f32 %v187, %v172
    %vm189 = vweird.f32 %v38
    %v190 = vand.u32 %v173, 3
    %vm191 = vcmp.lt.s32.totalorder %v190, 2
    %vm192 = vcmp.eq.s32.totalorder %v190, 0
    %v193 = vxor.u32 %v188, 2147483648
    %v194 = vsel %vm192, %v180, %v193
    %vm195 = vcmp.eq.s32.totalorder %v190, 2
    %v196 = vxor.u32 %v180, 2147483648
    %v197 = vsel %vm195, %v196, %v188
    %v198 = vsel %vm191, %v194, %v197
    %v199 = vsel %vm189, nan, %v198
    %v200 = vand.u32 2147483647, %v39
    %vm201 = vcmp.le.f32.partialorder %v200, 0.7853982
    %vm202 = vcmp.lt.s32.totalorder %v39, 0
    %v203 = vand.u32 %v39, 2139095040
    %v204 = vshrl.u32 %v203, 23
    %v205 = vsub.s32 %v204, 127
    %v206 = vand.u32 2147483647, %v39
    %v207 = vand.u32 %v206, 8388607
    %v208 = vor.u32 %v207, 8388608
    %v209 = vsub.s32 0, %v208
    %v210 = vadd.s32 %v205, 1
    %vm211 = vcmp.gt.s32.totalorder %v210, 0
    %v212 = vsel %vm211, %v210, 0
    %v213 = vshrl.u32 %v212, 5
    %v214 = vand.u32 %v212, 31
    %v215 = vsub.s32 32, %v214
    %v216 = vshrl.u32 683565275, %v215
    %v217 = vshll.u32 683565275, %v214
    %v218 = vshrl.u32 2475754826, %v215
    %v219 = vor.u32 %v217, %v218
    %v220 = vshll.u32 2475754826, %v214
    %v221 = vshrl.u32 2131351028, %v215
    %v222 = vor.u32 %v220, %v221
    %v223 = vshll.u32 2131351028, %v214
    %v224 = vshrl.u32 2102212464, %v215
    %v225 = vor.u32 %v223, %v224
    %v226 = vshll.u32 2102212464, %v214
    %v227 = vshrl.u32 920167782, %v215
    %v228 = vor.u32 %v226, %v227
    %v229 = vshll.u32 920167782, %v214
    %v230 = vshrl.u32 1326507024, %v215
    %v231 = vor.u32 %v229, %v230
    %vm232 = vcmp.lt.s32.totalorder %v213, 1
    %vm233 = vcmp.lt.s32.totalorder %v213, 2
    %vm234 = vcmp.lt.s32.totalorder %v213, 3
    %vm235 = vcmp.lt.s32.totalorder %v213, 4
    %v236 = vsel %vm232, %v216, %v219
    %v237 = vsel %vm235, %v225, 2102212464
    %v238 = vsel %vm234, %v222, %v237
    %v239 = vsel %vm233, %v236, %v238
    %v240 = vsel %vm232, %v219, %v222
    %v241 = vsel %vm235, %v228, 920167782
    %v242 = vsel %vm234, %v225, %v241
    %v243 = vsel %vm233, %v240, %v242
    %v244 = vsel %vm232, %v222, %v225
    %v245 = vsel %vm235, %v231, 1326507024
    %v246 = vsel %vm234, %v228, %v245
    %v247 = vsel %vm233, %v244, %v246
    %v248 = vshll.u32 %v208, 8
    %v249 = vand.u32 %v248, 65535
    %v250 = vshrl.u32 %v248, 16
    %v251 = vand.u32 %v247, 65535
    %v252 = vshrl.u32 %v247, 16
    %v253 = vmul.u32 %v249, %v251
    %v254 = vmul.u32 %v249, %v252
    %v255 = vmul.u32 %v250, %v251
    %v256 = vmul.u32 %v250, %v252
    %v257 = vshll.u32 %v254, 16
    %v258 = vshrl.u32 %v254, 16
    %v259 = vshll.u32 %v255, 16
    %v260 = vshrl.u32 %v255, 16
    %vm261 = vc.u32 %v253, %v257
    %v262 = vsel %vm261, 1, 0
    %v263 = vadd.s32 %v253, %v257
    %v264 = vadd.s32 %v256, %v262
    %vm265 = vc.u32 %v263, %v259
    %v266 = vsel %vm265, 1, 0
    %v267 = vadd.s32 %v263, %v259
    %v268 = vadd.s32 %v264, %v266
    %v269 = vadd.s32 %v268, %v258
    %v270 = vadd.s32 %v269, %v260
    %v271 = vand.u32 %v248, 65535
    %v272 = vshrl.u32 %v248, 16
    %v273 = vand.u32 %v243, 65535
    %v274 = vshrl.u32 %v243, 16
    %v275 = vmul.u32 %v271, %v273
    %v276 = vmul.u32 %v271, %v274
    %v277 = vmul.u32 %v272, %v273
    %v278 = vmul.u32 %v272, %v274
    %v279 = vshll.u32 %v276, 16
    %v280 = vshrl.u32 %v276, 16
    %v281 = vshll.u32 %v277, 16
    %v282 = vshrl.u32 %v277, 16
    %vm283 = vc.u32 %v275, %v279
    %v284 = vsel %vm283, 1, 0
    %v285 = vadd.s32 %v275, %v279
    %v286 = vadd.s32 %v278, %v284
    %vm287 = vc.u32 %v285, %v281
    %v288 = vsel %vm287, 1, 0
    %v289 = vadd.s32 %v285, %v281
    %v290 = vadd.s32 %v286, %v288
    %v291 = vadd.s32 %v290, %v280
    %v292 = vadd.s32 %v291, %v282
    %v293 = vmul.u32 %v248, %v239
    %v294 = vadd.s32 %v270, %v289
    %vm295 = vc.u32 %v270, %v289
    %v296 = vadd.s32 %v292, 1
    %v297 = vsel %vm295, %v296, %v292
    %v298 = vadd.s32 %v293, %v297
    %v299 = vadd.s32 %v298, 536870912
    %v300 = vshrl.u32 %v299, 30
    %v301 = vshll.u32 %v300, 30
    %v302 = vsub.s32 %v298, %v301
    %vm303 = vcmp.lt.s32.totalorder %v302, 0
    %v304 = vsub.s32 0, %v302
    %v305 = vsel %vm303, %v304, %v302
    %v306 = vclz %v305
    %v307 = vsub.s32 %v306, 2
    %vm308 = vcmp.gt.s32.totalorder 0, %v307
    %v309 = vsel %vm308, 0, %v307
    %v310 = vsub.s32 32, %v309
    %v311 = vshll.u32 %v302, %v309
    %v312 = vshrl.u32 %v294, %v310
    %v313 = vor.u32 %v311, %v312
    %v314 = vsub.s32 4294967266, %v309
    %v315 = vadd.s32 %v314, 127
    %v316 = vshll.u32 %v315, 23
    %v317 = vor.u32 4788187, %v316
    %v318 = vand.u32 2147483647, %v317
    %v320 = vcvt.s32.f32 %v313
    %v321 = vmul.f32 %v320, %v318
    %v322 = vxor.u32 %v321, 2147483648
    %v323 = vsel %vm202, %v322, %v321
    %v324 = vsub.s32 4, %v300
    %v325 = vsel %vm202, %v324, %v300
    %v326 = vsel %vm201, %v39, %v323
    %v327 = vsel %vm201, 0, %v325
    %v328 = vmul.f32 %v326, %v326
    %v329 = vmul.f32 %v328, -0.001358992
    %v330 = vadd.f32 %v329, 0.041655596
    %v331 = vmul.f32 %v328, %v330
    %v332 = vadd.f32 %v331, -0.4999988
    %v333 = vmul.f32 %v328, %v332
    %v334 = vadd.f32 1.0, %v333
    %v335 = vmul.f32 %v326, %v326
    %v336 = vmul.f32 %v335, -0.00019511016
    %v337 = vadd.f32 %v336, 0.008332121
    %v338 = vmul.f32 %v335, %v337
    %v339 = vadd.f32 %v338, -0.16666654
    %v340 = vmul.f32 %v335, %v339
    %v341 = vadd.f32 %v340, 1.0
    %v342 = vmul.f32 %v341, %v326
    %vm343 = vweird.f32 %v39
    %v344 = vand.u32 %v327, 3
    %vm345 = vcmp.lt.s32.totalorder %v344, 2
    %vm346 = vcmp.eq.s32.totalorder %v344, 0
    %v347 = vxor.u32 %v342, 2147483648
    %v348 = vsel %vm346, %v334, %v347
    %vm349 = vcmp.eq.s32.totalorder %v344, 2
    %v350 = vxor.u32 %v334, 2147483648
    %v351 = vsel %vm349, %v350, %v342
    %v352 = vsel %vm345, %v348, %v351
    %v353 = vsel %vm343, nan, %v352
    %v354 = vand.u32 2147483647, %v40
    %vm355 = vcmp.le.f32.partialorder %v354, 0.7853982
    %vm356 = vcmp.lt.s32.totalorder %v40, 0
    %v357 = vand.u32 %v40, 2139095040
    %v358 = vshrl.u32 %v357, 23
    %v359 = vsub.s32 %v358, 127
    %v360 = vand.u32 2147483647, %v40
    %v361 = vand.u32 %v360, 8388607
    %v362 = vor.u32 %v361, 8388608
    %v363 = vsub.s32 0, %v362
    %v364 = vadd.s32 %v359, 1
    %vm365 = vcmp.gt.s32.totalorder %v364, 0
    %v366 = vsel %vm365, %v364, 0
    %v367 = vshrl.u32 %v366, 5
    %v368 = vand.u32 %v366, 31
    %v369 = vsub.s32 32, %v368
    %v370 = vshrl.u32 683565275, %v369
    %v371 = vshll.u32 683565275, %v368
    %v372 = vshrl.u32 2475754826, %v369
    %v373 = vor.u32 %v371, %v372
    %v374 = vshll.u32 2475754826, %v368
    %v375 = vshrl.u32 2131351028, %v369
    %v376 = vor.u32 %v374, %v375
    %v377 = vshll.u32 2131351028, %v368
    %v378 = vshrl.u32 2102212464, %v369
    %v379 = vor.u32 %v377, %v378
    %v380 = vshll.u32 2102212464, %v368
    %v381 = vshrl.u32 920167782, %v369
    %v382 = vor.u32 %v380, %v381
    %v383 = vshll.u32 920167782, %v368
    %v384 = vshrl.u32 1326507024, %v369
    %v385 = vor.u32 %v383, %v384
    %vm386 = vcmp.lt.s32.totalorder %v367, 1
    %vm387 = vcmp.lt.s32.totalorder %v367, 2
    %vm388 = vcmp.lt.s32.totalorder %v367, 3
    %vm389 = vcmp.lt.s32.totalorder %v367, 4
    %v390 = vsel %vm386, %v370, %v373
    %v391 = vsel %vm389, %v379, 2102212464
    %v392 = vsel %vm388, %v376, %v391
    %v393 = vsel %vm387, %v390, %v392
    %v394 = vsel %vm386, %v373, %v376
    %v395 = vsel %vm389, %v382, 920167782
    %v396 = vsel %vm388, %v379, %v395
    %v397 = vsel %vm387, %v394, %v396
    %v398 = vsel %vm386, %v376, %v379
    %v399 = vsel %vm389, %v385, 1326507024
    %v400 = vsel %vm388, %v382, %v399
    %v401 = vsel %vm387, %v398, %v400
    %v402 = vshll.u32 %v362, 8
    %v403 = vand.u32 %v402, 65535
    %v404 = vshrl.u32 %v402, 16
    %v405 = vand.u32 %v401, 65535
    %v406 = vshrl.u32 %v401, 16
    %v407 = vmul.u32 %v403, %v405
    %v408 = vmul.u32 %v403, %v406
    %v409 = vmul.u32 %v404, %v405
    %v410 = vmul.u32 %v404, %v406
    %v411 = vshll.u32 %v408, 16
    %v412 = vshrl.u32 %v408, 16
    %v413 = vshll.u32 %v409, 16
    %v414 = vshrl.u32 %v409, 16
    %vm415 = vc.u32 %v407, %v411
    %v416 = vsel %vm415, 1, 0
    %v417 = vadd.s32 %v407, %v411
    %v418 = vadd.s32 %v410, %v416
    %vm419 = vc.u32 %v417, %v413
    %v420 = vsel %vm419, 1, 0
    %v421 = vadd.s32 %v417, %v413
    %v422 = vadd.s32 %v418, %v420
    %v423 = vadd.s32 %v422, %v412
    %v424 = vadd.s32 %v423, %v414
    %v425 = vand.u32 %v402, 65535
    %v426 = vshrl.u32 %v402, 16
    %v427 = vand.u32 %v397, 65535
    %v428 = vshrl.u32 %v397, 16
    %v429 = vmul.u32 %v425, %v427
    %v430 = vmul.u32 %v425, %v428
    %v431 = vmul.u32 %v426, %v427
    %v432 = vmul.u32 %v426, %v428
    %v433 = vshll.u32 %v430, 16
    %v434 = vshrl.u32 %v430, 16
    %v435 = vshll.u32 %v431, 16
    %v436 = vshrl.u32 %v431, 16
    %vm437 = vc.u32 %v429, %v433
    %v438 = vsel %vm437, 1, 0
    %v439 = vadd.s32 %v429, %v433
    %v440 = vadd.s32 %v432, %v438
    %vm441 = vc.u32 %v439, %v435
    %v442 = vsel %vm441, 1, 0
    %v443 = vadd.s32 %v439, %v435
    %v444 = vadd.s32 %v440, %v442
    %v445 = vadd.s32 %v444, %v434
    %v446 = vadd.s32 %v445, %v436
    %v447 = vmul.u32 %v402, %v393
    %v448 = vadd.s32 %v424, %v443
    %vm449 = vc.u32 %v424, %v443
    %v450 = vadd.s32 %v446, 1
    %v451 = vsel %vm449, %v450, %v446
    %v452 = vadd.s32 %v447, %v451
    %v453 = vadd.s32 %v452, 536870912
    %v454 = vshrl.u32 %v453, 30
    %v455 = vshll.u32 %v454, 30
    %v456 = vsub.s32 %v452, %v455
    %vm457 = vcmp.lt.s32.totalorder %v456, 0
    %v458 = vsub.s32 0, %v456
    %v459 = vsel %vm457, %v458, %v456
    %v460 = vclz %v459
    %v461 = vsub.s32 %v460, 2
    %vm462 = vcmp.gt.s32.totalorder 0, %v461
    %v463 = vsel %vm462, 0, %v461
    %v464 = vsub.s32 32, %v463
    %v465 = vshll.u32 %v456, %v463
    %v466 = vshrl.u32 %v448, %v464
    %v467 = vor.u32 %v465, %v466
    %v468 = vsub.s32 4294967266, %v463
    %v469 = vadd.s32 %v468, 127
    %v470 = vshll.u32 %v469, 23
    %v471 = vor.u32 4788187, %v470
    %v472 = vand.u32 2147483647, %v471
    %v474 = vcvt.s32.f32 %v467
    %v475 = vmul.f32 %v474, %v472
    %v476 = vxor.u32 %v475, 2147483648
    %v477 = vsel %vm356, %v476, %v475
    %v478 = vsub.s32 4, %v454
    %v479 = vsel %vm356, %v478, %v454
    %v480 = vsel %vm355, %v40, %v477
    %v481 = vsel %vm355, 0, %v479
    %v482 = vmul.f32 %v480, %v480
    %v483 = vmul.f32 %v482, -0.001358992
    %v484 = vadd.f32 %v483, 0.041655596
    %v485 = vmul.f32 %v482, %v484
    %v486 = vadd.f32 %v485, -0.4999988
    %v487 = vmul.f32 %v482, %v486
    %v488 = vadd.f32 1.0, %v487
    %v489 = vmul.f32 %v480, %v480
    %v490 = vmul.f32 %v489, -0.00019511016
    %v491 = vadd.f32 %v490, 0.008332121
    %v492 = vmul.f32 %v489, %v491
    %v493 = vadd.f32 %v492, -0.16666654
    %v494 = vmul.f32 %v489, %v493
    %v495 = vadd.f32 %v494, 1.0
    %v496 = vmul.f32 %v495, %v480
    %vm497 = vweird.f32 %v40
    %v498 = vand.u32 %v481, 3
    %vm499 = vcmp.lt.s32.totalorder %v498, 2
    %vm500 = vcmp.eq.s32.totalorder %v498, 0
    %v501 = vxor.u32 %v496, 2147483648
    %v502 = vsel %vm500, %v488, %v501
    %vm503 = vcmp.eq.s32.totalorder %v498, 2
    %v504 = vxor.u32 %v488, 2147483648
    %v505 = vsel %vm503, %v504, %v496
    %v506 = vsel %vm499, %v502, %v505
    %v507 = vsel %vm497, nan, %v506
    %v508 = vand.u32 2147483647, %v41
    %vm509 = vcmp.le.f32.partialorder %v508, 0.7853982
    %vm510 = vcmp.lt.s32.totalorder %v41, 0
    %v511 = vand.u32 %v41, 2139095040
    %v512 = vshrl.u32 %v511, 23
    %v513 = vsub.s32 %v512, 127
    %v514 = vand.u32 2147483647, %v41
    %v515 = vand.u32 %v514, 8388607
    %v516 = vor.u32 %v515, 8388608
    %v517 = vsub.s32 0, %v516
    %v518 = vadd.s32 %v513, 1
    %vm519 = vcmp.gt.s32.totalorder %v518, 0
    %v520 = vsel %vm519, %v518, 0
    %v521 = vshrl.u32 %v520, 5
    %v522 = vand.u32 %v520, 31
    %v523 = vsub.s32 32, %v522
    %v524 = vshrl.u32 683565275, %v523
    %v525 = vshll.u32 683565275, %v522
    %v526 = vshrl.u32 2475754826, %v523
    %v527 = vor.u32 %v525, %v526
    %v528 = vshll.u32 2475754826, %v522
    %v529 = vshrl.u32 2131351028, %v523
    %v530 = vor.u32 %v528, %v529
    %v531 = vshll.u32 2131351028, %v522
    %v532 = vshrl.u32 2102212464, %v523
    %v533 = vor.u32 %v531, %v532
    %v534 = vshll.u32 2102212464, %v522
    %v535 = vshrl.u32 920167782, %v523
    %v536 = vor.u32 %v534, %v535
    %v537 = vshll.u32 920167782, %v522
    %v538 = vshrl.u32 1326507024, %v523
    %v539 = vor.u32 %v537, %v538
    %vm540 = vcmp.lt.s32.totalorder %v521, 1
    %vm541 = vcmp.lt.s32.totalorder %v521, 2
    %vm542 = vcmp.lt.s32.totalorder %v521, 3
    %vm543 = vcmp.lt.s32.totalorder %v521, 4
    %v544 = vsel %vm540, %v524, %v527
    %v545 = vsel %vm543, %v533, 2102212464
    %v546 = vsel %vm542, %v530, %v545
    %v547 = vsel %vm541, %v544, %v546
    %v548 = vsel %vm540, %v527, %v530
    %v549 = vsel %vm543, %v536, 920167782
    %v550 = vsel %vm542, %v533, %v549
    %v551 = vsel %vm541, %v548, %v550
    %v552 = vsel %vm540, %v530, %v533
    %v553 = vsel %vm543, %v539, 1326507024
    %v554 = vsel %vm542, %v536, %v553
    %v555 = vsel %vm541, %v552, %v554
    %v556 = vshll.u32 %v516, 8
    %v557 = vand.u32 %v556, 65535
    %v558 = vshrl.u32 %v556, 16
    %v559 = vand.u32 %v555, 65535
    %v560 = vshrl.u32 %v555, 16
    %v561 = vmul.u32 %v557, %v559
    %v562 = vmul.u32 %v557, %v560
    %v563 = vmul.u32 %v558, %v559
    %v564 = vmul.u32 %v558, %v560
    %v565 = vshll.u32 %v562, 16
    %v566 = vshrl.u32 %v562, 16
    %v567 = vshll.u32 %v563, 16
    %v568 = vshrl.u32 %v563, 16
    %vm569 = vc.u32 %v561, %v565
    %v570 = vsel %vm569, 1, 0
    %v571 = vadd.s32 %v561, %v565
    %v572 = vadd.s32 %v564, %v570
    %vm573 = vc.u32 %v571, %v567
    %v574 = vsel %vm573, 1, 0
    %v575 = vadd.s32 %v571, %v567
    %v576 = vadd.s32 %v572, %v574
    %v577 = vadd.s32 %v576, %v566
    %v578 = vadd.s32 %v577, %v568
    %v579 = vand.u32 %v556, 65535
    %v580 = vshrl.u32 %v556, 16
    %v581 = vand.u32 %v551, 65535
    %v582 = vshrl.u32 %v551, 16
    %v583 = vmul.u32 %v579, %v581
    %v584 = vmul.u32 %v579, %v582
    %v585 = vmul.u32 %v580, %v581
    %v586 = vmul.u32 %v580, %v582
    %v587 = vshll.u32 %v584, 16
    %v588 = vshrl.u32 %v584, 16
    %v589 = vshll.u32 %v585, 16
    %v590 = vshrl.u32 %v585, 16
    %vm591 = vc.u32 %v583, %v587
    %v592 = vsel %vm591, 1, 0
    %v593 = vadd.s32 %v583, %v587
    %v594 = vadd.s32 %v586, %v592
    %vm595 = vc.u32 %v593, %v589
    %v596 = vsel %vm595, 1, 0
    %v597 = vadd.s32 %v593, %v589
    %v598 = vadd.s32 %v594, %v596
    %v599 = vadd.s32 %v598, %v588
    %v600 = vadd.s32 %v599, %v590
    %v601 = vmul.u32 %v556, %v547
    %v602 = vadd.s32 %v578, %v597
    %vm603 = vc.u32 %v578, %v597
    %v604 = vadd.s32 %v600, 1
    %v605 = vsel %vm603, %v604, %v600
    %v606 = vadd.s32 %v601, %v605
    %v607 = vadd.s32 %v606, 536870912
    %v608 = vshrl.u32 %v607, 30
    %v609 = vshll.u32 %v608, 30
    %v610 = vsub.s32 %v606, %v609
    %vm611 = vcmp.lt.s32.totalorder %v610, 0
    %v612 = vsub.s32 0, %v610
    %v613 = vsel %vm611, %v612, %v610
    %v614 = vclz %v613
    %v615 = vsub.s32 %v614, 2
    %vm616 = vcmp.gt.s32.totalorder 0, %v615
    %v617 = vsel %vm616, 0, %v615
    %v618 = vsub.s32 32, %v617
    %v619 = vshll.u32 %v610, %v617
    %v620 = vshrl.u32 %v602, %v618
    %v621 = vor.u32 %v619, %v620
    %v622 = vsub.s32 4294967266, %v617
    %v623 = vadd.s32 %v622, 127
    %v624 = vshll.u32 %v623, 23
    %v625 = vor.u32 4788187, %v624
    %v626 = vand.u32 2147483647, %v625
    %v628 = vcvt.s32.f32 %v621
    %v629 = vmul.f32 %v628, %v626
    %v630 = vxor.u32 %v629, 2147483648
    %v631 = vsel %vm510, %v630, %v629
    %v632 = vsub.s32 4, %v608
    %v633 = vsel %vm510, %v632, %v608
    %v634 = vsel %vm509, %v41, %v631
    %v635 = vsel %vm509, 0, %v633
    %v636 = vmul.f32 %v634, %v634
    %v637 = vmul.f32 %v636, -0.001358992
    %v638 = vadd.f32 %v637, 0.041655596
    %v639 = vmul.f32 %v636, %v638
    %v640 = vadd.f32 %v639, -0.4999988
    %v641 = vmul.f32 %v636, %v640
    %v642 = vadd.f32 1.0, %v641
    %v643 = vmul.f32 %v634, %v634
    %v644 = vmul.f32 %v643, -0.00019511016
    %v645 = vadd.f32 %v644, 0.008332121
    %v646 = vmul.f32 %v643, %v645
    %v647 = vadd.f32 %v646, -0.16666654
    %v648 = vmul.f32 %v643, %v647
    %v649 = vadd.f32 %v648, 1.0
    %v650 = vmul.f32 %v649, %v634
    %vm651 = vweird.f32 %v41
    %v652 = vand.u32 %v635, 3
    %vm653 = vcmp.lt.s32.totalorder %v652, 2
    %vm654 = vcmp.eq.s32.totalorder %v652, 0
    %v655 = vxor.u32 %v650, 2147483648
    %v656 = vsel %vm654, %v642, %v655
    %vm657 = vcmp.eq.s32.totalorder %v652, 2
    %v658 = vxor.u32 %v642, 2147483648
    %v659 = vsel %vm657, %v658, %v650
    %v660 = vsel %vm653, %v656, %v659
    %v661 = vsel %vm651, nan, %v660
    %v662 = vand.u32 2147483647, %v42
    %vm663 = vcmp.le.f32.partialorder %v662, 0.7853982
    %vm664 = vcmp.lt.s32.totalorder %v42, 0
    %v665 = vand.u32 %v42, 2139095040
    %v666 = vshrl.u32 %v665, 23
    %v667 = vsub.s32 %v666, 127
    %v668 = vand.u32 2147483647, %v42
    %v669 = vand.u32 %v668, 8388607
    %v670 = vor.u32 %v669, 8388608
    %v671 = vsub.s32 0, %v670
    %v672 = vadd.s32 %v667, 1
    %vm673 = vcmp.gt.s32.totalorder %v672, 0
    %v674 = vsel %vm673, %v672, 0
    %v675 = vshrl.u32 %v674, 5
    %v676 = vand.u32 %v674, 31
    %v677 = vsub.s32 32, %v676
    %v678 = vshrl.u32 683565275, %v677
    %v679 = vshll.u32 683565275, %v676
    %v680 = vshrl.u32 2475754826, %v677
    %v681 = vor.u32 %v679, %v680
    %v682 = vshll.u32 2475754826, %v676
    %v683 = vshrl.u32 2131351028, %v677
    %v684 = vor.u32 %v682, %v683
    %v685 = vshll.u32 2131351028, %v676
    %v686 = vshrl.u32 2102212464, %v677
    %v687 = vor.u32 %v685, %v686
    %v688 = vshll.u32 2102212464, %v676
    %v689 = vshrl.u32 920167782, %v677
    %v690 = vor.u32 %v688, %v689
    %v691 = vshll.u32 920167782, %v676
    %v692 = vshrl.u32 1326507024, %v677
    %v693 = vor.u32 %v691, %v692
    %vm694 = vcmp.lt.s32.totalorder %v675, 1
    %vm695 = vcmp.lt.s32.totalorder %v675, 2
    %vm696 = vcmp.lt.s32.totalorder %v675, 3
    %vm697 = vcmp.lt.s32.totalorder %v675, 4
    %v698 = vsel %vm694, %v678, %v681
    %v699 = vsel %vm697, %v687, 2102212464
    %v700 = vsel %vm696, %v684, %v699
    %v701 = vsel %vm695, %v698, %v700
    %v702 = vsel %vm694, %v681, %v684
    %v703 = vsel %vm697, %v690, 920167782
    %v704 = vsel %vm696, %v687, %v703
    %v705 = vsel %vm695, %v702, %v704
    %v706 = vsel %vm694, %v684, %v687
    %v707 = vsel %vm697, %v693, 1326507024
    %v708 = vsel %vm696, %v690, %v707
    %v709 = vsel %vm695, %v706, %v708
    %v710 = vshll.u32 %v670, 8
    %v711 = vand.u32 %v710, 65535
    %v712 = vshrl.u32 %v710, 16
    %v713 = vand.u32 %v709, 65535
    %v714 = vshrl.u32 %v709, 16
    %v715 = vmul.u32 %v711, %v713
    %v716 = vmul.u32 %v711, %v714
    %v717 = vmul.u32 %v712, %v713
    %v718 = vmul.u32 %v712, %v714
    %v719 = vshll.u32 %v716, 16
    %v720 = vshrl.u32 %v716, 16
    %v721 = vshll.u32 %v717, 16
    %v722 = vshrl.u32 %v717, 16
    %vm723 = vc.u32 %v715, %v719
    %v724 = vsel %vm723, 1, 0
    %v725 = vadd.s32 %v715, %v719
    %v726 = vadd.s32 %v718, %v724
    %vm727 = vc.u32 %v725, %v721
    %v728 = vsel %vm727, 1, 0
    %v729 = vadd.s32 %v725, %v721
    %v730 = vadd.s32 %v726, %v728
    %v731 = vadd.s32 %v730, %v720
    %v732 = vadd.s32 %v731, %v722
    %v733 = vand.u32 %v710, 65535
    %v734 = vshrl.u32 %v710, 16
    %v735 = vand.u32 %v705, 65535
    %v736 = vshrl.u32 %v705, 16
    %v737 = vmul.u32 %v733, %v735
    %v738 = vmul.u32 %v733, %v736
    %v739 = vmul.u32 %v734, %v735
    %v740 = vmul.u32 %v734, %v736
    %v741 = vshll.u32 %v738, 16
    %v742 = vshrl.u32 %v738, 16
    %v743 = vshll.u32 %v739, 16
    %v744 = vshrl.u32 %v739, 16
    %vm745 = vc.u32 %v737, %v741
    %v746 = vsel %vm745, 1, 0
    %v747 = vadd.s32 %v737, %v741
    %v748 = vadd.s32 %v740, %v746
    %vm749 = vc.u32 %v747, %v743
    %v750 = vsel %vm749, 1, 0
    %v751 = vadd.s32 %v747, %v743
    %v752 = vadd.s32 %v748, %v750
    %v753 = vadd.s32 %v752, %v742
    %v754 = vadd.s32 %v753, %v744
    %v755 = vmul.u32 %v710, %v701
    %v756 = vadd.s32 %v732, %v751
    %vm757 = vc.u32 %v732, %v751
    %v758 = vadd.s32 %v754, 1
    %v759 = vsel %vm757, %v758, %v754
    %v760 = vadd.s32 %v755, %v759
    %v761 = vadd.s32 %v760, 536870912
    %v762 = vshrl.u32 %v761, 30
    %v763 = vshll.u32 %v762, 30
    %v764 = vsub.s32 %v760, %v763
    %vm765 = vcmp.lt.s32.totalorder %v764, 0
    %v766 = vsub.s32 0, %v764
    %v767 = vsel %vm765, %v766, %v764
    %v768 = vclz %v767
    %v769 = vsub.s32 %v768, 2
    %vm770 = vcmp.gt.s32.totalorder 0, %v769
    %v771 = vsel %vm770, 0, %v769
    %v772 = vsub.s32 32, %v771
    %v773 = vshll.u32 %v764, %v771
    %v774 = vshrl.u32 %v756, %v772
    %v775 = vor.u32 %v773, %v774
    %v776 = vsub.s32 4294967266, %v771
    %v777 = vadd.s32 %v776, 127
    %v778 = vshll.u32 %v777, 23
    %v779 = vor.u32 4788187, %v778
    %v780 = vand.u32 2147483647, %v779
    %v782 = vcvt.s32.f32 %v775
    %v783 = vmul.f32 %v782, %v780
    %v784 = vxor.u32 %v783, 2147483648
    %v785 = vsel %vm664, %v784, %v783
    %v786 = vsub.s32 4, %v762
    %v787 = vsel %vm664, %v786, %v762
    %v788 = vsel %vm663, %v42, %v785
    %v789 = vsel %vm663, 0, %v787
    %v790 = vmul.f32 %v788, %v788
    %v791 = vmul.f32 %v790, -0.001358992
    %v792 = vadd.f32 %v791, 0.041655596
    %v793 = vmul.f32 %v790, %v792
    %v794 = vadd.f32 %v793, -0.4999988
    %v795 = vmul.f32 %v790, %v794
    %v796 = vadd.f32 1.0, %v795
    %v797 = vmul.f32 %v788, %v788
    %v798 = vmul.f32 %v797, -0.00019511016
    %v799 = vadd.f32 %v798, 0.008332121
    %v800 = vmul.f32 %v797, %v799
    %v801 = vadd.f32 %v800, -0.16666654
    %v802 = vmul.f32 %v797, %v801
    %v803 = vadd.f32 %v802, 1.0
    %v804 = vmul.f32 %v803, %v788
    %vm805 = vweird.f32 %v42
    %v806 = vand.u32 %v789, 3
    %vm807 = vcmp.lt.s32.totalorder %v806, 2
    %vm808 = vcmp.eq.s32.totalorder %v806, 0
    %v809 = vxor.u32 %v804, 2147483648
    %v810 = vsel %vm808, %v796, %v809
    %vm811 = vcmp.eq.s32.totalorder %v806, 2
    %v812 = vxor.u32 %v796, 2147483648
    %v813 = vsel %vm811, %v812, %v804
    %v814 = vsel %vm807, %v810, %v813
    %v815 = vsel %vm805, nan, %v814
    %v816 = vand.u32 2147483647, %v43
    %vm817 = vcmp.le.f32.partialorder %v816, 0.7853982
    %vm818 = vcmp.lt.s32.totalorder %v43, 0
    %v819 = vand.u32 %v43, 2139095040
    %v820 = vshrl.u32 %v819, 23
    %v821 = vsub.s32 %v820, 127
    %v822 = vand.u32 2147483647, %v43
    %v823 = vand.u32 %v822, 8388607
    %v824 = vor.u32 %v823, 8388608
    %v825 = vsub.s32 0, %v824
    %v826 = vadd.s32 %v821, 1
    %vm827 = vcmp.gt.s32.totalorder %v826, 0
    %v828 = vsel %vm827, %v826, 0
    %v829 = vshrl.u32 %v828, 5
    %v830 = vand.u32 %v828, 31
    %v831 = vsub.s32 32, %v830
    %v832 = vshrl.u32 683565275, %v831
    %v833 = vshll.u32 683565275, %v830
    %v834 = vshrl.u32 2475754826, %v831
    %v835 = vor.u32 %v833, %v834
    %v836 = vshll.u32 2475754826, %v830
    %v837 = vshrl.u32 2131351028, %v831
    %v838 = vor.u32 %v836, %v837
    %v839 = vshll.u32 2131351028, %v830
    %v840 = vshrl.u32 2102212464, %v831
    %v841 = vor.u32 %v839, %v840
    %v842 = vshll.u32 2102212464, %v830
    %v843 = vshrl.u32 920167782, %v831
    %v844 = vor.u32 %v842, %v843
    %v845 = vshll.u32 920167782, %v830
    %v846 = vshrl.u32 1326507024, %v831
    %v847 = vor.u32 %v845, %v846
    %vm848 = vcmp.lt.s32.totalorder %v829, 1
    %vm849 = vcmp.lt.s32.totalorder %v829, 2
    %vm850 = vcmp.lt.s32.totalorder %v829, 3
    %vm851 = vcmp.lt.s32.totalorder %v829, 4
    %v852 = vsel %vm848, %v832, %v835
    %v853 = vsel %vm851, %v841, 2102212464
    %v854 = vsel %vm850, %v838, %v853
    %v855 = vsel %vm849, %v852, %v854
    %v856 = vsel %vm848, %v835, %v838
    %v857 = vsel %vm851, %v844, 920167782
    %v858 = vsel %vm850, %v841, %v857
    %v859 = vsel %vm849, %v856, %v858
    %v860 = vsel %vm848, %v838, %v841
    %v861 = vsel %vm851, %v847, 1326507024
    %v862 = vsel %vm850, %v844, %v861
    %v863 = vsel %vm849, %v860, %v862
    %v864 = vshll.u32 %v824, 8
    %v865 = vand.u32 %v864, 65535
    %v866 = vshrl.u32 %v864, 16
    %v867 = vand.u32 %v863, 65535
    %v868 = vshrl.u32 %v863, 16
    %v869 = vmul.u32 %v865, %v867
    %v870 = vmul.u32 %v865, %v868
    %v871 = vmul.u32 %v866, %v867
    %v872 = vmul.u32 %v866, %v868
    %v873 = vshll.u32 %v870, 16
    %v874 = vshrl.u32 %v870, 16
    %v875 = vshll.u32 %v871, 16
    %v876 = vshrl.u32 %v871, 16
    %vm877 = vc.u32 %v869, %v873
    %v878 = vsel %vm877, 1, 0
    %v879 = vadd.s32 %v869, %v873
    %v880 = vadd.s32 %v872, %v878
    %vm881 = vc.u32 %v879, %v875
    %v882 = vsel %vm881, 1, 0
    %v883 = vadd.s32 %v879, %v875
    %v884 = vadd.s32 %v880, %v882
    %v885 = vadd.s32 %v884, %v874
    %v886 = vadd.s32 %v885, %v876
    %v887 = vand.u32 %v864, 65535
    %v888 = vshrl.u32 %v864, 16
    %v889 = vand.u32 %v859, 65535
    %v890 = vshrl.u32 %v859, 16
    %v891 = vmul.u32 %v887, %v889
    %v892 = vmul.u32 %v887, %v890
    %v893 = vmul.u32 %v888, %v889
    %v894 = vmul.u32 %v888, %v890
    %v895 = vshll.u32 %v892, 16
    %v896 = vshrl.u32 %v892, 16
    %v897 = vshll.u32 %v893, 16
    %v898 = vshrl.u32 %v893, 16
    %vm899 = vc.u32 %v891, %v895
    %v900 = vsel %vm899, 1, 0
    %v901 = vadd.s32 %v891, %v895
    %v902 = vadd.s32 %v894, %v900
    %vm903 = vc.u32 %v901, %v897
    %v904 = vsel %vm903, 1, 0
    %v905 = vadd.s32 %v901, %v897
    %v906 = vadd.s32 %v902, %v904
    %v907 = vadd.s32 %v906, %v896
    %v908 = vadd.s32 %v907, %v898
    %v909 = vmul.u32 %v864, %v855
    %v910 = vadd.s32 %v886, %v905
    %vm911 = vc.u32 %v886, %v905
    %v912 = vadd.s32 %v908, 1
    %v913 = vsel %vm911, %v912, %v908
    %v914 = vadd.s32 %v909, %v913
    %v915 = vadd.s32 %v914, 536870912
    %v916 = vshrl.u32 %v915, 30
    %v917 = vshll.u32 %v916, 30
    %v918 = vsub.s32 %v914, %v917
    %vm919 = vcmp.lt.s32.totalorder %v918, 0
    %v920 = vsub.s32 0, %v918
    %v921 = vsel %vm919, %v920, %v918
    %v922 = vclz %v921
    %v923 = vsub.s32 %v922, 2
    %vm924 = vcmp.gt.s32.totalorder 0, %v923
    %v925 = vsel %vm924, 0, %v923
    %v926 = vsub.s32 32, %v925
    %v927 = vshll.u32 %v918, %v925
    %v928 = vshrl.u32 %v910, %v926
    %v929 = vor.u32 %v927, %v928
    %v930 = vsub.s32 4294967266, %v925
    %v931 = vadd.s32 %v930, 127
    %v932 = vshll.u32 %v931, 23
    %v933 = vor.u32 4788187, %v932
    %v934 = vand.u32 2147483647, %v933
    %v936 = vcvt.s32.f32 %v929
    %v937 = vmul.f32 %v936, %v934
    %v938 = vxor.u32 %v937, 2147483648
    %v939 = vsel %vm818, %v938, %v937
    %v940 = vsub.s32 4, %v916
    %v941 = vsel %vm818, %v940, %v916
    %v942 = vsel %vm817, %v43, %v939
    %v943 = vsel %vm817, 0, %v941
    %v944 = vmul.f32 %v942, %v942
    %v945 = vmul.f32 %v944, -0.001358992
    %v946 = vadd.f32 %v945, 0.041655596
    %v947 = vmul.f32 %v944, %v946
    %v948 = vadd.f32 %v947, -0.4999988
    %v949 = vmul.f32 %v944, %v948
    %v950 = vadd.f32 1.0, %v949
    %v951 = vmul.f32 %v942, %v942
    %v952 = vmul.f32 %v951, -0.00019511016
    %v953 = vadd.f32 %v952, 0.008332121
    %v954 = vmul.f32 %v951, %v953
    %v955 = vadd.f32 %v954, -0.16666654
    %v956 = vmul.f32 %v951, %v955
    %v957 = vadd.f32 %v956, 1.0
    %v958 = vmul.f32 %v957, %v942
    %vm959 = vweird.f32 %v43
    %v960 = vand.u32 %v943, 3
    %vm961 = vcmp.lt.s32.totalorder %v960, 2
    %vm962 = vcmp.eq.s32.totalorder %v960, 0
    %v963 = vxor.u32 %v958, 2147483648
    %v964 = vsel %vm962, %v950, %v963
    %vm965 = vcmp.eq.s32.totalorder %v960, 2
    %v966 = vxor.u32 %v950, 2147483648
    %v967 = vsel %vm965, %v966, %v958
    %v968 = vsel %vm961, %v964, %v967
    %v969 = vsel %vm959, nan, %v968
    %v970 = vand.u32 2147483647, %v44
    %vm971 = vcmp.le.f32.partialorder %v970, 0.7853982
    %vm972 = vcmp.lt.s32.totalorder %v44, 0
    %v973 = vand.u32 %v44, 2139095040
    %v974 = vshrl.u32 %v973, 23
    %v975 = vsub.s32 %v974, 127
    %v976 = vand.u32 2147483647, %v44
    %v977 = vand.u32 %v976, 8388607
    %v978 = vor.u32 %v977, 8388608
    %v979 = vsub.s32 0, %v978
    %v980 = vadd.s32 %v975, 1
    %vm981 = vcmp.gt.s32.totalorder %v980, 0
    %v982 = vsel %vm981, %v980, 0
    %v983 = vshrl.u32 %v982, 5
    %v984 = vand.u32 %v982, 31
    %v985 = vsub.s32 32, %v984
    %v986 = vshrl.u32 683565275, %v985
    %v987 = vshll.u32 683565275, %v984
    %v988 = vshrl.u32 2475754826, %v985
    %v989 = vor.u32 %v987, %v988
    %v990 = vshll.u32 2475754826, %v984
    %v991 = vshrl.u32 2131351028, %v985
    %v992 = vor.u32 %v990, %v991
    %v993 = vshll.u32 2131351028, %v984
    %v994 = vshrl.u32 2102212464, %v985
    %v995 = vor.u32 %v993, %v994
    %v996 = vshll.u32 2102212464, %v984
    %v997 = vshrl.u32 920167782, %v985
    %v998 = vor.u32 %v996, %v997
    %v999 = vshll.u32 920167782, %v984
    %v1000 = vshrl.u32 1326507024, %v985
    %v1001 = vor.u32 %v999, %v1000
    %vm1002 = vcmp.lt.s32.totalorder %v983, 1
    %vm1003 = vcmp.lt.s32.totalorder %v983, 2
    %vm1004 = vcmp.lt.s32.totalorder %v983, 3
    %vm1005 = vcmp.lt.s32.totalorder %v983, 4
    %v1006 = vsel %vm1002, %v986, %v989
    %v1007 = vsel %vm1005, %v995, 2102212464
    %v1008 = vsel %vm1004, %v992, %v1007
    %v1009 = vsel %vm1003, %v1006, %v1008
    %v1010 = vsel %vm1002, %v989, %v992
    %v1011 = vsel %vm1005, %v998, 920167782
    %v1012 = vsel %vm1004, %v995, %v1011
    %v1013 = vsel %vm1003, %v1010, %v1012
    %v1014 = vsel %vm1002, %v992, %v995
    %v1015 = vsel %vm1005, %v1001, 1326507024
    %v1016 = vsel %vm1004, %v998, %v1015
    %v1017 = vsel %vm1003, %v1014, %v1016
    %v1018 = vshll.u32 %v978, 8
    %v1019 = vand.u32 %v1018, 65535
    %v1020 = vshrl.u32 %v1018, 16
    %v1021 = vand.u32 %v1017, 65535
    %v1022 = vshrl.u32 %v1017, 16
    %v1023 = vmul.u32 %v1019, %v1021
    %v1024 = vmul.u32 %v1019, %v1022
    %v1025 = vmul.u32 %v1020, %v1021
    %v1026 = vmul.u32 %v1020, %v1022
    %v1027 = vshll.u32 %v1024, 16
    %v1028 = vshrl.u32 %v1024, 16
    %v1029 = vshll.u32 %v1025, 16
    %v1030 = vshrl.u32 %v1025, 16
    %vm1031 = vc.u32 %v1023, %v1027
    %v1032 = vsel %vm1031, 1, 0
    %v1033 = vadd.s32 %v1023, %v1027
    %v1034 = vadd.s32 %v1026, %v1032
    %vm1035 = vc.u32 %v1033, %v1029
    %v1036 = vsel %vm1035, 1, 0
    %v1037 = vadd.s32 %v1033, %v1029
    %v1038 = vadd.s32 %v1034, %v1036
    %v1039 = vadd.s32 %v1038, %v1028
    %v1040 = vadd.s32 %v1039, %v1030
    %v1041 = vand.u32 %v1018, 65535
    %v1042 = vshrl.u32 %v1018, 16
    %v1043 = vand.u32 %v1013, 65535
    %v1044 = vshrl.u32 %v1013, 16
    %v1045 = vmul.u32 %v1041, %v1043
    %v1046 = vmul.u32 %v1041, %v1044
    %v1047 = vmul.u32 %v1042, %v1043
    %v1048 = vmul.u32 %v1042, %v1044
    %v1049 = vshll.u32 %v1046, 16
    %v1050 = vshrl.u32 %v1046, 16
    %v1051 = vshll.u32 %v1047, 16
    %v1052 = vshrl.u32 %v1047, 16
    %vm1053 = vc.u32 %v1045, %v1049
    %v1054 = vsel %vm1053, 1, 0
    %v1055 = vadd.s32 %v1045, %v1049
    %v1056 = vadd.s32 %v1048, %v1054
    %vm1057 = vc.u32 %v1055, %v1051
    %v1058 = vsel %vm1057, 1, 0
    %v1059 = vadd.s32 %v1055, %v1051
    %v1060 = vadd.s32 %v1056, %v1058
    %v1061 = vadd.s32 %v1060, %v1050
    %v1062 = vadd.s32 %v1061, %v1052
    %v1063 = vmul.u32 %v1018, %v1009
    %v1064 = vadd.s32 %v1040, %v1059
    %vm1065 = vc.u32 %v1040, %v1059
    %v1066 = vadd.s32 %v1062, 1
    %v1067 = vsel %vm1065, %v1066, %v1062
    %v1068 = vadd.s32 %v1063, %v1067
    %v1069 = vadd.s32 %v1068, 536870912
    %v1070 = vshrl.u32 %v1069, 30
    %v1071 = vshll.u32 %v1070, 30
    %v1072 = vsub.s32 %v1068, %v1071
    %vm1073 = vcmp.lt.s32.totalorder %v1072, 0
    %v1074 = vsub.s32 0, %v1072
    %v1075 = vsel %vm1073, %v1074, %v1072
    %v1076 = vclz %v1075
    %v1077 = vsub.s32 %v1076, 2
    %vm1078 = vcmp.gt.s32.totalorder 0, %v1077
    %v1079 = vsel %vm1078, 0, %v1077
    %v1080 = vsub.s32 32, %v1079
    %v1081 = vshll.u32 %v1072, %v1079
    %v1082 = vshrl.u32 %v1064, %v1080
    %v1083 = vor.u32 %v1081, %v1082
    %v1084 = vsub.s32 4294967266, %v1079
    %v1085 = vadd.s32 %v1084, 127
    %v1086 = vshll.u32 %v1085, 23
    %v1087 = vor.u32 4788187, %v1086
    %v1088 = vand.u32 2147483647, %v1087
    %v1090 = vcvt.s32.f32 %v1083
    %v1091 = vmul.f32 %v1090, %v1088
    %v1092 = vxor.u32 %v1091, 2147483648
    %v1093 = vsel %vm972, %v1092, %v1091
    %v1094 = vsub.s32 4, %v1070
    %v1095 = vsel %vm972, %v1094, %v1070
    %v1096 = vsel %vm971, %v44, %v1093
    %v1097 = vsel %vm971, 0, %v1095
    %v1098 = vmul.f32 %v1096, %v1096
    %v1099 = vmul.f32 %v1098, -0.001358992
    %v1100 = vadd.f32 %v1099, 0.041655596
    %v1101 = vmul.f32 %v1098, %v1100
    %v1102 = vadd.f32 %v1101, -0.4999988
    %v1103 = vmul.f32 %v1098, %v1102
    %v1104 = vadd.f32 1.0, %v1103
    %v1105 = vmul.f32 %v1096, %v1096
    %v1106 = vmul.f32 %v1105, -0.00019511016
    %v1107 = vadd.f32 %v1106, 0.008332121
    %v1108 = vmul.f32 %v1105, %v1107
    %v1109 = vadd.f32 %v1108, -0.16666654
    %v1110 = vmul.f32 %v1105, %v1109
    %v1111 = vadd.f32 %v1110, 1.0
    %v1112 = vmul.f32 %v1111, %v1096
    %vm1113 = vweird.f32 %v44
    %v1114 = vand.u32 %v1097, 3
    %vm1115 = vcmp.lt.s32.totalorder %v1114, 2
    %vm1116 = vcmp.eq.s32.totalorder %v1114, 0
    %v1117 = vxor.u32 %v1112, 2147483648
    %v1118 = vsel %vm1116, %v1104, %v1117
    %vm1119 = vcmp.eq.s32.totalorder %v1114, 2
    %v1120 = vxor.u32 %v1104, 2147483648
    %v1121 = vsel %vm1119, %v1120, %v1112
    %v1122 = vsel %vm1115, %v1118, %v1121
    %v1123 = vsel %vm1113, nan, %v1122
    %v1124 = vand.u32 2147483647, %v45
    %vm1125 = vcmp.le.f32.partialorder %v1124, 0.7853982
    %vm1126 = vcmp.lt.s32.totalorder %v45, 0
    %v1127 = vand.u32 %v45, 2139095040
    %v1128 = vshrl.u32 %v1127, 23
    %v1129 = vsub.s32 %v1128, 127
    %v1130 = vand.u32 2147483647, %v45
    %v1131 = vand.u32 %v1130, 8388607
    %v1132 = vor.u32 %v1131, 8388608
    %v1133 = vsub.s32 0, %v1132
    %v1134 = vadd.s32 %v1129, 1
    %vm1135 = vcmp.gt.s32.totalorder %v1134, 0
    %v1136 = vsel %vm1135, %v1134, 0
    %v1137 = vshrl.u32 %v1136, 5
    %v1138 = vand.u32 %v1136, 31
    %v1139 = vsub.s32 32, %v1138
    %v1140 = vshrl.u32 683565275, %v1139
    %v1141 = vshll.u32 683565275, %v1138
    %v1142 = vshrl.u32 2475754826, %v1139
    %v1143 = vor.u32 %v1141, %v1142
    %v1144 = vshll.u32 2475754826, %v1138
    %v1145 = vshrl.u32 2131351028, %v1139
    %v1146 = vor.u32 %v1144, %v1145
    %v1147 = vshll.u32 2131351028, %v1138
    %v1148 = vshrl.u32 2102212464, %v1139
    %v1149 = vor.u32 %v1147, %v1148
    %v1150 = vshll.u32 2102212464, %v1138
    %v1151 = vshrl.u32 920167782, %v1139
    %v1152 = vor.u32 %v1150, %v1151
    %v1153 = vshll.u32 920167782, %v1138
    %v1154 = vshrl.u32 1326507024, %v1139
    %v1155 = vor.u32 %v1153, %v1154
    %vm1156 = vcmp.lt.s32.totalorder %v1137, 1
    %vm1157 = vcmp.lt.s32.totalorder %v1137, 2
    %vm1158 = vcmp.lt.s32.totalorder %v1137, 3
    %vm1159 = vcmp.lt.s32.totalorder %v1137, 4
    %v1160 = vsel %vm1156, %v1140, %v1143
    %v1161 = vsel %vm1159, %v1149, 2102212464
    %v1162 = vsel %vm1158, %v1146, %v1161
    %v1163 = vsel %vm1157, %v1160, %v1162
    %v1164 = vsel %vm1156, %v1143, %v1146
    %v1165 = vsel %vm1159, %v1152, 920167782
    %v1166 = vsel %vm1158, %v1149, %v1165
    %v1167 = vsel %vm1157, %v1164, %v1166
    %v1168 = vsel %vm1156, %v1146, %v1149
    %v1169 = vsel %vm1159, %v1155, 1326507024
    %v1170 = vsel %vm1158, %v1152, %v1169
    %v1171 = vsel %vm1157, %v1168, %v1170
    %v1172 = vshll.u32 %v1132, 8
    %v1173 = vand.u32 %v1172, 65535
    %v1174 = vshrl.u32 %v1172, 16
    %v1175 = vand.u32 %v1171, 65535
    %v1176 = vshrl.u32 %v1171, 16
    %v1177 = vmul.u32 %v1173, %v1175
    %v1178 = vmul.u32 %v1173, %v1176
    %v1179 = vmul.u32 %v1174, %v1175
    %v1180 = vmul.u32 %v1174, %v1176
    %v1181 = vshll.u32 %v1178, 16
    %v1182 = vshrl.u32 %v1178, 16
    %v1183 = vshll.u32 %v1179, 16
    %v1184 = vshrl.u32 %v1179, 16
    %vm1185 = vc.u32 %v1177, %v1181
    %v1186 = vsel %vm1185, 1, 0
    %v1187 = vadd.s32 %v1177, %v1181
    %v1188 = vadd.s32 %v1180, %v1186
    %vm1189 = vc.u32 %v1187, %v1183
    %v1190 = vsel %vm1189, 1, 0
    %v1191 = vadd.s32 %v1187, %v1183
    %v1192 = vadd.s32 %v1188, %v1190
    %v1193 = vadd.s32 %v1192, %v1182
    %v1194 = vadd.s32 %v1193, %v1184
    %v1195 = vand.u32 %v1172, 65535
    %v1196 = vshrl.u32 %v1172, 16
    %v1197 = vand.u32 %v1167, 65535
    %v1198 = vshrl.u32 %v1167, 16
    %v1199 = vmul.u32 %v1195, %v1197
    %v1200 = vmul.u32 %v1195, %v1198
    %v1201 = vmul.u32 %v1196, %v1197
    %v1202 = vmul.u32 %v1196, %v1198
    %v1203 = vshll.u32 %v1200, 16
    %v1204 = vshrl.u32 %v1200, 16
    %v1205 = vshll.u32 %v1201, 16
    %v1206 = vshrl.u32 %v1201, 16
    %vm1207 = vc.u32 %v1199, %v1203
    %v1208 = vsel %vm1207, 1, 0
    %v1209 = vadd.s32 %v1199, %v1203
    %v1210 = vadd.s32 %v1202, %v1208
    %vm1211 = vc.u32 %v1209, %v1205
    %v1212 = vsel %vm1211, 1, 0
    %v1213 = vadd.s32 %v1209, %v1205
    %v1214 = vadd.s32 %v1210, %v1212
    %v1215 = vadd.s32 %v1214, %v1204
    %v1216 = vadd.s32 %v1215, %v1206
    %v1217 = vmul.u32 %v1172, %v1163
    %v1218 = vadd.s32 %v1194, %v1213
    %vm1219 = vc.u32 %v1194, %v1213
    %v1220 = vadd.s32 %v1216, 1
    %v1221 = vsel %vm1219, %v1220, %v1216
    %v1222 = vadd.s32 %v1217, %v1221
    %v1223 = vadd.s32 %v1222, 536870912
    %v1224 = vshrl.u32 %v1223, 30
    %v1225 = vshll.u32 %v1224, 30
    %v1226 = vsub.s32 %v1222, %v1225
    %vm1227 = vcmp.lt.s32.totalorder %v1226, 0
    %v1228 = vsub.s32 0, %v1226
    %v1229 = vsel %vm1227, %v1228, %v1226
    %v1230 = vclz %v1229
    %v1231 = vsub.s32 %v1230, 2
    %vm1232 = vcmp.gt.s32.totalorder 0, %v1231
    %v1233 = vsel %vm1232, 0, %v1231
    %v1234 = vsub.s32 32, %v1233
    %v1235 = vshll.u32 %v1226, %v1233
    %v1236 = vshrl.u32 %v1218, %v1234
    %v1237 = vor.u32 %v1235, %v1236
    %v1238 = vsub.s32 4294967266, %v1233
    %v1239 = vadd.s32 %v1238, 127
    %v1240 = vshll.u32 %v1239, 23
    %v1241 = vor.u32 4788187, %v1240
    %v1242 = vand.u32 2147483647, %v1241
    %v1244 = vcvt.s32.f32 %v1237
    %v1245 = vmul.f32 %v1244, %v1242
    %v1246 = vxor.u32 %v1245, 2147483648
    %v1247 = vsel %vm1126, %v1246, %v1245
    %v1248 = vsub.s32 4, %v1224
    %v1249 = vsel %vm1126, %v1248, %v1224
    %v1250 = vsel %vm1125, %v45, %v1247
    %v1251 = vsel %vm1125, 0, %v1249
    %v1252 = vmul.f32 %v1250, %v1250
    %v1253 = vmul.f32 %v1252, -0.001358992
    %v1254 = vadd.f32 %v1253, 0.041655596
    %v1255 = vmul.f32 %v1252, %v1254
    %v1256 = vadd.f32 %v1255, -0.4999988
    %v1257 = vmul.f32 %v1252, %v1256
    %v1258 = vadd.f32 1.0, %v1257
    %v1259 = vmul.f32 %v1250, %v1250
    %v1260 = vmul.f32 %v1259, -0.00019511016
    %v1261 = vadd.f32 %v1260, 0.008332121
    %v1262 = vmul.f32 %v1259, %v1261
    %v1263 = vadd.f32 %v1262, -0.16666654
    %v1264 = vmul.f32 %v1259, %v1263
    %v1265 = vadd.f32 %v1264, 1.0
    %v1266 = vmul.f32 %v1265, %v1250
    %vm1267 = vweird.f32 %v45
    %v1268 = vand.u32 %v1251, 3
    %vm1269 = vcmp.lt.s32.totalorder %v1268, 2
    %vm1270 = vcmp.eq.s32.totalorder %v1268, 0
    %v1271 = vxor.u32 %v1266, 2147483648
    %v1272 = vsel %vm1270, %v1258, %v1271
    %vm1273 = vcmp.eq.s32.totalorder %v1268, 2
    %v1274 = vxor.u32 %v1258, 2147483648
    %v1275 = vsel %vm1273, %v1274, %v1266
    %v1276 = vsel %vm1269, %v1272, %v1275
    %v1277 = vsel %vm1267, nan, %v1276
    %v1278 = vld [vmem:[%s2] sm:$0xff]
    %v1279 = vld [vmem:[%s2 + $0x8] sm:$0xff]
    %v1280 = vld [vmem:[%s2 + $0x10] sm:$0xff]
    %v1281 = vld [vmem:[%s2 + $0x18] sm:$0xff]
    %v1282 = vld [vmem:[%s2 + $0x20] sm:$0xff]
    %v1283 = vld [vmem:[%s2 + $0x28] sm:$0xff]
    %v1284 = vld [vmem:[%s2 + $0x30] sm:$0xff]
    %v1285 = vld [vmem:[%s2 + $0x38] sm:$0xff]
    %v1286 = vld [vmem:[%s2 + $0x40] sm:$0xff]
    %v1287 = vld [vmem:[%s2 + $0x48] sm:$0xff]
    %v1288 = vld [vmem:[%s2 + $0x50] sm:$0xff]
    %v1289 = vld [vmem:[%s2 + $0x58] sm:$0xff]
    %v1290 = vld [vmem:[%s2 + $0x60] sm:$0xff]
    %v1291 = vld [vmem:[%s2 + $0x68] sm:$0xff]
    %v1292 = vld [vmem:[%s2 + $0x70] sm:$0xff]
    %v1293 = vld [vmem:[%s2 + $0x78] sm:$0xff]
    %v1294 = vld [vmem:[%s2 + $0x80] sm:$0xff]
    %v1295 = vld [vmem:[%s2 + $0x88] sm:$0xff]
    %v1296 = vld [vmem:[%s2 + $0x90] sm:$0xff]
    %v1297 = vld [vmem:[%s2 + $0x98] sm:$0xff]
    %v1298 = vld [vmem:[%s2 + $0xa0] sm:$0xff]
    %v1299 = vld [vmem:[%s2 + $0xa8] sm:$0xff]
    %v1300 = vld [vmem:[%s2 + $0xb0] sm:$0xff]
    %v1301 = vld [vmem:[%s2 + $0xb8] sm:$0xff]
    %v1302 = vld [vmem:[%s2 + $0xc0] sm:$0xff]
    %v1303 = vld [vmem:[%s2 + $0xc8] sm:$0xff]
    %v1304 = vld [vmem:[%s2 + $0xd0] sm:$0xff]
    %v1305 = vld [vmem:[%s2 + $0xd8] sm:$0xff]
    %v1306 = vld [vmem:[%s2 + $0xe0] sm:$0xff]
    %v1307 = vld [vmem:[%s2 + $0xe8] sm:$0xff]
    %v1308 = vld [vmem:[%s2 + $0xf0] sm:$0xff]
    %v1309 = vld [vmem:[%s2 + $0xf8] sm:$0xff]
    %v1310 = vld [vmem:[%s3] sm:$0xff]
    %v1311 = vld [vmem:[%s3 + $0x8] sm:$0xff]
    %v1312 = vld [vmem:[%s3 + $0x10] sm:$0xff]
    %v1313 = vld [vmem:[%s3 + $0x18] sm:$0xff]
    %v1314 = vld [vmem:[%s3 + $0x20] sm:$0xff]
    %v1315 = vld [vmem:[%s3 + $0x28] sm:$0xff]
    %v1316 = vld [vmem:[%s3 + $0x30] sm:$0xff]
    %v1317 = vld [vmem:[%s3 + $0x38] sm:$0xff]
    %v1318 = vld [vmem:[%s3 + $0x40] sm:$0xff]
    %v1319 = vld [vmem:[%s3 + $0x48] sm:$0xff]
    %v1320 = vld [vmem:[%s3 + $0x50] sm:$0xff]
    %v1321 = vld [vmem:[%s3 + $0x58] sm:$0xff]
    %v1322 = vld [vmem:[%s3 + $0x60] sm:$0xff]
    %v1323 = vld [vmem:[%s3 + $0x68] sm:$0xff]
    %v1324 = vld [vmem:[%s3 + $0x70] sm:$0xff]
    %v1325 = vld [vmem:[%s3 + $0x78] sm:$0xff]
    %v1326 = vld [vmem:[%s3 + $0x80] sm:$0xff]
    %v1327 = vld [vmem:[%s3 + $0x88] sm:$0xff]
    %v1328 = vld [vmem:[%s3 + $0x90] sm:$0xff]
    %v1329 = vld [vmem:[%s3 + $0x98] sm:$0xff]
    %v1330 = vld [vmem:[%s3 + $0xa0] sm:$0xff]
    %v1331 = vld [vmem:[%s3 + $0xa8] sm:$0xff]
    %v1332 = vld [vmem:[%s3 + $0xb0] sm:$0xff]
    %v1333 = vld [vmem:[%s3 + $0xb8] sm:$0xff]
    %v1334 = vld [vmem:[%s3 + $0xc0] sm:$0xff]
    %v1335 = vld [vmem:[%s3 + $0xc8] sm:$0xff]
    %v1336 = vld [vmem:[%s3 + $0xd0] sm:$0xff]
    %v1337 = vld [vmem:[%s3 + $0xd8] sm:$0xff]
    %v1338 = vld [vmem:[%s3 + $0xe0] sm:$0xff]
    %v1339 = vld [vmem:[%s3 + $0xe8] sm:$0xff]
    %v1340 = vld [vmem:[%s3 + $0xf0] sm:$0xff]
    %v1341 = vld [vmem:[%s3 + $0xf8] sm:$0xff]
    %1343 = vset.pattern.permute.xlu0 0
    %1344 = vperm.xlu0 %1343, %v1310
    %v1345 = vpop.permute.xlu0 %1344
    %1348 = vset.pattern.permute.xlu0 0
    %1349 = vperm.xlu0 %1348, %v1311
    %v1350 = vpop.permute.xlu0 %1349
    %1353 = vset.pattern.permute.xlu0 0
    %1354 = vperm.xlu0 %1353, %v1312
    %v1355 = vpop.permute.xlu0 %1354
    %1358 = vset.pattern.permute.xlu0 0
    %1359 = vperm.xlu0 %1358, %v1313
    %v1360 = vpop.permute.xlu0 %1359
    %1363 = vset.pattern.permute.xlu0 0
    %1364 = vperm.xlu0 %1363, %v1314
    %v1365 = vpop.permute.xlu0 %1364
    %1368 = vset.pattern.permute.xlu0 0
    %1369 = vperm.xlu0 %1368, %v1315
    %v1370 = vpop.permute.xlu0 %1369
    %1373 = vset.pattern.permute.xlu0 0
    %1374 = vperm.xlu0 %1373, %v1316
    %v1375 = vpop.permute.xlu0 %1374
    %1378 = vset.pattern.permute.xlu0 0
    %1379 = vperm.xlu0 %1378, %v1317
    %v1380 = vpop.permute.xlu0 %1379
    %1383 = vset.pattern.permute.xlu0 0
    %1384 = vperm.xlu0 %1383, %v1318
    %v1385 = vpop.permute.xlu0 %1384
    %1388 = vset.pattern.permute.xlu0 0
    %1389 = vperm.xlu0 %1388, %v1319
    %v1390 = vpop.permute.xlu0 %1389
    %1393 = vset.pattern.permute.xlu0 0
    %1394 = vperm.xlu0 %1393, %v1320
    %v1395 = vpop.permute.xlu0 %1394
    %1398 = vset.pattern.permute.xlu0 0
    %1399 = vperm.xlu0 %1398, %v1321
    %v1400 = vpop.permute.xlu0 %1399
    %1403 = vset.pattern.permute.xlu0 0
    %1404 = vperm.xlu0 %1403, %v1322
    %v1405 = vpop.permute.xlu0 %1404
    %1408 = vset.pattern.permute.xlu0 0
    %1409 = vperm.xlu0 %1408, %v1323
    %v1410 = vpop.permute.xlu0 %1409
    %1413 = vset.pattern.permute.xlu0 0
    %1414 = vperm.xlu0 %1413, %v1324
    %v1415 = vpop.permute.xlu0 %1414
    %1418 = vset.pattern.permute.xlu0 0
    %1419 = vperm.xlu0 %1418, %v1325
    %v1420 = vpop.permute.xlu0 %1419
    %1423 = vset.pattern.permute.xlu0 0
    %1424 = vperm.xlu0 %1423, %v1326
    %v1425 = vpop.permute.xlu0 %1424
    %1428 = vset.pattern.permute.xlu0 0
    %1429 = vperm.xlu0 %1428, %v1327
    %v1430 = vpop.permute.xlu0 %1429
    %1433 = vset.pattern.permute.xlu0 0
    %1434 = vperm.xlu0 %1433, %v1328
    %v1435 = vpop.permute.xlu0 %1434
    %1438 = vset.pattern.permute.xlu0 0
    %1439 = vperm.xlu0 %1438, %v1329
    %v1440 = vpop.permute.xlu0 %1439
    %1443 = vset.pattern.permute.xlu0 0
    %1444 = vperm.xlu0 %1443, %v1330
    %v1445 = vpop.permute.xlu0 %1444
    %1448 = vset.pattern.permute.xlu0 0
    %1449 = vperm.xlu0 %1448, %v1331
    %v1450 = vpop.permute.xlu0 %1449
    %1453 = vset.pattern.permute.xlu0 0
    %1454 = vperm.xlu0 %1453, %v1332
    %v1455 = vpop.permute.xlu0 %1454
    %1458 = vset.pattern.permute.xlu0 0
    %1459 = vperm.xlu0 %1458, %v1333
    %v1460 = vpop.permute.xlu0 %1459
    %1463 = vset.pattern.permute.xlu0 0
    %1464 = vperm.xlu0 %1463, %v1334
    %v1465 = vpop.permute.xlu0 %1464
    %1468 = vset.pattern.permute.xlu0 0
    %1469 = vperm.xlu0 %1468, %v1335
    %v1470 = vpop.permute.xlu0 %1469
    %1473 = vset.pattern.permute.xlu0 0
    %1474 = vperm.xlu0 %1473, %v1336
    %v1475 = vpop.permute.xlu0 %1474
    %1478 = vset.pattern.permute.xlu0 0
    %1479 = vperm.xlu0 %1478, %v1337
    %v1480 = vpop.permute.xlu0 %1479
    %1483 = vset.pattern.permute.xlu0 0
    %1484 = vperm.xlu0 %1483, %v1338
    %v1485 = vpop.permute.xlu0 %1484
    %1488 = vset.pattern.permute.xlu0 0
    %1489 = vperm.xlu0 %1488, %v1339
    %v1490 = vpop.permute.xlu0 %1489
    %1493 = vset.pattern.permute.xlu0 0
    %1494 = vperm.xlu0 %1493, %v1340
    %v1495 = vpop.permute.xlu0 %1494
    %1498 = vset.pattern.permute.xlu0 0
    %1499 = vperm.xlu0 %1498, %v1341
    %v1500 = vpop.permute.xlu0 %1499
    %vm1502 = vcmask 64512
    %v1504 = vsel %vm1502, %v1278, 0
    %v1507 = vsel %vm1502, %v1279, 0
    %v1510 = vsel %vm1502, %v1280, 0
    %v1513 = vsel %vm1502, %v1281, 0
    %v1516 = vsel %vm1502, %v1282, 0
    %v1519 = vsel %vm1502, %v1283, 0
    %v1522 = vsel %vm1502, %v1284, 0
    %v1525 = vsel %vm1502, %v1285, 0
    %v1528 = vsel %vm1502, %v1286, 0
    %v1531 = vsel %vm1502, %v1287, 0
    %v1534 = vsel %vm1502, %v1288, 0
    %v1537 = vsel %vm1502, %v1289, 0
    %v1540 = vsel %vm1502, %v1290, 0
    %v1543 = vsel %vm1502, %v1291, 0
    %v1546 = vsel %vm1502, %v1292, 0
    %v1549 = vsel %vm1502, %v1293, 0
    %v1552 = vsel %vm1502, %v1294, 0
    %v1555 = vsel %vm1502, %v1295, 0
    %v1558 = vsel %vm1502, %v1296, 0
    %v1561 = vsel %vm1502, %v1297, 0
    %v1564 = vsel %vm1502, %v1298, 0
    %v1567 = vsel %vm1502, %v1299, 0
    %v1570 = vsel %vm1502, %v1300, 0
    %v1573 = vsel %vm1502, %v1301, 0
    %v1576 = vsel %vm1502, %v1302, 0
    %v1579 = vsel %vm1502, %v1303, 0
    %v1582 = vsel %vm1502, %v1304, 0
    %v1585 = vsel %vm1502, %v1305, 0
    %v1588 = vsel %vm1502, %v1306, 0
    %v1591 = vsel %vm1502, %v1307, 0
    %v1594 = vsel %vm1502, %v1308, 0
    %v1597 = vsel %vm1502, %v1309, 0
    %1599 = vmatpush.msra.mxu0 0.0
    %1600 = vmatpush.msra.mxu0 0.0
    %1601 = vmatpush.msra.mxu0 0.0
    %1602 = vmatpush.msra.mxu0 0.0
    %1603 = vmatpush.msra.mxu0 0.0
    %1604 = vmatpush.msra.mxu0 0.0
    %1605 = vmatpush.msra.mxu0 0.0
    %1606 = vmatpush.msra.mxu0 0.0
    %1607 = vmatpush.msra.mxu0 0.0
    %1608 = vmatpush.msra.mxu0 0.0
    %1609 = vmatpush.msra.mxu0 0.0
    %1610 = vmatpush.msra.mxu0 0.0
    %1611 = vmatpush.msra.mxu0 0.0
    %1612 = vmatpush.msra.mxu0 0.0
    %1613 = vmatpush.msra.mxu0 0.0
    %1614 = vmatpush.msra.mxu0 %v30
    %1615 = vmatmul.f32.gmra.mxu0 %v1504
    %v1616 = vpop.f32.mrf.mxu0
    %v1617 = vadd.f32 %v1345, %v1616
    %1618 = vmatmul.f32.gmra.mxu0 %v1507
    %v1619 = vpop.f32.mrf.mxu0
    %v1620 = vadd.f32 %v1350, %v1619
    %1621 = vmatmul.f32.gmra.mxu0 %v1510
    %v1622 = vpop.f32.mrf.mxu0
    %v1623 = vadd.f32 %v1355, %v1622
    %1624 = vmatmul.f32.gmra.mxu0 %v1513
    %v1625 = vpop.f32.mrf.mxu0
    %v1626 = vadd.f32 %v1360, %v1625
    %1627 = vmatmul.f32.gmra.mxu0 %v1516
    %v1628 = vpop.f32.mrf.mxu0
    %v1629 = vadd.f32 %v1365, %v1628
    %1630 = vmatmul.f32.gmra.mxu0 %v1519
    %v1631 = vpop.f32.mrf.mxu0
    %v1632 = vadd.f32 %v1370, %v1631
    %1633 = vmatmul.f32.gmra.mxu0 %v1522
    %v1634 = vpop.f32.mrf.mxu0
    %v1635 = vadd.f32 %v1375, %v1634
    %1636 = vmatmul.f32.gmra.mxu0 %v1525
    %v1637 = vpop.f32.mrf.mxu0
    %v1638 = vadd.f32 %v1380, %v1637
    %1639 = vmatmul.f32.gmra.mxu0 %v1528
    %v1640 = vpop.f32.mrf.mxu0
    %v1641 = vadd.f32 %v1385, %v1640
    %1642 = vmatmul.f32.gmra.mxu0 %v1531
    %v1643 = vpop.f32.mrf.mxu0
    %v1644 = vadd.f32 %v1390, %v1643
    %1645 = vmatmul.f32.gmra.mxu0 %v1534
    %v1646 = vpop.f32.mrf.mxu0
    %v1647 = vadd.f32 %v1395, %v1646
    %1648 = vmatmul.f32.gmra.mxu0 %v1537
    %v1649 = vpop.f32.mrf.mxu0
    %v1650 = vadd.f32 %v1400, %v1649
    %1651 = vmatmul.f32.gmra.mxu0 %v1540
    %v1652 = vpop.f32.mrf.mxu0
    %v1653 = vadd.f32 %v1405, %v1652
    %1654 = vmatmul.f32.gmra.mxu0 %v1543
    %v1655 = vpop.f32.mrf.mxu0
    %v1656 = vadd.f32 %v1410, %v1655
    %1657 = vmatmul.f32.gmra.mxu0 %v1546
    %v1658 = vpop.f32.mrf.mxu0
    %v1659 = vadd.f32 %v1415, %v1658
    %1660 = vmatmul.f32.gmra.mxu0 %v1549
    %v1661 = vpop.f32.mrf.mxu0
    %v1662 = vadd.f32 %v1420, %v1661
    %1663 = vmatmul.f32.gmra.mxu0 %v1552
    %v1664 = vpop.f32.mrf.mxu0
    %v1665 = vadd.f32 %v1425, %v1664
    %1666 = vmatmul.f32.gmra.mxu0 %v1555
    %v1667 = vpop.f32.mrf.mxu0
    %v1668 = vadd.f32 %v1430, %v1667
    %1669 = vmatmul.f32.gmra.mxu0 %v1558
    %v1670 = vpop.f32.mrf.mxu0
    %v1671 = vadd.f32 %v1435, %v1670
    %1672 = vmatmul.f32.gmra.mxu0 %v1561
    %v1673 = vpop.f32.mrf.mxu0
    %v1674 = vadd.f32 %v1440, %v1673
    %1675 = vmatmul.f32.gmra.mxu0 %v1564
    %v1676 = vpop.f32.mrf.mxu0
    %v1677 = vadd.f32 %v1445, %v1676
    %1678 = vmatmul.f32.gmra.mxu0 %v1567
    %v1679 = vpop.f32.mrf.mxu0
    %v1680 = vadd.f32 %v1450, %v1679
    %1681 = vmatmul.f32.gmra.mxu0 %v1570
    %v1682 = vpop.f32.mrf.mxu0
    %v1683 = vadd.f32 %v1455, %v1682
    %1684 = vmatmul.f32.gmra.mxu0 %v1573
    %v1685 = vpop.f32.mrf.mxu0
    %v1686 = vadd.f32 %v1460, %v1685
    %1687 = vmatmul.f32.gmra.mxu0 %v1576
    %v1688 = vpop.f32.mrf.mxu0
    %v1689 = vadd.f32 %v1465, %v1688
    %1690 = vmatmul.f32.gmra.mxu0 %v1579
    %v1691 = vpop.f32.mrf.mxu0
    %v1692 = vadd.f32 %v1470, %v1691
    %1693 = vmatmul.f32.gmra.mxu0 %v1582
    %v1694 = vpop.f32.mrf.mxu0
    %v1695 = vadd.f32 %v1475, %v1694
    %1696 = vmatmul.f32.gmra.mxu0 %v1585
    %v1697 = vpop.f32.mrf.mxu0
    %v1698 = vadd.f32 %v1480, %v1697
    %1699 = vmatmul.f32.gmra.mxu0 %v1588
    %v1700 = vpop.f32.mrf.mxu0
    %v1701 = vadd.f32 %v1485, %v1700
    %1702 = vmatmul.f32.gmra.mxu0 %v1591
    %v1703 = vpop.f32.mrf.mxu0
    %v1704 = vadd.f32 %v1490, %v1703
    %1705 = vmatmul.f32.gmra.mxu0 %v1594
    %v1706 = vpop.f32.mrf.mxu0
    %v1707 = vadd.f32 %v1495, %v1706
    %1708 = vmatmul.f32.gmra.mxu0 %v1597
    %v1709 = vpop.f32.mrf.mxu0
    %v1710 = vadd.f32 %v1500, %v1709
    %1711 = vdwg.mxu0
    %1712 = vmatpush.msra.mxu0 0.0
    %1713 = vmatpush.msra.mxu0 0.0
    %1714 = vmatpush.msra.mxu0 0.0
    %1715 = vmatpush.msra.mxu0 0.0
    %1716 = vmatpush.msra.mxu0 0.0
    %1717 = vmatpush.msra.mxu0 0.0
    %1718 = vmatpush.msra.mxu0 0.0
    %1719 = vmatpush.msra.mxu0 0.0
    %1720 = vmatpush.msra.mxu0 0.0
    %1721 = vmatpush.msra.mxu0 0.0
    %1722 = vmatpush.msra.mxu0 0.0
    %1723 = vmatpush.msra.mxu0 0.0
    %1724 = vmatpush.msra.mxu0 0.0
    %1725 = vmatpush.msra.mxu0 0.0
    %1726 = vmatpush.msra.mxu0 0.0
    %1727 = vmatpush.msra.mxu0 %v31
    %1728 = vmatmul.f32.gmra.mxu0 %v1504
    %v1729 = vpop.f32.mrf.mxu0
    %v1730 = vadd.f32 %v1345, %v1729
    %1731 = vmatmul.f32.gmra.mxu0 %v1507
    %v1732 = vpop.f32.mrf.mxu0
    %v1733 = vadd.f32 %v1350, %v1732
    %1734 = vmatmul.f32.gmra.mxu0 %v1510
    %v1735 = vpop.f32.mrf.mxu0
    %v1736 = vadd.f32 %v1355, %v1735
    %1737 = vmatmul.f32.gmra.mxu0 %v1513
    %v1738 = vpop.f32.mrf.mxu0
    %v1739 = vadd.f32 %v1360, %v1738
    %1740 = vmatmul.f32.gmra.mxu0 %v1516
    %v1741 = vpop.f32.mrf.mxu0
    %v1742 = vadd.f32 %v1365, %v1741
    %1743 = vmatmul.f32.gmra.mxu0 %v1519
    %v1744 = vpop.f32.mrf.mxu0
    %v1745 = vadd.f32 %v1370, %v1744
    %1746 = vmatmul.f32.gmra.mxu0 %v1522
    %v1747 = vpop.f32.mrf.mxu0
    %v1748 = vadd.f32 %v1375, %v1747
    %1749 = vmatmul.f32.gmra.mxu0 %v1525
    %v1750 = vpop.f32.mrf.mxu0
    %v1751 = vadd.f32 %v1380, %v1750
    %1752 = vmatmul.f32.gmra.mxu0 %v1528
    %v1753 = vpop.f32.mrf.mxu0
    %v1754 = vadd.f32 %v1385, %v1753
    %1755 = vmatmul.f32.gmra.mxu0 %v1531
    %v1756 = vpop.f32.mrf.mxu0
    %v1757 = vadd.f32 %v1390, %v1756
    %1758 = vmatmul.f32.gmra.mxu0 %v1534
    %v1759 = vpop.f32.mrf.mxu0
    %v1760 = vadd.f32 %v1395, %v1759
    %1761 = vmatmul.f32.gmra.mxu0 %v1537
    %v1762 = vpop.f32.mrf.mxu0
    %v1763 = vadd.f32 %v1400, %v1762
    %1764 = vmatmul.f32.gmra.mxu0 %v1540
    %v1765 = vpop.f32.mrf.mxu0
    %v1766 = vadd.f32 %v1405, %v1765
    %1767 = vmatmul.f32.gmra.mxu0 %v1543
    %v1768 = vpop.f32.mrf.mxu0
    %v1769 = vadd.f32 %v1410, %v1768
    %1770 = vmatmul.f32.gmra.mxu0 %v1546
    %v1771 = vpop.f32.mrf.mxu0
    %v1772 = vadd.f32 %v1415, %v1771
    %1773 = vmatmul.f32.gmra.mxu0 %v1549
    %v1774 = vpop.f32.mrf.mxu0
    %v1775 = vadd.f32 %v1420, %v1774
    %1776 = vmatmul.f32.gmra.mxu0 %v1552
    %v1777 = vpop.f32.mrf.mxu0
    %v1778 = vadd.f32 %v1425, %v1777
    %1779 = vmatmul.f32.gmra.mxu0 %v1555
    %v1780 = vpop.f32.mrf.mxu0
    %v1781 = vadd.f32 %v1430, %v1780
    %1782 = vmatmul.f32.gmra.mxu0 %v1558
    %v1783 = vpop.f32.mrf.mxu0
    %v1784 = vadd.f32 %v1435, %v1783
    %1785 = vmatmul.f32.gmra.mxu0 %v1561
    %v1786 = vpop.f32.mrf.mxu0
    %v1787 = vadd.f32 %v1440, %v1786
    %1788 = vmatmul.f32.gmra.mxu0 %v1564
    %v1789 = vpop.f32.mrf.mxu0
    %v1790 = vadd.f32 %v1445, %v1789
    %1791 = vmatmul.f32.gmra.mxu0 %v1567
    %v1792 = vpop.f32.mrf.mxu0
    %v1793 = vadd.f32 %v1450, %v1792
    %1794 = vmatmul.f32.gmra.mxu0 %v1570
    %v1795 = vpop.f32.mrf.mxu0
    %v1796 = vadd.f32 %v1455, %v1795
    %1797 = vmatmul.f32.gmra.mxu0 %v1573
    %v1798 = vpop.f32.mrf.mxu0
    %v1799 = vadd.f32 %v1460, %v1798
    %1800 = vmatmul.f32.gmra.mxu0 %v1576
    %v1801 = vpop.f32.mrf.mxu0
    %v1802 = vadd.f32 %v1465, %v1801
    %1803 = vmatmul.f32.gmra.mxu0 %v1579
    %v1804 = vpop.f32.mrf.mxu0
    %v1805 = vadd.f32 %v1470, %v1804
    %1806 = vmatmul.f32.gmra.mxu0 %v1582
    %v1807 = vpop.f32.mrf.mxu0
    %v1808 = vadd.f32 %v1475, %v1807
    %1809 = vmatmul.f32.gmra.mxu0 %v1585
    %v1810 = vpop.f32.mrf.mxu0
    %v1811 = vadd.f32 %v1480, %v1810
    %1812 = vmatmul.f32.gmra.mxu0 %v1588
    %v1813 = vpop.f32.mrf.mxu0
    %v1814 = vadd.f32 %v1485, %v1813
    %1815 = vmatmul.f32.gmra.mxu0 %v1591
    %v1816 = vpop.f32.mrf.mxu0
    %v1817 = vadd.f32 %v1490, %v1816
    %1818 = vmatmul.f32.gmra.mxu0 %v1594
    %v1819 = vpop.f32.mrf.mxu0
    %v1820 = vadd.f32 %v1495, %v1819
    %1821 = vmatmul.f32.gmra.mxu0 %v1597
    %v1822 = vpop.f32.mrf.mxu0
    %v1823 = vadd.f32 %v1500, %v1822
    %1824 = vdwg.mxu0
    %1825 = vmatpush.msra.mxu0 0.0
    %1826 = vmatpush.msra.mxu0 0.0
    %1827 = vmatpush.msra.mxu0 0.0
    %1828 = vmatpush.msra.mxu0 0.0
    %1829 = vmatpush.msra.mxu0 0.0
    %1830 = vmatpush.msra.mxu0 0.0
    %1831 = vmatpush.msra.mxu0 0.0
    %1832 = vmatpush.msra.mxu0 0.0
    %1833 = vmatpush.msra.mxu0 0.0
    %1834 = vmatpush.msra.mxu0 0.0
    %1835 = vmatpush.msra.mxu0 0.0
    %1836 = vmatpush.msra.mxu0 0.0
    %1837 = vmatpush.msra.mxu0 0.0
    %1838 = vmatpush.msra.mxu0 0.0
    %1839 = vmatpush.msra.mxu0 0.0
    %1840 = vmatpush.msra.mxu0 %v32
    %1841 = vmatmul.f32.gmra.mxu0 %v1504
    %v1842 = vpop.f32.mrf.mxu0
    %v1843 = vadd.f32 %v1345, %v1842
    %1844 = vmatmul.f32.gmra.mxu0 %v1507
    %v1845 = vpop.f32.mrf.mxu0
    %v1846 = vadd.f32 %v1350, %v1845
    %1847 = vmatmul.f32.gmra.mxu0 %v1510
    %v1848 = vpop.f32.mrf.mxu0
    %v1849 = vadd.f32 %v1355, %v1848
    %1850 = vmatmul.f32.gmra.mxu0 %v1513
    %v1851 = vpop.f32.mrf.mxu0
    %v1852 = vadd.f32 %v1360, %v1851
    %1853 = vmatmul.f32.gmra.mxu0 %v1516
    %v1854 = vpop.f32.mrf.mxu0
    %v1855 = vadd.f32 %v1365, %v1854
    %1856 = vmatmul.f32.gmra.mxu0 %v1519
    %v1857 = vpop.f32.mrf.mxu0
    %v1858 = vadd.f32 %v1370, %v1857
    %1859 = vmatmul.f32.gmra.mxu0 %v1522
    %v1860 = vpop.f32.mrf.mxu0
    %v1861 = vadd.f32 %v1375, %v1860
    %1862 = vmatmul.f32.gmra.mxu0 %v1525
    %v1863 = vpop.f32.mrf.mxu0
    %v1864 = vadd.f32 %v1380, %v1863
    %1865 = vmatmul.f32.gmra.mxu0 %v1528
    %v1866 = vpop.f32.mrf.mxu0
    %v1867 = vadd.f32 %v1385, %v1866
    %1868 = vmatmul.f32.gmra.mxu0 %v1531
    %v1869 = vpop.f32.mrf.mxu0
    %v1870 = vadd.f32 %v1390, %v1869
    %1871 = vmatmul.f32.gmra.mxu0 %v1534
    %v1872 = vpop.f32.mrf.mxu0
    %v1873 = vadd.f32 %v1395, %v1872
    %1874 = vmatmul.f32.gmra.mxu0 %v1537
    %v1875 = vpop.f32.mrf.mxu0
    %v1876 = vadd.f32 %v1400, %v1875
    %1877 = vmatmul.f32.gmra.mxu0 %v1540
    %v1878 = vpop.f32.mrf.mxu0
    %v1879 = vadd.f32 %v1405, %v1878
    %1880 = vmatmul.f32.gmra.mxu0 %v1543
    %v1881 = vpop.f32.mrf.mxu0
    %v1882 = vadd.f32 %v1410, %v1881
    %1883 = vmatmul.f32.gmra.mxu0 %v1546
    %v1884 = vpop.f32.mrf.mxu0
    %v1885 = vadd.f32 %v1415, %v1884
    %1886 = vmatmul.f32.gmra.mxu0 %v1549
    %v1887 = vpop.f32.mrf.mxu0
    %v1888 = vadd.f32 %v1420, %v1887
    %1889 = vmatmul.f32.gmra.mxu0 %v1552
    %v1890 = vpop.f32.mrf.mxu0
    %v1891 = vadd.f32 %v1425, %v1890
    %1892 = vmatmul.f32.gmra.mxu0 %v1555
    %v1893 = vpop.f32.mrf.mxu0
    %v1894 = vadd.f32 %v1430, %v1893
    %1895 = vmatmul.f32.gmra.mxu0 %v1558
    %v1896 = vpop.f32.mrf.mxu0
    %v1897 = vadd.f32 %v1435, %v1896
    %1898 = vmatmul.f32.gmra.mxu0 %v1561
    %v1899 = vpop.f32.mrf.mxu0
    %v1900 = vadd.f32 %v1440, %v1899
    %1901 = vmatmul.f32.gmra.mxu0 %v1564
    %v1902 = vpop.f32.mrf.mxu0
    %v1903 = vadd.f32 %v1445, %v1902
    %1904 = vmatmul.f32.gmra.mxu0 %v1567
    %v1905 = vpop.f32.mrf.mxu0
    %v1906 = vadd.f32 %v1450, %v1905
    %1907 = vmatmul.f32.gmra.mxu0 %v1570
    %v1908 = vpop.f32.mrf.mxu0
    %v1909 = vadd.f32 %v1455, %v1908
    %1910 = vmatmul.f32.gmra.mxu0 %v1573
    %v1911 = vpop.f32.mrf.mxu0
    %v1912 = vadd.f32 %v1460, %v1911
    %1913 = vmatmul.f32.gmra.mxu0 %v1576
    %v1914 = vpop.f32.mrf.mxu0
    %v1915 = vadd.f32 %v1465, %v1914
    %1916 = vmatmul.f32.gmra.mxu0 %v1579
    %v1917 = vpop.f32.mrf.mxu0
    %v1918 = vadd.f32 %v1470, %v1917
    %1919 = vmatmul.f32.gmra.mxu0 %v1582
    %v1920 = vpop.f32.mrf.mxu0
    %v1921 = vadd.f32 %v1475, %v1920
    %1922 = vmatmul.f32.gmra.mxu0 %v1585
    %v1923 = vpop.f32.mrf.mxu0
    %v1924 = vadd.f32 %v1480, %v1923
    %1925 = vmatmul.f32.gmra.mxu0 %v1588
    %v1926 = vpop.f32.mrf.mxu0
    %v1927 = vadd.f32 %v1485, %v1926
    %1928 = vmatmul.f32.gmra.mxu0 %v1591
    %v1929 = vpop.f32.mrf.mxu0
    %v1930 = vadd.f32 %v1490, %v1929
    %1931 = vmatmul.f32.gmra.mxu0 %v1594
    %v1932 = vpop.f32.mrf.mxu0
    %v1933 = vadd.f32 %v1495, %v1932
    %1934 = vmatmul.f32.gmra.mxu0 %v1597
    %v1935 = vpop.f32.mrf.mxu0
    %v1936 = vadd.f32 %v1500, %v1935
    %1937 = vdwg.mxu0
    %1938 = vmatpush.msra.mxu0 0.0
    %1939 = vmatpush.msra.mxu0 0.0
    %1940 = vmatpush.msra.mxu0 0.0
    %1941 = vmatpush.msra.mxu0 0.0
    %1942 = vmatpush.msra.mxu0 0.0
    %1943 = vmatpush.msra.mxu0 0.0
    %1944 = vmatpush.msra.mxu0 0.0
    %1945 = vmatpush.msra.mxu0 0.0
    %1946 = vmatpush.msra.mxu0 0.0
    %1947 = vmatpush.msra.mxu0 0.0
    %1948 = vmatpush.msra.mxu0 0.0
    %1949 = vmatpush.msra.mxu0 0.0
    %1950 = vmatpush.msra.mxu0 0.0
    %1951 = vmatpush.msra.mxu0 0.0
    %1952 = vmatpush.msra.mxu0 0.0
    %1953 = vmatpush.msra.mxu0 %v33
    %1954 = vmatmul.f32.gmra.mxu0 %v1504
    %v1955 = vpop.f32.mrf.mxu0
    %v1956 = vadd.f32 %v1345, %v1955
    %1957 = vmatmul.f32.gmra.mxu0 %v1507
    %v1958 = vpop.f32.mrf.mxu0
    %v1959 = vadd.f32 %v1350, %v1958
    %1960 = vmatmul.f32.gmra.mxu0 %v1510
    %v1961 = vpop.f32.mrf.mxu0
    %v1962 = vadd.f32 %v1355, %v1961
    %1963 = vmatmul.f32.gmra.mxu0 %v1513
    %v1964 = vpop.f32.mrf.mxu0
    %v1965 = vadd.f32 %v1360, %v1964
    %1966 = vmatmul.f32.gmra.mxu0 %v1516
    %v1967 = vpop.f32.mrf.mxu0
    %v1968 = vadd.f32 %v1365, %v1967
    %1969 = vmatmul.f32.gmra.mxu0 %v1519
    %v1970 = vpop.f32.mrf.mxu0
    %v1971 = vadd.f32 %v1370, %v1970
    %1972 = vmatmul.f32.gmra.mxu0 %v1522
    %v1973 = vpop.f32.mrf.mxu0
    %v1974 = vadd.f32 %v1375, %v1973
    %1975 = vmatmul.f32.gmra.mxu0 %v1525
    %v1976 = vpop.f32.mrf.mxu0
    %v1977 = vadd.f32 %v1380, %v1976
    %1978 = vmatmul.f32.gmra.mxu0 %v1528
    %v1979 = vpop.f32.mrf.mxu0
    %v1980 = vadd.f32 %v1385, %v1979
    %1981 = vmatmul.f32.gmra.mxu0 %v1531
    %v1982 = vpop.f32.mrf.mxu0
    %v1983 = vadd.f32 %v1390, %v1982
    %1984 = vmatmul.f32.gmra.mxu0 %v1534
    %v1985 = vpop.f32.mrf.mxu0
    %v1986 = vadd.f32 %v1395, %v1985
    %1987 = vmatmul.f32.gmra.mxu0 %v1537
    %v1988 = vpop.f32.mrf.mxu0
    %v1989 = vadd.f32 %v1400, %v1988
    %1990 = vmatmul.f32.gmra.mxu0 %v1540
    %v1991 = vpop.f32.mrf.mxu0
    %v1992 = vadd.f32 %v1405, %v1991
    %1993 = vmatmul.f32.gmra.mxu0 %v1543
    %v1994 = vpop.f32.mrf.mxu0
    %v1995 = vadd.f32 %v1410, %v1994
    %1996 = vmatmul.f32.gmra.mxu0 %v1546
    %v1997 = vpop.f32.mrf.mxu0
    %v1998 = vadd.f32 %v1415, %v1997
    %1999 = vmatmul.f32.gmra.mxu0 %v1549
    %v2000 = vpop.f32.mrf.mxu0
    %v2001 = vadd.f32 %v1420, %v2000
    %2002 = vmatmul.f32.gmra.mxu0 %v1552
    %v2003 = vpop.f32.mrf.mxu0
    %v2004 = vadd.f32 %v1425, %v2003
    %2005 = vmatmul.f32.gmra.mxu0 %v1555
    %v2006 = vpop.f32.mrf.mxu0
    %v2007 = vadd.f32 %v1430, %v2006
    %2008 = vmatmul.f32.gmra.mxu0 %v1558
    %v2009 = vpop.f32.mrf.mxu0
    %v2010 = vadd.f32 %v1435, %v2009
    %2011 = vmatmul.f32.gmra.mxu0 %v1561
    %v2012 = vpop.f32.mrf.mxu0
    %v2013 = vadd.f32 %v1440, %v2012
    %2014 = vmatmul.f32.gmra.mxu0 %v1564
    %v2015 = vpop.f32.mrf.mxu0
    %v2016 = vadd.f32 %v1445, %v2015
    %2017 = vmatmul.f32.gmra.mxu0 %v1567
    %v2018 = vpop.f32.mrf.mxu0
    %v2019 = vadd.f32 %v1450, %v2018
    %2020 = vmatmul.f32.gmra.mxu0 %v1570
    %v2021 = vpop.f32.mrf.mxu0
    %v2022 = vadd.f32 %v1455, %v2021
    %2023 = vmatmul.f32.gmra.mxu0 %v1573
    %v2024 = vpop.f32.mrf.mxu0
    %v2025 = vadd.f32 %v1460, %v2024
    %2026 = vmatmul.f32.gmra.mxu0 %v1576
    %v2027 = vpop.f32.mrf.mxu0
    %v2028 = vadd.f32 %v1465, %v2027
    %2029 = vmatmul.f32.gmra.mxu0 %v1579
    %v2030 = vpop.f32.mrf.mxu0
    %v2031 = vadd.f32 %v1470, %v2030
    %2032 = vmatmul.f32.gmra.mxu0 %v1582
    %v2033 = vpop.f32.mrf.mxu0
    %v2034 = vadd.f32 %v1475, %v2033
    %2035 = vmatmul.f32.gmra.mxu0 %v1585
    %v2036 = vpop.f32.mrf.mxu0
    %v2037 = vadd.f32 %v1480, %v2036
    %2038 = vmatmul.f32.gmra.mxu0 %v1588
    %v2039 = vpop.f32.mrf.mxu0
    %v2040 = vadd.f32 %v1485, %v2039
    %2041 = vmatmul.f32.gmra.mxu0 %v1591
    %v2042 = vpop.f32.mrf.mxu0
    %v2043 = vadd.f32 %v1490, %v2042
    %2044 = vmatmul.f32.gmra.mxu0 %v1594
    %v2045 = vpop.f32.mrf.mxu0
    %v2046 = vadd.f32 %v1495, %v2045
    %2047 = vmatmul.f32.gmra.mxu0 %v1597
    %v2048 = vpop.f32.mrf.mxu0
    %v2049 = vadd.f32 %v1500, %v2048
    %2050 = vdwg.mxu0
    %2051 = vmatpush.msra.mxu0 0.0
    %2052 = vmatpush.msra.mxu0 0.0
    %2053 = vmatpush.msra.mxu0 0.0
    %2054 = vmatpush.msra.mxu0 0.0
    %2055 = vmatpush.msra.mxu0 0.0
    %2056 = vmatpush.msra.mxu0 0.0
    %2057 = vmatpush.msra.mxu0 0.0
    %2058 = vmatpush.msra.mxu0 0.0
    %2059 = vmatpush.msra.mxu0 0.0
    %2060 = vmatpush.msra.mxu0 0.0
    %2061 = vmatpush.msra.mxu0 0.0
    %2062 = vmatpush.msra.mxu0 0.0
    %2063 = vmatpush.msra.mxu0 0.0
    %2064 = vmatpush.msra.mxu0 0.0
    %2065 = vmatpush.msra.mxu0 0.0
    %2066 = vmatpush.msra.mxu0 %v34
    %2067 = vmatmul.f32.gmra.mxu0 %v1504
    %v2068 = vpop.f32.mrf.mxu0
    %v2069 = vadd.f32 %v1345, %v2068
    %2070 = vmatmul.f32.gmra.mxu0 %v1507
    %v2071 = vpop.f32.mrf.mxu0
    %v2072 = vadd.f32 %v1350, %v2071
    %2073 = vmatmul.f32.gmra.mxu0 %v1510
    %v2074 = vpop.f32.mrf.mxu0
    %v2075 = vadd.f32 %v1355, %v2074
    %2076 = vmatmul.f32.gmra.mxu0 %v1513
    %v2077 = vpop.f32.mrf.mxu0
    %v2078 = vadd.f32 %v1360, %v2077
    %2079 = vmatmul.f32.gmra.mxu0 %v1516
    %v2080 = vpop.f32.mrf.mxu0
    %v2081 = vadd.f32 %v1365, %v2080
    %2082 = vmatmul.f32.gmra.mxu0 %v1519
    %v2083 = vpop.f32.mrf.mxu0
    %v2084 = vadd.f32 %v1370, %v2083
    %2085 = vmatmul.f32.gmra.mxu0 %v1522
    %v2086 = vpop.f32.mrf.mxu0
    %v2087 = vadd.f32 %v1375, %v2086
    %2088 = vmatmul.f32.gmra.mxu0 %v1525
    %v2089 = vpop.f32.mrf.mxu0
    %v2090 = vadd.f32 %v1380, %v2089
    %2091 = vmatmul.f32.gmra.mxu0 %v1528
    %v2092 = vpop.f32.mrf.mxu0
    %v2093 = vadd.f32 %v1385, %v2092
    %2094 = vmatmul.f32.gmra.mxu0 %v1531
    %v2095 = vpop.f32.mrf.mxu0
    %v2096 = vadd.f32 %v1390, %v2095
    %2097 = vmatmul.f32.gmra.mxu0 %v1534
    %v2098 = vpop.f32.mrf.mxu0
    %v2099 = vadd.f32 %v1395, %v2098
    %2100 = vmatmul.f32.gmra.mxu0 %v1537
    %v2101 = vpop.f32.mrf.mxu0
    %v2102 = vadd.f32 %v1400, %v2101
    %2103 = vmatmul.f32.gmra.mxu0 %v1540
    %v2104 = vpop.f32.mrf.mxu0
    %v2105 = vadd.f32 %v1405, %v2104
    %2106 = vmatmul.f32.gmra.mxu0 %v1543
    %v2107 = vpop.f32.mrf.mxu0
    %v2108 = vadd.f32 %v1410, %v2107
    %2109 = vmatmul.f32.gmra.mxu0 %v1546
    %v2110 = vpop.f32.mrf.mxu0
    %v2111 = vadd.f32 %v1415, %v2110
    %2112 = vmatmul.f32.gmra.mxu0 %v1549
    %v2113 = vpop.f32.mrf.mxu0
    %v2114 = vadd.f32 %v1420, %v2113
    %2115 = vmatmul.f32.gmra.mxu0 %v1552
    %v2116 = vpop.f32.mrf.mxu0
    %v2117 = vadd.f32 %v1425, %v2116
    %2118 = vmatmul.f32.gmra.mxu0 %v1555
    %v2119 = vpop.f32.mrf.mxu0
    %v2120 = vadd.f32 %v1430, %v2119
    %2121 = vmatmul.f32.gmra.mxu0 %v1558
    %v2122 = vpop.f32.mrf.mxu0
    %v2123 = vadd.f32 %v1435, %v2122
    %2124 = vmatmul.f32.gmra.mxu0 %v1561
    %v2125 = vpop.f32.mrf.mxu0
    %v2126 = vadd.f32 %v1440, %v2125
    %2127 = vmatmul.f32.gmra.mxu0 %v1564
    %v2128 = vpop.f32.mrf.mxu0
    %v2129 = vadd.f32 %v1445, %v2128
    %2130 = vmatmul.f32.gmra.mxu0 %v1567
    %v2131 = vpop.f32.mrf.mxu0
    %v2132 = vadd.f32 %v1450, %v2131
    %2133 = vmatmul.f32.gmra.mxu0 %v1570
    %v2134 = vpop.f32.mrf.mxu0
    %v2135 = vadd.f32 %v1455, %v2134
    %2136 = vmatmul.f32.gmra.mxu0 %v1573
    %v2137 = vpop.f32.mrf.mxu0
    %v2138 = vadd.f32 %v1460, %v2137
    %2139 = vmatmul.f32.gmra.mxu0 %v1576
    %v2140 = vpop.f32.mrf.mxu0
    %v2141 = vadd.f32 %v1465, %v2140
    %2142 = vmatmul.f32.gmra.mxu0 %v1579
    %v2143 = vpop.f32.mrf.mxu0
    %v2144 = vadd.f32 %v1470, %v2143
    %2145 = vmatmul.f32.gmra.mxu0 %v1582
    %v2146 = vpop.f32.mrf.mxu0
    %v2147 = vadd.f32 %v1475, %v2146
    %2148 = vmatmul.f32.gmra.mxu0 %v1585
    %v2149 = vpop.f32.mrf.mxu0
    %v2150 = vadd.f32 %v1480, %v2149
    %2151 = vmatmul.f32.gmra.mxu0 %v1588
    %v2152 = vpop.f32.mrf.mxu0
    %v2153 = vadd.f32 %v1485, %v2152
    %2154 = vmatmul.f32.gmra.mxu0 %v1591
    %v2155 = vpop.f32.mrf.mxu0
    %v2156 = vadd.f32 %v1490, %v2155
    %2157 = vmatmul.f32.gmra.mxu0 %v1594
    %v2158 = vpop.f32.mrf.mxu0
    %v2159 = vadd.f32 %v1495, %v2158
    %2160 = vmatmul.f32.gmra.mxu0 %v1597
    %v2161 = vpop.f32.mrf.mxu0
    %v2162 = vadd.f32 %v1500, %v2161
    %2163 = vdwg.mxu0
    %2164 = vmatpush.msra.mxu0 0.0
    %2165 = vmatpush.msra.mxu0 0.0
    %2166 = vmatpush.msra.mxu0 0.0
    %2167 = vmatpush.msra.mxu0 0.0
    %2168 = vmatpush.msra.mxu0 0.0
    %2169 = vmatpush.msra.mxu0 0.0
    %2170 = vmatpush.msra.mxu0 0.0
    %2171 = vmatpush.msra.mxu0 0.0
    %2172 = vmatpush.msra.mxu0 0.0
    %2173 = vmatpush.msra.mxu0 0.0
    %2174 = vmatpush.msra.mxu0 0.0
    %2175 = vmatpush.msra.mxu0 0.0
    %2176 = vmatpush.msra.mxu0 0.0
    %2177 = vmatpush.msra.mxu0 0.0
    %2178 = vmatpush.msra.mxu0 0.0
    %2179 = vmatpush.msra.mxu0 %v35
    %2180 = vmatmul.f32.gmra.mxu0 %v1504
    %v2181 = vpop.f32.mrf.mxu0
    %v2182 = vadd.f32 %v1345, %v2181
    %2183 = vmatmul.f32.gmra.mxu0 %v1507
    %v2184 = vpop.f32.mrf.mxu0
    %v2185 = vadd.f32 %v1350, %v2184
    %2186 = vmatmul.f32.gmra.mxu0 %v1510
    %v2187 = vpop.f32.mrf.mxu0
    %v2188 = vadd.f32 %v1355, %v2187
    %2189 = vmatmul.f32.gmra.mxu0 %v1513
    %v2190 = vpop.f32.mrf.mxu0
    %v2191 = vadd.f32 %v1360, %v2190
    %2192 = vmatmul.f32.gmra.mxu0 %v1516
    %v2193 = vpop.f32.mrf.mxu0
    %v2194 = vadd.f32 %v1365, %v2193
    %2195 = vmatmul.f32.gmra.mxu0 %v1519
    %v2196 = vpop.f32.mrf.mxu0
    %v2197 = vadd.f32 %v1370, %v2196
    %2198 = vmatmul.f32.gmra.mxu0 %v1522
    %v2199 = vpop.f32.mrf.mxu0
    %v2200 = vadd.f32 %v1375, %v2199
    %2201 = vmatmul.f32.gmra.mxu0 %v1525
    %v2202 = vpop.f32.mrf.mxu0
    %v2203 = vadd.f32 %v1380, %v2202
    %2204 = vmatmul.f32.gmra.mxu0 %v1528
    %v2205 = vpop.f32.mrf.mxu0
    %v2206 = vadd.f32 %v1385, %v2205
    %2207 = vmatmul.f32.gmra.mxu0 %v1531
    %v2208 = vpop.f32.mrf.mxu0
    %v2209 = vadd.f32 %v1390, %v2208
    %2210 = vmatmul.f32.gmra.mxu0 %v1534
    %v2211 = vpop.f32.mrf.mxu0
    %v2212 = vadd.f32 %v1395, %v2211
    %2213 = vmatmul.f32.gmra.mxu0 %v1537
    %v2214 = vpop.f32.mrf.mxu0
    %v2215 = vadd.f32 %v1400, %v2214
    %2216 = vmatmul.f32.gmra.mxu0 %v1540
    %v2217 = vpop.f32.mrf.mxu0
    %v2218 = vadd.f32 %v1405, %v2217
    %2219 = vmatmul.f32.gmra.mxu0 %v1543
    %v2220 = vpop.f32.mrf.mxu0
    %v2221 = vadd.f32 %v1410, %v2220
    %2222 = vmatmul.f32.gmra.mxu0 %v1546
    %v2223 = vpop.f32.mrf.mxu0
    %v2224 = vadd.f32 %v1415, %v2223
    %2225 = vmatmul.f32.gmra.mxu0 %v1549
    %v2226 = vpop.f32.mrf.mxu0
    %v2227 = vadd.f32 %v1420, %v2226
    %2228 = vmatmul.f32.gmra.mxu0 %v1552
    %v2229 = vpop.f32.mrf.mxu0
    %v2230 = vadd.f32 %v1425, %v2229
    %2231 = vmatmul.f32.gmra.mxu0 %v1555
    %v2232 = vpop.f32.mrf.mxu0
    %v2233 = vadd.f32 %v1430, %v2232
    %2234 = vmatmul.f32.gmra.mxu0 %v1558
    %v2235 = vpop.f32.mrf.mxu0
    %v2236 = vadd.f32 %v1435, %v2235
    %2237 = vmatmul.f32.gmra.mxu0 %v1561
    %v2238 = vpop.f32.mrf.mxu0
    %v2239 = vadd.f32 %v1440, %v2238
    %2240 = vmatmul.f32.gmra.mxu0 %v1564
    %v2241 = vpop.f32.mrf.mxu0
    %v2242 = vadd.f32 %v1445, %v2241
    %2243 = vmatmul.f32.gmra.mxu0 %v1567
    %v2244 = vpop.f32.mrf.mxu0
    %v2245 = vadd.f32 %v1450, %v2244
    %2246 = vmatmul.f32.gmra.mxu0 %v1570
    %v2247 = vpop.f32.mrf.mxu0
    %v2248 = vadd.f32 %v1455, %v2247
    %2249 = vmatmul.f32.gmra.mxu0 %v1573
    %v2250 = vpop.f32.mrf.mxu0
    %v2251 = vadd.f32 %v1460, %v2250
    %2252 = vmatmul.f32.gmra.mxu0 %v1576
    %v2253 = vpop.f32.mrf.mxu0
    %v2254 = vadd.f32 %v1465, %v2253
    %2255 = vmatmul.f32.gmra.mxu0 %v1579
    %v2256 = vpop.f32.mrf.mxu0
    %v2257 = vadd.f32 %v1470, %v2256
    %2258 = vmatmul.f32.gmra.mxu0 %v1582
    %v2259 = vpop.f32.mrf.mxu0
    %v2260 = vadd.f32 %v1475, %v2259
    %2261 = vmatmul.f32.gmra.mxu0 %v1585
    %v2262 = vpop.f32.mrf.mxu0
    %v2263 = vadd.f32 %v1480, %v2262
    %2264 = vmatmul.f32.gmra.mxu0 %v1588
    %v2265 = vpop.f32.mrf.mxu0
    %v2266 = vadd.f32 %v1485, %v2265
    %2267 = vmatmul.f32.gmra.mxu0 %v1591
    %v2268 = vpop.f32.mrf.mxu0
    %v2269 = vadd.f32 %v1490, %v2268
    %2270 = vmatmul.f32.gmra.mxu0 %v1594
    %v2271 = vpop.f32.mrf.mxu0
    %v2272 = vadd.f32 %v1495, %v2271
    %2273 = vmatmul.f32.gmra.mxu0 %v1597
    %v2274 = vpop.f32.mrf.mxu0
    %v2275 = vadd.f32 %v1500, %v2274
    %2276 = vdwg.mxu0
    %2277 = vmatpush.msra.mxu0 0.0
    %2278 = vmatpush.msra.mxu0 0.0
    %2279 = vmatpush.msra.mxu0 0.0
    %2280 = vmatpush.msra.mxu0 0.0
    %2281 = vmatpush.msra.mxu0 0.0
    %2282 = vmatpush.msra.mxu0 0.0
    %2283 = vmatpush.msra.mxu0 0.0
    %2284 = vmatpush.msra.mxu0 0.0
    %2285 = vmatpush.msra.mxu0 0.0
    %2286 = vmatpush.msra.mxu0 0.0
    %2287 = vmatpush.msra.mxu0 0.0
    %2288 = vmatpush.msra.mxu0 0.0
    %2289 = vmatpush.msra.mxu0 0.0
    %2290 = vmatpush.msra.mxu0 0.0
    %2291 = vmatpush.msra.mxu0 0.0
    %2292 = vmatpush.msra.mxu0 %v36
    %2293 = vmatmul.f32.gmra.mxu0 %v1504
    %v2294 = vpop.f32.mrf.mxu0
    %v2295 = vadd.f32 %v1345, %v2294
    %2296 = vmatmul.f32.gmra.mxu0 %v1507
    %v2297 = vpop.f32.mrf.mxu0
    %v2298 = vadd.f32 %v1350, %v2297
    %2299 = vmatmul.f32.gmra.mxu0 %v1510
    %v2300 = vpop.f32.mrf.mxu0
    %v2301 = vadd.f32 %v1355, %v2300
    %2302 = vmatmul.f32.gmra.mxu0 %v1513
    %v2303 = vpop.f32.mrf.mxu0
    %v2304 = vadd.f32 %v1360, %v2303
    %2305 = vmatmul.f32.gmra.mxu0 %v1516
    %v2306 = vpop.f32.mrf.mxu0
    %v2307 = vadd.f32 %v1365, %v2306
    %2308 = vmatmul.f32.gmra.mxu0 %v1519
    %v2309 = vpop.f32.mrf.mxu0
    %v2310 = vadd.f32 %v1370, %v2309
    %2311 = vmatmul.f32.gmra.mxu0 %v1522
    %v2312 = vpop.f32.mrf.mxu0
    %v2313 = vadd.f32 %v1375, %v2312
    %2314 = vmatmul.f32.gmra.mxu0 %v1525
    %v2315 = vpop.f32.mrf.mxu0
    %v2316 = vadd.f32 %v1380, %v2315
    %2317 = vmatmul.f32.gmra.mxu0 %v1528
    %v2318 = vpop.f32.mrf.mxu0
    %v2319 = vadd.f32 %v1385, %v2318
    %2320 = vmatmul.f32.gmra.mxu0 %v1531
    %v2321 = vpop.f32.mrf.mxu0
    %v2322 = vadd.f32 %v1390, %v2321
    %2323 = vmatmul.f32.gmra.mxu0 %v1534
    %v2324 = vpop.f32.mrf.mxu0
    %v2325 = vadd.f32 %v1395, %v2324
    %2326 = vmatmul.f32.gmra.mxu0 %v1537
    %v2327 = vpop.f32.mrf.mxu0
    %v2328 = vadd.f32 %v1400, %v2327
    %2329 = vmatmul.f32.gmra.mxu0 %v1540
    %v2330 = vpop.f32.mrf.mxu0
    %v2331 = vadd.f32 %v1405, %v2330
    %2332 = vmatmul.f32.gmra.mxu0 %v1543
    %v2333 = vpop.f32.mrf.mxu0
    %v2334 = vadd.f32 %v1410, %v2333
    %2335 = vmatmul.f32.gmra.mxu0 %v1546
    %v2336 = vpop.f32.mrf.mxu0
    %v2337 = vadd.f32 %v1415, %v2336
    %2338 = vmatmul.f32.gmra.mxu0 %v1549
    %v2339 = vpop.f32.mrf.mxu0
    %v2340 = vadd.f32 %v1420, %v2339
    %2341 = vmatmul.f32.gmra.mxu0 %v1552
    %v2342 = vpop.f32.mrf.mxu0
    %v2343 = vadd.f32 %v1425, %v2342
    %2344 = vmatmul.f32.gmra.mxu0 %v1555
    %v2345 = vpop.f32.mrf.mxu0
    %v2346 = vadd.f32 %v1430, %v2345
    %2347 = vmatmul.f32.gmra.mxu0 %v1558
    %v2348 = vpop.f32.mrf.mxu0
    %v2349 = vadd.f32 %v1435, %v2348
    %2350 = vmatmul.f32.gmra.mxu0 %v1561
    %v2351 = vpop.f32.mrf.mxu0
    %v2352 = vadd.f32 %v1440, %v2351
    %2353 = vmatmul.f32.gmra.mxu0 %v1564
    %v2354 = vpop.f32.mrf.mxu0
    %v2355 = vadd.f32 %v1445, %v2354
    %2356 = vmatmul.f32.gmra.mxu0 %v1567
    %v2357 = vpop.f32.mrf.mxu0
    %v2358 = vadd.f32 %v1450, %v2357
    %2359 = vmatmul.f32.gmra.mxu0 %v1570
    %v2360 = vpop.f32.mrf.mxu0
    %v2361 = vadd.f32 %v1455, %v2360
    %2362 = vmatmul.f32.gmra.mxu0 %v1573
    %v2363 = vpop.f32.mrf.mxu0
    %v2364 = vadd.f32 %v1460, %v2363
    %2365 = vmatmul.f32.gmra.mxu0 %v1576
    %v2366 = vpop.f32.mrf.mxu0
    %v2367 = vadd.f32 %v1465, %v2366
    %2368 = vmatmul.f32.gmra.mxu0 %v1579
    %v2369 = vpop.f32.mrf.mxu0
    %v2370 = vadd.f32 %v1470, %v2369
    %2371 = vmatmul.f32.gmra.mxu0 %v1582
    %v2372 = vpop.f32.mrf.mxu0
    %v2373 = vadd.f32 %v1475, %v2372
    %2374 = vmatmul.f32.gmra.mxu0 %v1585
    %v2375 = vpop.f32.mrf.mxu0
    %v2376 = vadd.f32 %v1480, %v2375
    %2377 = vmatmul.f32.gmra.mxu0 %v1588
    %v2378 = vpop.f32.mrf.mxu0
    %v2379 = vadd.f32 %v1485, %v2378
    %2380 = vmatmul.f32.gmra.mxu0 %v1591
    %v2381 = vpop.f32.mrf.mxu0
    %v2382 = vadd.f32 %v1490, %v2381
    %2383 = vmatmul.f32.gmra.mxu0 %v1594
    %v2384 = vpop.f32.mrf.mxu0
    %v2385 = vadd.f32 %v1495, %v2384
    %2386 = vmatmul.f32.gmra.mxu0 %v1597
    %v2387 = vpop.f32.mrf.mxu0
    %v2388 = vadd.f32 %v1500, %v2387
    %2389 = vdwg.mxu0
    %2390 = vmatpush.msra.mxu0 0.0
    %2391 = vmatpush.msra.mxu0 0.0
    %2392 = vmatpush.msra.mxu0 0.0
    %2393 = vmatpush.msra.mxu0 0.0
    %2394 = vmatpush.msra.mxu0 0.0
    %2395 = vmatpush.msra.mxu0 0.0
    %2396 = vmatpush.msra.mxu0 0.0
    %2397 = vmatpush.msra.mxu0 0.0
    %2398 = vmatpush.msra.mxu0 0.0
    %2399 = vmatpush.msra.mxu0 0.0
    %2400 = vmatpush.msra.mxu0 0.0
    %2401 = vmatpush.msra.mxu0 0.0
    %2402 = vmatpush.msra.mxu0 0.0
    %2403 = vmatpush.msra.mxu0 0.0
    %2404 = vmatpush.msra.mxu0 0.0
    %2405 = vmatpush.msra.mxu0 %v37
    %2406 = vmatmul.f32.gmra.mxu0 %v1504
    %v2407 = vpop.f32.mrf.mxu0
    %v2408 = vadd.f32 %v1345, %v2407
    %2409 = vmatmul.f32.gmra.mxu0 %v1507
    %v2410 = vpop.f32.mrf.mxu0
    %v2411 = vadd.f32 %v1350, %v2410
    %2412 = vmatmul.f32.gmra.mxu0 %v1510
    %v2413 = vpop.f32.mrf.mxu0
    %v2414 = vadd.f32 %v1355, %v2413
    %2415 = vmatmul.f32.gmra.mxu0 %v1513
    %v2416 = vpop.f32.mrf.mxu0
    %v2417 = vadd.f32 %v1360, %v2416
    %2418 = vmatmul.f32.gmra.mxu0 %v1516
    %v2419 = vpop.f32.mrf.mxu0
    %v2420 = vadd.f32 %v1365, %v2419
    %2421 = vmatmul.f32.gmra.mxu0 %v1519
    %v2422 = vpop.f32.mrf.mxu0
    %v2423 = vadd.f32 %v1370, %v2422
    %2424 = vmatmul.f32.gmra.mxu0 %v1522
    %v2425 = vpop.f32.mrf.mxu0
    %v2426 = vadd.f32 %v1375, %v2425
    %2427 = vmatmul.f32.gmra.mxu0 %v1525
    %v2428 = vpop.f32.mrf.mxu0
    %v2429 = vadd.f32 %v1380, %v2428
    %2430 = vmatmul.f32.gmra.mxu0 %v1528
    %v2431 = vpop.f32.mrf.mxu0
    %v2432 = vadd.f32 %v1385, %v2431
    %2433 = vmatmul.f32.gmra.mxu0 %v1531
    %v2434 = vpop.f32.mrf.mxu0
    %v2435 = vadd.f32 %v1390, %v2434
    %2436 = vmatmul.f32.gmra.mxu0 %v1534
    %v2437 = vpop.f32.mrf.mxu0
    %v2438 = vadd.f32 %v1395, %v2437
    %2439 = vmatmul.f32.gmra.mxu0 %v1537
    %v2440 = vpop.f32.mrf.mxu0
    %v2441 = vadd.f32 %v1400, %v2440
    %2442 = vmatmul.f32.gmra.mxu0 %v1540
    %v2443 = vpop.f32.mrf.mxu0
    %v2444 = vadd.f32 %v1405, %v2443
    %2445 = vmatmul.f32.gmra.mxu0 %v1543
    %v2446 = vpop.f32.mrf.mxu0
    %v2447 = vadd.f32 %v1410, %v2446
    %2448 = vmatmul.f32.gmra.mxu0 %v1546
    %v2449 = vpop.f32.mrf.mxu0
    %v2450 = vadd.f32 %v1415, %v2449
    %2451 = vmatmul.f32.gmra.mxu0 %v1549
    %v2452 = vpop.f32.mrf.mxu0
    %v2453 = vadd.f32 %v1420, %v2452
    %2454 = vmatmul.f32.gmra.mxu0 %v1552
    %v2455 = vpop.f32.mrf.mxu0
    %v2456 = vadd.f32 %v1425, %v2455
    %2457 = vmatmul.f32.gmra.mxu0 %v1555
    %v2458 = vpop.f32.mrf.mxu0
    %v2459 = vadd.f32 %v1430, %v2458
    %2460 = vmatmul.f32.gmra.mxu0 %v1558
    %v2461 = vpop.f32.mrf.mxu0
    %v2462 = vadd.f32 %v1435, %v2461
    %2463 = vmatmul.f32.gmra.mxu0 %v1561
    %v2464 = vpop.f32.mrf.mxu0
    %v2465 = vadd.f32 %v1440, %v2464
    %2466 = vmatmul.f32.gmra.mxu0 %v1564
    %v2467 = vpop.f32.mrf.mxu0
    %v2468 = vadd.f32 %v1445, %v2467
    %2469 = vmatmul.f32.gmra.mxu0 %v1567
    %v2470 = vpop.f32.mrf.mxu0
    %v2471 = vadd.f32 %v1450, %v2470
    %2472 = vmatmul.f32.gmra.mxu0 %v1570
    %v2473 = vpop.f32.mrf.mxu0
    %v2474 = vadd.f32 %v1455, %v2473
    %2475 = vmatmul.f32.gmra.mxu0 %v1573
    %v2476 = vpop.f32.mrf.mxu0
    %v2477 = vadd.f32 %v1460, %v2476
    %2478 = vmatmul.f32.gmra.mxu0 %v1576
    %v2479 = vpop.f32.mrf.mxu0
    %v2480 = vadd.f32 %v1465, %v2479
    %2481 = vmatmul.f32.gmra.mxu0 %v1579
    %v2482 = vpop.f32.mrf.mxu0
    %v2483 = vadd.f32 %v1470, %v2482
    %2484 = vmatmul.f32.gmra.mxu0 %v1582
    %v2485 = vpop.f32.mrf.mxu0
    %v2486 = vadd.f32 %v1475, %v2485
    %2487 = vmatmul.f32.gmra.mxu0 %v1585
    %v2488 = vpop.f32.mrf.mxu0
    %v2489 = vadd.f32 %v1480, %v2488
    %2490 = vmatmul.f32.gmra.mxu0 %v1588
    %v2491 = vpop.f32.mrf.mxu0
    %v2492 = vadd.f32 %v1485, %v2491
    %2493 = vmatmul.f32.gmra.mxu0 %v1591
    %v2494 = vpop.f32.mrf.mxu0
    %v2495 = vadd.f32 %v1490, %v2494
    %2496 = vmatmul.f32.gmra.mxu0 %v1594
    %v2497 = vpop.f32.mrf.mxu0
    %v2498 = vadd.f32 %v1495, %v2497
    %2499 = vmatmul.f32.gmra.mxu0 %v1597
    %v2500 = vpop.f32.mrf.mxu0
    %v2501 = vadd.f32 %v1500, %v2500
    %2502 = vdwg.mxu0
    %v2503 = vtanh.pop %v1617
    %v2504 = vtanh.pop %v1730
    %v2505 = vtanh.pop %v1843
    %v2506 = vtanh.pop %v1956
    %v2507 = vtanh.pop %v2069
    %v2508 = vtanh.pop %v2182
    %v2509 = vtanh.pop %v2295
    %v2510 = vtanh.pop %v2408
    %v2511 = vtanh.pop %v1620
    %v2512 = vtanh.pop %v1733
    %v2513 = vtanh.pop %v1846
    %v2514 = vtanh.pop %v1959
    %v2515 = vtanh.pop %v2072
    %v2516 = vtanh.pop %v2185
    %v2517 = vtanh.pop %v2298
    %v2518 = vtanh.pop %v2411
    %v2519 = vtanh.pop %v1623
    %v2520 = vtanh.pop %v1736
    %v2521 = vtanh.pop %v1849
    %v2522 = vtanh.pop %v1962
    %v2523 = vtanh.pop %v2075
    %v2524 = vtanh.pop %v2188
    %v2525 = vtanh.pop %v2301
    %v2526 = vtanh.pop %v2414
    %v2527 = vtanh.pop %v1626
    %v2528 = vtanh.pop %v1739
    %v2529 = vtanh.pop %v1852
    %v2530 = vtanh.pop %v1965
    %v2531 = vtanh.pop %v2078
    %v2532 = vtanh.pop %v2191
    %v2533 = vtanh.pop %v2304
    %v2534 = vtanh.pop %v2417
    %v2535 = vtanh.pop %v1629
    %v2536 = vtanh.pop %v1742
    %v2537 = vtanh.pop %v1855
    %v2538 = vtanh.pop %v1968
    %v2539 = vtanh.pop %v2081
    %v2540 = vtanh.pop %v2194
    %v2541 = vtanh.pop %v2307
    %v2542 = vtanh.pop %v2420
    %v2543 = vtanh.pop %v1632
    %v2544 = vtanh.pop %v1745
    %v2545 = vtanh.pop %v1858
    %v2546 = vtanh.pop %v1971
    %v2547 = vtanh.pop %v2084
    %v2548 = vtanh.pop %v2197
    %v2549 = vtanh.pop %v2310
    %v2550 = vtanh.pop %v2423
    %v2551 = vtanh.pop %v1635
    %v2552 = vtanh.pop %v1748
    %v2553 = vtanh.pop %v1861
    %v2554 = vtanh.pop %v1974
    %v2555 = vtanh.pop %v2087
    %v2556 = vtanh.pop %v2200
    %v2557 = vtanh.pop %v2313
    %v2558 = vtanh.pop %v2426
    %v2559 = vtanh.pop %v1638
    %v2560 = vtanh.pop %v1751
    %v2561 = vtanh.pop %v1864
    %v2562 = vtanh.pop %v1977
    %v2563 = vtanh.pop %v2090
    %v2564 = vtanh.pop %v2203
    %v2565 = vtanh.pop %v2316
    %v2566 = vtanh.pop %v2429
    %v2567 = vtanh.pop %v1641
    %v2568 = vtanh.pop %v1754
    %v2569 = vtanh.pop %v1867
    %v2570 = vtanh.pop %v1980
    %v2571 = vtanh.pop %v2093
    %v2572 = vtanh.pop %v2206
    %v2573 = vtanh.pop %v2319
    %v2574 = vtanh.pop %v2432
    %v2575 = vtanh.pop %v1644
    %v2576 = vtanh.pop %v1757
    %v2577 = vtanh.pop %v1870
    %v2578 = vtanh.pop %v1983
    %v2579 = vtanh.pop %v2096
    %v2580 = vtanh.pop %v2209
    %v2581 = vtanh.pop %v2322
    %v2582 = vtanh.pop %v2435
    %v2583 = vtanh.pop %v1647
    %v2584 = vtanh.pop %v1760
    %v2585 = vtanh.pop %v1873
    %v2586 = vtanh.pop %v1986
    %v2587 = vtanh.pop %v2099
    %v2588 = vtanh.pop %v2212
    %v2589 = vtanh.pop %v2325
    %v2590 = vtanh.pop %v2438
    %v2591 = vtanh.pop %v1650
    %v2592 = vtanh.pop %v1763
    %v2593 = vtanh.pop %v1876
    %v2594 = vtanh.pop %v1989
    %v2595 = vtanh.pop %v2102
    %v2596 = vtanh.pop %v2215
    %v2597 = vtanh.pop %v2328
    %v2598 = vtanh.pop %v2441
    %v2599 = vtanh.pop %v1653
    %v2600 = vtanh.pop %v1766
    %v2601 = vtanh.pop %v1879
    %v2602 = vtanh.pop %v1992
    %v2603 = vtanh.pop %v2105
    %v2604 = vtanh.pop %v2218
    %v2605 = vtanh.pop %v2331
    %v2606 = vtanh.pop %v2444
    %v2607 = vtanh.pop %v1656
    %v2608 = vtanh.pop %v1769
    %v2609 = vtanh.pop %v1882
    %v2610 = vtanh.pop %v1995
    %v2611 = vtanh.pop %v2108
    %v2612 = vtanh.pop %v2221
    %v2613 = vtanh.pop %v2334
    %v2614 = vtanh.pop %v2447
    %v2615 = vtanh.pop %v1659
    %v2616 = vtanh.pop %v1772
    %v2617 = vtanh.pop %v1885
    %v2618 = vtanh.pop %v1998
    %v2619 = vtanh.pop %v2111
    %v2620 = vtanh.pop %v2224
    %v2621 = vtanh.pop %v2337
    %v2622 = vtanh.pop %v2450
    %v2623 = vtanh.pop %v1662
    %v2624 = vtanh.pop %v1775
    %v2625 = vtanh.pop %v1888
    %v2626 = vtanh.pop %v2001
    %v2627 = vtanh.pop %v2114
    %v2628 = vtanh.pop %v2227
    %v2629 = vtanh.pop %v2340
    %v2630 = vtanh.pop %v2453
    %v2631 = vtanh.pop %v1665
    %v2632 = vtanh.pop %v1778
    %v2633 = vtanh.pop %v1891
    %v2634 = vtanh.pop %v2004
    %v2635 = vtanh.pop %v2117
    %v2636 = vtanh.pop %v2230
    %v2637 = vtanh.pop %v2343
    %v2638 = vtanh.pop %v2456
    %v2639 = vtanh.pop %v1668
    %v2640 = vtanh.pop %v1781
    %v2641 = vtanh.pop %v1894
    %v2642 = vtanh.pop %v2007
    %v2643 = vtanh.pop %v2120
    %v2644 = vtanh.pop %v2233
    %v2645 = vtanh.pop %v2346
    %v2646 = vtanh.pop %v2459
    %v2647 = vtanh.pop %v1671
    %v2648 = vtanh.pop %v1784
    %v2649 = vtanh.pop %v1897
    %v2650 = vtanh.pop %v2010
    %v2651 = vtanh.pop %v2123
    %v2652 = vtanh.pop %v2236
    %v2653 = vtanh.pop %v2349
    %v2654 = vtanh.pop %v2462
    %v2655 = vtanh.pop %v1674
    %v2656 = vtanh.pop %v1787
    %v2657 = vtanh.pop %v1900
    %v2658 = vtanh.pop %v2013
    %v2659 = vtanh.pop %v2126
    %v2660 = vtanh.pop %v2239
    %v2661 = vtanh.pop %v2352
    %v2662 = vtanh.pop %v2465
    %v2663 = vtanh.pop %v1677
    %v2664 = vtanh.pop %v1790
    %v2665 = vtanh.pop %v1903
    %v2666 = vtanh.pop %v2016
    %v2667 = vtanh.pop %v2129
    %v2668 = vtanh.pop %v2242
    %v2669 = vtanh.pop %v2355
    %v2670 = vtanh.pop %v2468
    %v2671 = vtanh.pop %v1680
    %v2672 = vtanh.pop %v1793
    %v2673 = vtanh.pop %v1906
    %v2674 = vtanh.pop %v2019
    %v2675 = vtanh.pop %v2132
    %v2676 = vtanh.pop %v2245
    %v2677 = vtanh.pop %v2358
    %v2678 = vtanh.pop %v2471
    %v2679 = vtanh.pop %v1683
    %v2680 = vtanh.pop %v1796
    %v2681 = vtanh.pop %v1909
    %v2682 = vtanh.pop %v2022
    %v2683 = vtanh.pop %v2135
    %v2684 = vtanh.pop %v2248
    %v2685 = vtanh.pop %v2361
    %v2686 = vtanh.pop %v2474
    %v2687 = vtanh.pop %v1686
    %v2688 = vtanh.pop %v1799
    %v2689 = vtanh.pop %v1912
    %v2690 = vtanh.pop %v2025
    %v2691 = vtanh.pop %v2138
    %v2692 = vtanh.pop %v2251
    %v2693 = vtanh.pop %v2364
    %v2694 = vtanh.pop %v2477
    %v2695 = vtanh.pop %v1689
    %v2696 = vtanh.pop %v1802
    %v2697 = vtanh.pop %v1915
    %v2698 = vtanh.pop %v2028
    %v2699 = vtanh.pop %v2141
    %v2700 = vtanh.pop %v2254
    %v2701 = vtanh.pop %v2367
    %v2702 = vtanh.pop %v2480
    %v2703 = vtanh.pop %v1692
    %v2704 = vtanh.pop %v1805
    %v2705 = vtanh.pop %v1918
    %v2706 = vtanh.pop %v2031
    %v2707 = vtanh.pop %v2144
    %v2708 = vtanh.pop %v2257
    %v2709 = vtanh.pop %v2370
    %v2710 = vtanh.pop %v2483
    %v2711 = vtanh.pop %v1695
    %v2712 = vtanh.pop %v1808
    %v2713 = vtanh.pop %v1921
    %v2714 = vtanh.pop %v2034
    %v2715 = vtanh.pop %v2147
    %v2716 = vtanh.pop %v2260
    %v2717 = vtanh.pop %v2373
    %v2718 = vtanh.pop %v2486
    %v2719 = vtanh.pop %v1698
    %v2720 = vtanh.pop %v1811
    %v2721 = vtanh.pop %v1924
    %v2722 = vtanh.pop %v2037
    %v2723 = vtanh.pop %v2150
    %v2724 = vtanh.pop %v2263
    %v2725 = vtanh.pop %v2376
    %v2726 = vtanh.pop %v2489
    %v2727 = vtanh.pop %v1701
    %v2728 = vtanh.pop %v1814
    %v2729 = vtanh.pop %v1927
    %v2730 = vtanh.pop %v2040
    %v2731 = vtanh.pop %v2153
    %v2732 = vtanh.pop %v2266
    %v2733 = vtanh.pop %v2379
    %v2734 = vtanh.pop %v2492
    %v2735 = vtanh.pop %v1704
    %v2736 = vtanh.pop %v1817
    %v2737 = vtanh.pop %v1930
    %v2738 = vtanh.pop %v2043
    %v2739 = vtanh.pop %v2156
    %v2740 = vtanh.pop %v2269
    %v2741 = vtanh.pop %v2382
    %v2742 = vtanh.pop %v2495
    %v2743 = vtanh.pop %v1707
    %v2744 = vtanh.pop %v1820
    %v2745 = vtanh.pop %v1933
    %v2746 = vtanh.pop %v2046
    %v2747 = vtanh.pop %v2159
    %v2748 = vtanh.pop %v2272
    %v2749 = vtanh.pop %v2385
    %v2750 = vtanh.pop %v2498
    %v2751 = vtanh.pop %v1710
    %v2752 = vtanh.pop %v1823
    %v2753 = vtanh.pop %v1936
    %v2754 = vtanh.pop %v2049
    %v2755 = vtanh.pop %v2162
    %v2756 = vtanh.pop %v2275
    %v2757 = vtanh.pop %v2388
    %v2758 = vtanh.pop %v2501
    %v2759 = vld [vmem:[%s4] sm:$0xff]
    %v2760 = vld [vmem:[%s4 + $0x8] sm:$0xff]
    %v2761 = vld [vmem:[%s4 + $0x10] sm:$0xff]
    %v2762 = vld [vmem:[%s4 + $0x18] sm:$0xff]
    %v2763 = vld [vmem:[%s4 + $0x20] sm:$0xff]
    %v2764 = vld [vmem:[%s4 + $0x28] sm:$0xff]
    %v2765 = vld [vmem:[%s4 + $0x30] sm:$0xff]
    %v2766 = vld [vmem:[%s4 + $0x38] sm:$0xff]
    %v2767 = vld [vmem:[%s4 + $0x40] sm:$0xff]
    %v2768 = vld [vmem:[%s4 + $0x48] sm:$0xff]
    %v2769 = vld [vmem:[%s4 + $0x50] sm:$0xff]
    %v2770 = vld [vmem:[%s4 + $0x58] sm:$0xff]
    %v2771 = vld [vmem:[%s4 + $0x60] sm:$0xff]
    %v2772 = vld [vmem:[%s4 + $0x68] sm:$0xff]
    %v2773 = vld [vmem:[%s4 + $0x70] sm:$0xff]
    %v2774 = vld [vmem:[%s4 + $0x78] sm:$0xff]
    %v2775 = vld [vmem:[%s4 + $0x80] sm:$0xff]
    %v2776 = vld [vmem:[%s4 + $0x88] sm:$0xff]
    %v2777 = vld [vmem:[%s4 + $0x90] sm:$0xff]
    %v2778 = vld [vmem:[%s4 + $0x98] sm:$0xff]
    %v2779 = vld [vmem:[%s4 + $0xa0] sm:$0xff]
    %v2780 = vld [vmem:[%s4 + $0xa8] sm:$0xff]
    %v2781 = vld [vmem:[%s4 + $0xb0] sm:$0xff]
    %v2782 = vld [vmem:[%s4 + $0xb8] sm:$0xff]
    %v2783 = vld [vmem:[%s4 + $0xc0] sm:$0xff]
    %v2784 = vld [vmem:[%s4 + $0xc8] sm:$0xff]
    %v2785 = vld [vmem:[%s4 + $0xd0] sm:$0xff]
    %v2786 = vld [vmem:[%s4 + $0xd8] sm:$0xff]
    %v2787 = vld [vmem:[%s4 + $0xe0] sm:$0xff]
    %v2788 = vld [vmem:[%s4 + $0xe8] sm:$0xff]
    %v2789 = vld [vmem:[%s4 + $0xf0] sm:$0xff]
    %v2790 = vld [vmem:[%s4 + $0xf8] sm:$0xff]
    %v2791 = vld [vmem:[%s4 + $0x100] sm:$0xff]
    %v2792 = vld [vmem:[%s4 + $0x108] sm:$0xff]
    %v2793 = vld [vmem:[%s4 + $0x110] sm:$0xff]
    %v2794 = vld [vmem:[%s4 + $0x118] sm:$0xff]
    %v2795 = vld [vmem:[%s4 + $0x120] sm:$0xff]
    %v2796 = vld [vmem:[%s4 + $0x128] sm:$0xff]
    %v2797 = vld [vmem:[%s4 + $0x130] sm:$0xff]
    %v2798 = vld [vmem:[%s4 + $0x138] sm:$0xff]
    %v2799 = vld [vmem:[%s4 + $0x140] sm:$0xff]
    %v2800 = vld [vmem:[%s4 + $0x148] sm:$0xff]
    %v2801 = vld [vmem:[%s4 + $0x150] sm:$0xff]
    %v2802 = vld [vmem:[%s4 + $0x158] sm:$0xff]
    %v2803 = vld [vmem:[%s4 + $0x160] sm:$0xff]
    %v2804 = vld [vmem:[%s4 + $0x168] sm:$0xff]
    %v2805 = vld [vmem:[%s4 + $0x170] sm:$0xff]
    %v2806 = vld [vmem:[%s4 + $0x178] sm:$0xff]
    %v2807 = vld [vmem:[%s4 + $0x180] sm:$0xff]
    %v2808 = vld [vmem:[%s4 + $0x188] sm:$0xff]
    %v2809 = vld [vmem:[%s4 + $0x190] sm:$0xff]
    %v2810 = vld [vmem:[%s4 + $0x198] sm:$0xff]
    %v2811 = vld [vmem:[%s4 + $0x1a0] sm:$0xff]
    %v2812 = vld [vmem:[%s4 + $0x1a8] sm:$0xff]
    %v2813 = vld [vmem:[%s4 + $0x1b0] sm:$0xff]
    %v2814 = vld [vmem:[%s4 + $0x1b8] sm:$0xff]
    %v2815 = vld [vmem:[%s4 + $0x1c0] sm:$0xff]
    %v2816 = vld [vmem:[%s4 + $0x1c8] sm:$0xff]
    %v2817 = vld [vmem:[%s4 + $0x1d0] sm:$0xff]
    %v2818 = vld [vmem:[%s4 + $0x1d8] sm:$0xff]
    %v2819 = vld [vmem:[%s4 + $0x1e0] sm:$0xff]
    %v2820 = vld [vmem:[%s4 + $0x1e8] sm:$0xff]
    %v2821 = vld [vmem:[%s4 + $0x1f0] sm:$0xff]
    %v2822 = vld [vmem:[%s4 + $0x1f8] sm:$0xff]
    %v2823 = vld [vmem:[%s5] sm:$0xff]
    %v2824 = vld [vmem:[%s5 + $0x8] sm:$0xff]
    %v2825 = vld [vmem:[%s5 + $0x10] sm:$0xff]
    %v2826 = vld [vmem:[%s5 + $0x18] sm:$0xff]
    %v2827 = vld [vmem:[%s5 + $0x20] sm:$0xff]
    %v2828 = vld [vmem:[%s5 + $0x28] sm:$0xff]
    %v2829 = vld [vmem:[%s5 + $0x30] sm:$0xff]
    %v2830 = vld [vmem:[%s5 + $0x38] sm:$0xff]
    %v2831 = vld [vmem:[%s5 + $0x40] sm:$0xff]
    %v2832 = vld [vmem:[%s5 + $0x48] sm:$0xff]
    %v2833 = vld [vmem:[%s5 + $0x50] sm:$0xff]
    %v2834 = vld [vmem:[%s5 + $0x58] sm:$0xff]
    %v2835 = vld [vmem:[%s5 + $0x60] sm:$0xff]
    %v2836 = vld [vmem:[%s5 + $0x68] sm:$0xff]
    %v2837 = vld [vmem:[%s5 + $0x70] sm:$0xff]
    %v2838 = vld [vmem:[%s5 + $0x78] sm:$0xff]
    %v2839 = vld [vmem:[%s5 + $0x80] sm:$0xff]
    %v2840 = vld [vmem:[%s5 + $0x88] sm:$0xff]
    %v2841 = vld [vmem:[%s5 + $0x90] sm:$0xff]
    %v2842 = vld [vmem:[%s5 + $0x98] sm:$0xff]
    %v2843 = vld [vmem:[%s5 + $0xa0] sm:$0xff]
    %v2844 = vld [vmem:[%s5 + $0xa8] sm:$0xff]
    %v2845 = vld [vmem:[%s5 + $0xb0] sm:$0xff]
    %v2846 = vld [vmem:[%s5 + $0xb8] sm:$0xff]
    %v2847 = vld [vmem:[%s5 + $0xc0] sm:$0xff]
    %v2848 = vld [vmem:[%s5 + $0xc8] sm:$0xff]
    %v2849 = vld [vmem:[%s5 + $0xd0] sm:$0xff]
    %v2850 = vld [vmem:[%s5 + $0xd8] sm:$0xff]
    %v2851 = vld [vmem:[%s5 + $0xe0] sm:$0xff]
    %v2852 = vld [vmem:[%s5 + $0xe8] sm:$0xff]
    %v2853 = vld [vmem:[%s5 + $0xf0] sm:$0xff]
    %v2854 = vld [vmem:[%s5 + $0xf8] sm:$0xff]
    %2856 = vset.pattern.permute.xlu0 0
    %2857 = vperm.xlu0 %2856, %v2823
    %v2858 = vpop.permute.xlu0 %2857
    %2861 = vset.pattern.permute.xlu0 0
    %2862 = vperm.xlu0 %2861, %v2824
    %v2863 = vpop.permute.xlu0 %2862
    %2866 = vset.pattern.permute.xlu0 0
    %2867 = vperm.xlu0 %2866, %v2825
    %v2868 = vpop.permute.xlu0 %2867
    %2871 = vset.pattern.permute.xlu0 0
    %2872 = vperm.xlu0 %2871, %v2826
    %v2873 = vpop.permute.xlu0 %2872
    %2876 = vset.pattern.permute.xlu0 0
    %2877 = vperm.xlu0 %2876, %v2827
    %v2878 = vpop.permute.xlu0 %2877
    %2881 = vset.pattern.permute.xlu0 0
    %2882 = vperm.xlu0 %2881, %v2828
    %v2883 = vpop.permute.xlu0 %2882
    %2886 = vset.pattern.permute.xlu0 0
    %2887 = vperm.xlu0 %2886, %v2829
    %v2888 = vpop.permute.xlu0 %2887
    %2891 = vset.pattern.permute.xlu0 0
    %2892 = vperm.xlu0 %2891, %v2830
    %v2893 = vpop.permute.xlu0 %2892
    %2896 = vset.pattern.permute.xlu0 0
    %2897 = vperm.xlu0 %2896, %v2831
    %v2898 = vpop.permute.xlu0 %2897
    %2901 = vset.pattern.permute.xlu0 0
    %2902 = vperm.xlu0 %2901, %v2832
    %v2903 = vpop.permute.xlu0 %2902
    %2906 = vset.pattern.permute.xlu0 0
    %2907 = vperm.xlu0 %2906, %v2833
    %v2908 = vpop.permute.xlu0 %2907
    %2911 = vset.pattern.permute.xlu0 0
    %2912 = vperm.xlu0 %2911, %v2834
    %v2913 = vpop.permute.xlu0 %2912
    %2916 = vset.pattern.permute.xlu0 0
    %2917 = vperm.xlu0 %2916, %v2835
    %v2918 = vpop.permute.xlu0 %2917
    %2921 = vset.pattern.permute.xlu0 0
    %2922 = vperm.xlu0 %2921, %v2836
    %v2923 = vpop.permute.xlu0 %2922
    %2926 = vset.pattern.permute.xlu0 0
    %2927 = vperm.xlu0 %2926, %v2837
    %v2928 = vpop.permute.xlu0 %2927
    %2931 = vset.pattern.permute.xlu0 0
    %2932 = vperm.xlu0 %2931, %v2838
    %v2933 = vpop.permute.xlu0 %2932
    %2936 = vset.pattern.permute.xlu0 0
    %2937 = vperm.xlu0 %2936, %v2839
    %v2938 = vpop.permute.xlu0 %2937
    %2941 = vset.pattern.permute.xlu0 0
    %2942 = vperm.xlu0 %2941, %v2840
    %v2943 = vpop.permute.xlu0 %2942
    %2946 = vset.pattern.permute.xlu0 0
    %2947 = vperm.xlu0 %2946, %v2841
    %v2948 = vpop.permute.xlu0 %2947
    %2951 = vset.pattern.permute.xlu0 0
    %2952 = vperm.xlu0 %2951, %v2842
    %v2953 = vpop.permute.xlu0 %2952
    %2956 = vset.pattern.permute.xlu0 0
    %2957 = vperm.xlu0 %2956, %v2843
    %v2958 = vpop.permute.xlu0 %2957
    %2961 = vset.pattern.permute.xlu0 0
    %2962 = vperm.xlu0 %2961, %v2844
    %v2963 = vpop.permute.xlu0 %2962
    %2966 = vset.pattern.permute.xlu0 0
    %2967 = vperm.xlu0 %2966, %v2845
    %v2968 = vpop.permute.xlu0 %2967
    %2971 = vset.pattern.permute.xlu0 0
    %2972 = vperm.xlu0 %2971, %v2846
    %v2973 = vpop.permute.xlu0 %2972
    %2976 = vset.pattern.permute.xlu0 0
    %2977 = vperm.xlu0 %2976, %v2847
    %v2978 = vpop.permute.xlu0 %2977
    %2981 = vset.pattern.permute.xlu0 0
    %2982 = vperm.xlu0 %2981, %v2848
    %v2983 = vpop.permute.xlu0 %2982
    %2986 = vset.pattern.permute.xlu0 0
    %2987 = vperm.xlu0 %2986, %v2849
    %v2988 = vpop.permute.xlu0 %2987
    %2991 = vset.pattern.permute.xlu0 0
    %2992 = vperm.xlu0 %2991, %v2850
    %v2993 = vpop.permute.xlu0 %2992
    %2996 = vset.pattern.permute.xlu0 0
    %2997 = vperm.xlu0 %2996, %v2851
    %v2998 = vpop.permute.xlu0 %2997
    %3001 = vset.pattern.permute.xlu0 0
    %3002 = vperm.xlu0 %3001, %v2852
    %v3003 = vpop.permute.xlu0 %3002
    %3006 = vset.pattern.permute.xlu0 0
    %3007 = vperm.xlu0 %3006, %v2853
    %v3008 = vpop.permute.xlu0 %3007
    %3011 = vset.pattern.permute.xlu0 0
    %3012 = vperm.xlu0 %3011, %v2854
    %v3013 = vpop.permute.xlu0 %3012
    %3015 = vmatpush.msra.mxu0 %v2623
    %3016 = vmatpush.msra.mxu0 %v2615
    %3017 = vmatpush.msra.mxu0 %v2607
    %3018 = vmatpush.msra.mxu0 %v2599
    %3019 = vmatpush.msra.mxu0 %v2591
    %3020 = vmatpush.msra.mxu0 %v2583
    %3021 = vmatpush.msra.mxu0 %v2575
    %3022 = vmatpush.msra.mxu0 %v2567
    %3023 = vmatpush.msra.mxu0 %v2559
    %3024 = vmatpush.msra.mxu0 %v2551
    %3025 = vmatpush.msra.mxu0 %v2543
    %3026 = vmatpush.msra.mxu0 %v2535
    %3027 = vmatpush.msra.mxu0 %v2527
    %3028 = vmatpush.msra.mxu0 %v2519
    %3029 = vmatpush.msra.mxu0 %v2511
    %3030 = vmatpush.msra.mxu0 %v2503
    %3031 = vmatmul.f32.gmra.mxu0 %v2759
    %v3032 = vpop.f32.mrf.mxu0
    %v3033 = vadd.f32 %v2858, %v3032
    %3034 = vmatmul.f32.gmra.mxu0 %v2761
    %v3035 = vpop.f32.mrf.mxu0
    %v3036 = vadd.f32 %v2863, %v3035
    %3037 = vmatmul.f32.gmra.mxu0 %v2763
    %v3038 = vpop.f32.mrf.mxu0
    %v3039 = vadd.f32 %v2868, %v3038
    %3040 = vmatmul.f32.gmra.mxu0 %v2765
    %v3041 = vpop.f32.mrf.mxu0
    %v3042 = vadd.f32 %v2873, %v3041
    %3043 = vmatmul.f32.gmra.mxu0 %v2767
    %v3044 = vpop.f32.mrf.mxu0
    %v3045 = vadd.f32 %v2878, %v3044
    %3046 = vmatmul.f32.gmra.mxu0 %v2769
    %v3047 = vpop.f32.mrf.mxu0
    %v3048 = vadd.f32 %v2883, %v3047
    %3049 = vmatmul.f32.gmra.mxu0 %v2771
    %v3050 = vpop.f32.mrf.mxu0
    %v3051 = vadd.f32 %v2888, %v3050
    %3052 = vmatmul.f32.gmra.mxu0 %v2773
    %v3053 = vpop.f32.mrf.mxu0
    %v3054 = vadd.f32 %v2893, %v3053
    %3055 = vmatmul.f32.gmra.mxu0 %v2775
    %v3056 = vpop.f32.mrf.mxu0
    %v3057 = vadd.f32 %v2898, %v3056
    %3058 = vmatmul.f32.gmra.mxu0 %v2777
    %v3059 = vpop.f32.mrf.mxu0
    %v3060 = vadd.f32 %v2903, %v3059
    %3061 = vmatmul.f32.gmra.mxu0 %v2779
    %v3062 = vpop.f32.mrf.mxu0
    %v3063 = vadd.f32 %v2908, %v3062
    %3064 = vmatmul.f32.gmra.mxu0 %v2781
    %v3065 = vpop.f32.mrf.mxu0
    %v3066 = vadd.f32 %v2913, %v3065
    %3067 = vmatmul.f32.gmra.mxu0 %v2783
    %v3068 = vpop.f32.mrf.mxu0
    %v3069 = vadd.f32 %v2918, %v3068
    %3070 = vmatmul.f32.gmra.mxu0 %v2785
    %v3071 = vpop.f32.mrf.mxu0
    %v3072 = vadd.f32 %v2923, %v3071
    %3073 = vmatmul.f32.gmra.mxu0 %v2787
    %v3074 = vpop.f32.mrf.mxu0
    %v3075 = vadd.f32 %v2928, %v3074
    %3076 = vmatmul.f32.gmra.mxu0 %v2789
    %v3077 = vpop.f32.mrf.mxu0
    %v3078 = vadd.f32 %v2933, %v3077
    %3079 = vmatmul.f32.gmra.mxu0 %v2791
    %v3080 = vpop.f32.mrf.mxu0
    %v3081 = vadd.f32 %v2938, %v3080
    %3082 = vmatmul.f32.gmra.mxu0 %v2793
    %v3083 = vpop.f32.mrf.mxu0
    %v3084 = vadd.f32 %v2943, %v3083
    %3085 = vmatmul.f32.gmra.mxu0 %v2795
    %v3086 = vpop.f32.mrf.mxu0
    %v3087 = vadd.f32 %v2948, %v3086
    %3088 = vmatmul.f32.gmra.mxu0 %v2797
    %v3089 = vpop.f32.mrf.mxu0
    %v3090 = vadd.f32 %v2953, %v3089
    %3091 = vmatmul.f32.gmra.mxu0 %v2799
    %v3092 = vpop.f32.mrf.mxu0
    %v3093 = vadd.f32 %v2958, %v3092
    %3094 = vmatmul.f32.gmra.mxu0 %v2801
    %v3095 = vpop.f32.mrf.mxu0
    %v3096 = vadd.f32 %v2963, %v3095
    %3097 = vmatmul.f32.gmra.mxu0 %v2803
    %v3098 = vpop.f32.mrf.mxu0
    %v3099 = vadd.f32 %v2968, %v3098
    %3100 = vmatmul.f32.gmra.mxu0 %v2805
    %v3101 = vpop.f32.mrf.mxu0
    %v3102 = vadd.f32 %v2973, %v3101
    %3103 = vmatmul.f32.gmra.mxu0 %v2807
    %v3104 = vpop.f32.mrf.mxu0
    %v3105 = vadd.f32 %v2978, %v3104
    %3106 = vmatmul.f32.gmra.mxu0 %v2809
    %v3107 = vpop.f32.mrf.mxu0
    %v3108 = vadd.f32 %v2983, %v3107
    %3109 = vmatmul.f32.gmra.mxu0 %v2811
    %v3110 = vpop.f32.mrf.mxu0
    %v3111 = vadd.f32 %v2988, %v3110
    %3112 = vmatmul.f32.gmra.mxu0 %v2813
    %v3113 = vpop.f32.mrf.mxu0
    %v3114 = vadd.f32 %v2993, %v3113
    %3115 = vmatmul.f32.gmra.mxu0 %v2815
    %v3116 = vpop.f32.mrf.mxu0
    %v3117 = vadd.f32 %v2998, %v3116
    %3118 = vmatmul.f32.gmra.mxu0 %v2817
    %v3119 = vpop.f32.mrf.mxu0
    %v3120 = vadd.f32 %v3003, %v3119
    %3121 = vmatmul.f32.gmra.mxu0 %v2819
    %v3122 = vpop.f32.mrf.mxu0
    %v3123 = vadd.f32 %v3008, %v3122
    %3124 = vmatmul.f32.gmra.mxu0 %v2821
    %v3125 = vpop.f32.mrf.mxu0
    %v3126 = vadd.f32 %v3013, %v3125
    %3127 = vdwg.mxu0
    %3128 = vmatpush.msra.mxu0 %v2751
    %3129 = vmatpush.msra.mxu0 %v2743
    %3130 = vmatpush.msra.mxu0 %v2735
    %3131 = vmatpush.msra.mxu0 %v2727
    %3132 = vmatpush.msra.mxu0 %v2719
    %3133 = vmatpush.msra.mxu0 %v2711
    %3134 = vmatpush.msra.mxu0 %v2703
    %3135 = vmatpush.msra.mxu0 %v2695
    %3136 = vmatpush.msra.mxu0 %v2687
    %3137 = vmatpush.msra.mxu0 %v2679
    %3138 = vmatpush.msra.mxu0 %v2671
    %3139 = vmatpush.msra.mxu0 %v2663
    %3140 = vmatpush.msra.mxu0 %v2655
    %3141 = vmatpush.msra.mxu0 %v2647
    %3142 = vmatpush.msra.mxu0 %v2639
    %3143 = vmatpush.msra.mxu0 %v2631
    %3144 = vmatmul.f32.gmra.mxu0 %v2760
    %v3145 = vpop.f32.mrf.mxu0
    %v3146 = vadd.f32 %v3033, %v3145
    %3147 = vmatmul.f32.gmra.mxu0 %v2762
    %v3148 = vpop.f32.mrf.mxu0
    %v3149 = vadd.f32 %v3036, %v3148
    %3150 = vmatmul.f32.gmra.mxu0 %v2764
    %v3151 = vpop.f32.mrf.mxu0
    %v3152 = vadd.f32 %v3039, %v3151
    %3153 = vmatmul.f32.gmra.mxu0 %v2766
    %v3154 = vpop.f32.mrf.mxu0
    %v3155 = vadd.f32 %v3042, %v3154
    %3156 = vmatmul.f32.gmra.mxu0 %v2768
    %v3157 = vpop.f32.mrf.mxu0
    %v3158 = vadd.f32 %v3045, %v3157
    %3159 = vmatmul.f32.gmra.mxu0 %v2770
    %v3160 = vpop.f32.mrf.mxu0
    %v3161 = vadd.f32 %v3048, %v3160
    %3162 = vmatmul.f32.gmra.mxu0 %v2772
    %v3163 = vpop.f32.mrf.mxu0
    %v3164 = vadd.f32 %v3051, %v3163
    %3165 = vmatmul.f32.gmra.mxu0 %v2774
    %v3166 = vpop.f32.mrf.mxu0
    %v3167 = vadd.f32 %v3054, %v3166
    %3168 = vmatmul.f32.gmra.mxu0 %v2776
    %v3169 = vpop.f32.mrf.mxu0
    %v3170 = vadd.f32 %v3057, %v3169
    %3171 = vmatmul.f32.gmra.mxu0 %v2778
    %v3172 = vpop.f32.mrf.mxu0
    %v3173 = vadd.f32 %v3060, %v3172
    %3174 = vmatmul.f32.gmra.mxu0 %v2780
    %v3175 = vpop.f32.mrf.mxu0
    %v3176 = vadd.f32 %v3063, %v3175
    %3177 = vmatmul.f32.gmra.mxu0 %v2782
    %v3178 = vpop.f32.mrf.mxu0
    %v3179 = vadd.f32 %v3066, %v3178
    %3180 = vmatmul.f32.gmra.mxu0 %v2784
    %v3181 = vpop.f32.mrf.mxu0
    %v3182 = vadd.f32 %v3069, %v3181
    %3183 = vmatmul.f32.gmra.mxu0 %v2786
    %v3184 = vpop.f32.mrf.mxu0
    %v3185 = vadd.f32 %v3072, %v3184
    %3186 = vmatmul.f32.gmra.mxu0 %v2788
    %v3187 = vpop.f32.mrf.mxu0
    %v3188 = vadd.f32 %v3075, %v3187
    %3189 = vmatmul.f32.gmra.mxu0 %v2790
    %v3190 = vpop.f32.mrf.mxu0
    %v3191 = vadd.f32 %v3078, %v3190
    %3192 = vmatmul.f32.gmra.mxu0 %v2792
    %v3193 = vpop.f32.mrf.mxu0
    %v3194 = vadd.f32 %v3081, %v3193
    %3195 = vmatmul.f32.gmra.mxu0 %v2794
    %v3196 = vpop.f32.mrf.mxu0
    %v3197 = vadd.f32 %v3084, %v3196
    %3198 = vmatmul.f32.gmra.mxu0 %v2796
    %v3199 = vpop.f32.mrf.mxu0
    %v3200 = vadd.f32 %v3087, %v3199
    %3201 = vmatmul.f32.gmra.mxu0 %v2798
    %v3202 = vpop.f32.mrf.mxu0
    %v3203 = vadd.f32 %v3090, %v3202
    %3204 = vmatmul.f32.gmra.mxu0 %v2800
    %v3205 = vpop.f32.mrf.mxu0
    %v3206 = vadd.f32 %v3093, %v3205
    %3207 = vmatmul.f32.gmra.mxu0 %v2802
    %v3208 = vpop.f32.mrf.mxu0
    %v3209 = vadd.f32 %v3096, %v3208
    %3210 = vmatmul.f32.gmra.mxu0 %v2804
    %v3211 = vpop.f32.mrf.mxu0
    %v3212 = vadd.f32 %v3099, %v3211
    %3213 = vmatmul.f32.gmra.mxu0 %v2806
    %v3214 = vpop.f32.mrf.mxu0
    %v3215 = vadd.f32 %v3102, %v3214
    %3216 = vmatmul.f32.gmra.mxu0 %v2808
    %v3217 = vpop.f32.mrf.mxu0
    %v3218 = vadd.f32 %v3105, %v3217
    %3219 = vmatmul.f32.gmra.mxu0 %v2810
    %v3220 = vpop.f32.mrf.mxu0
    %v3221 = vadd.f32 %v3108, %v3220
    %3222 = vmatmul.f32.gmra.mxu0 %v2812
    %v3223 = vpop.f32.mrf.mxu0
    %v3224 = vadd.f32 %v3111, %v3223
    %3225 = vmatmul.f32.gmra.mxu0 %v2814
    %v3226 = vpop.f32.mrf.mxu0
    %v3227 = vadd.f32 %v3114, %v3226
    %3228 = vmatmul.f32.gmra.mxu0 %v2816
    %v3229 = vpop.f32.mrf.mxu0
    %v3230 = vadd.f32 %v3117, %v3229
    %3231 = vmatmul.f32.gmra.mxu0 %v2818
    %v3232 = vpop.f32.mrf.mxu0
    %v3233 = vadd.f32 %v3120, %v3232
    %3234 = vmatmul.f32.gmra.mxu0 %v2820
    %v3235 = vpop.f32.mrf.mxu0
    %v3236 = vadd.f32 %v3123, %v3235
    %3237 = vmatmul.f32.gmra.mxu0 %v2822
    %v3238 = vpop.f32.mrf.mxu0
    %v3239 = vadd.f32 %v3126, %v3238
    %3240 = vdwg.mxu0
    %3241 = vmatpush.msra.mxu0 %v2624
    %3242 = vmatpush.msra.mxu0 %v2616
    %3243 = vmatpush.msra.mxu0 %v2608
    %3244 = vmatpush.msra.mxu0 %v2600
    %3245 = vmatpush.msra.mxu0 %v2592
    %3246 = vmatpush.msra.mxu0 %v2584
    %3247 = vmatpush.msra.mxu0 %v2576
    %3248 = vmatpush.msra.mxu0 %v2568
    %3249 = vmatpush.msra.mxu0 %v2560
    %3250 = vmatpush.msra.mxu0 %v2552
    %3251 = vmatpush.msra.mxu0 %v2544
    %3252 = vmatpush.msra.mxu0 %v2536
    %3253 = vmatpush.msra.mxu0 %v2528
    %3254 = vmatpush.msra.mxu0 %v2520
    %3255 = vmatpush.msra.mxu0 %v2512
    %3256 = vmatpush.msra.mxu0 %v2504
    %3257 = vmatmul.f32.gmra.mxu0 %v2759
    %v3258 = vpop.f32.mrf.mxu0
    %v3259 = vadd.f32 %v2858, %v3258
    %3260 = vmatmul.f32.gmra.mxu0 %v2761
    %v3261 = vpop.f32.mrf.mxu0
    %v3262 = vadd.f32 %v2863, %v3261
    %3263 = vmatmul.f32.gmra.mxu0 %v2763
    %v3264 = vpop.f32.mrf.mxu0
    %v3265 = vadd.f32 %v2868, %v3264
    %3266 = vmatmul.f32.gmra.mxu0 %v2765
    %v3267 = vpop.f32.mrf.mxu0
    %v3268 = vadd.f32 %v2873, %v3267
    %3269 = vmatmul.f32.gmra.mxu0 %v2767
    %v3270 = vpop.f32.mrf.mxu0
    %v3271 = vadd.f32 %v2878, %v3270
    %3272 = vmatmul.f32.gmra.mxu0 %v2769
    %v3273 = vpop.f32.mrf.mxu0
    %v3274 = vadd.f32 %v2883, %v3273
    %3275 = vmatmul.f32.gmra.mxu0 %v2771
    %v3276 = vpop.f32.mrf.mxu0
    %v3277 = vadd.f32 %v2888, %v3276
    %3278 = vmatmul.f32.gmra.mxu0 %v2773
    %v3279 = vpop.f32.mrf.mxu0
    %v3280 = vadd.f32 %v2893, %v3279
    %3281 = vmatmul.f32.gmra.mxu0 %v2775
    %v3282 = vpop.f32.mrf.mxu0
    %v3283 = vadd.f32 %v2898, %v3282
    %3284 = vmatmul.f32.gmra.mxu0 %v2777
    %v3285 = vpop.f32.mrf.mxu0
    %v3286 = vadd.f32 %v2903, %v3285
    %3287 = vmatmul.f32.gmra.mxu0 %v2779
    %v3288 = vpop.f32.mrf.mxu0
    %v3289 = vadd.f32 %v2908, %v3288
    %3290 = vmatmul.f32.gmra.mxu0 %v2781
    %v3291 = vpop.f32.mrf.mxu0
    %v3292 = vadd.f32 %v2913, %v3291
    %3293 = vmatmul.f32.gmra.mxu0 %v2783
    %v3294 = vpop.f32.mrf.mxu0
    %v3295 = vadd.f32 %v2918, %v3294
    %3296 = vmatmul.f32.gmra.mxu0 %v2785
    %v3297 = vpop.f32.mrf.mxu0
    %v3298 = vadd.f32 %v2923, %v3297
    %3299 = vmatmul.f32.gmra.mxu0 %v2787
    %v3300 = vpop.f32.mrf.mxu0
    %v3301 = vadd.f32 %v2928, %v3300
    %3302 = vmatmul.f32.gmra.mxu0 %v2789
    %v3303 = vpop.f32.mrf.mxu0
    %v3304 = vadd.f32 %v2933, %v3303
    %3305 = vmatmul.f32.gmra.mxu0 %v2791
    %v3306 = vpop.f32.mrf.mxu0
    %v3307 = vadd.f32 %v2938, %v3306
    %3308 = vmatmul.f32.gmra.mxu0 %v2793
    %v3309 = vpop.f32.mrf.mxu0
    %v3310 = vadd.f32 %v2943, %v3309
    %3311 = vmatmul.f32.gmra.mxu0 %v2795
    %v3312 = vpop.f32.mrf.mxu0
    %v3313 = vadd.f32 %v2948, %v3312
    %3314 = vmatmul.f32.gmra.mxu0 %v2797
    %v3315 = vpop.f32.mrf.mxu0
    %v3316 = vadd.f32 %v2953, %v3315
    %3317 = vmatmul.f32.gmra.mxu0 %v2799
    %v3318 = vpop.f32.mrf.mxu0
    %v3319 = vadd.f32 %v2958, %v3318
    %3320 = vmatmul.f32.gmra.mxu0 %v2801
    %v3321 = vpop.f32.mrf.mxu0
    %v3322 = vadd.f32 %v2963, %v3321
    %3323 = vmatmul.f32.gmra.mxu0 %v2803
    %v3324 = vpop.f32.mrf.mxu0
    %v3325 = vadd.f32 %v2968, %v3324
    %3326 = vmatmul.f32.gmra.mxu0 %v2805
    %v3327 = vpop.f32.mrf.mxu0
    %v3328 = vadd.f32 %v2973, %v3327
    %3329 = vmatmul.f32.gmra.mxu0 %v2807
    %v3330 = vpop.f32.mrf.mxu0
    %v3331 = vadd.f32 %v2978, %v3330
    %3332 = vmatmul.f32.gmra.mxu0 %v2809
    %v3333 = vpop.f32.mrf.mxu0
    %v3334 = vadd.f32 %v2983, %v3333
    %3335 = vmatmul.f32.gmra.mxu0 %v2811
    %v3336 = vpop.f32.mrf.mxu0
    %v3337 = vadd.f32 %v2988, %v3336
    %3338 = vmatmul.f32.gmra.mxu0 %v2813
    %v3339 = vpop.f32.mrf.mxu0
    %v3340 = vadd.f32 %v2993, %v3339
    %3341 = vmatmul.f32.gmra.mxu0 %v2815
    %v3342 = vpop.f32.mrf.mxu0
    %v3343 = vadd.f32 %v2998, %v3342
    %3344 = vmatmul.f32.gmra.mxu0 %v2817
    %v3345 = vpop.f32.mrf.mxu0
    %v3346 = vadd.f32 %v3003, %v3345
    %3347 = vmatmul.f32.gmra.mxu0 %v2819
    %v3348 = vpop.f32.mrf.mxu0
    %v3349 = vadd.f32 %v3008, %v3348
    %3350 = vmatmul.f32.gmra.mxu0 %v2821
    %v3351 = vpop.f32.mrf.mxu0
    %v3352 = vadd.f32 %v3013, %v3351
    %3353 = vdwg.mxu0
    %3354 = vmatpush.msra.mxu0 %v2752
    %3355 = vmatpush.msra.mxu0 %v2744
    %3356 = vmatpush.msra.mxu0 %v2736
    %3357 = vmatpush.msra.mxu0 %v2728
    %3358 = vmatpush.msra.mxu0 %v2720
    %3359 = vmatpush.msra.mxu0 %v2712
    %3360 = vmatpush.msra.mxu0 %v2704
    %3361 = vmatpush.msra.mxu0 %v2696
    %3362 = vmatpush.msra.mxu0 %v2688
    %3363 = vmatpush.msra.mxu0 %v2680
    %3364 = vmatpush.msra.mxu0 %v2672
    %3365 = vmatpush.msra.mxu0 %v2664
    %3366 = vmatpush.msra.mxu0 %v2656
    %3367 = vmatpush.msra.mxu0 %v2648
    %3368 = vmatpush.msra.mxu0 %v2640
    %3369 = vmatpush.msra.mxu0 %v2632
    %3370 = vmatmul.f32.gmra.mxu0 %v2760
    %v3371 = vpop.f32.mrf.mxu0
    %v3372 = vadd.f32 %v3259, %v3371
    %3373 = vmatmul.f32.gmra.mxu0 %v2762
    %v3374 = vpop.f32.mrf.mxu0
    %v3375 = vadd.f32 %v3262, %v3374
    %3376 = vmatmul.f32.gmra.mxu0 %v2764
    %v3377 = vpop.f32.mrf.mxu0
    %v3378 = vadd.f32 %v3265, %v3377
    %3379 = vmatmul.f32.gmra.mxu0 %v2766
    %v3380 = vpop.f32.mrf.mxu0
    %v3381 = vadd.f32 %v3268, %v3380
    %3382 = vmatmul.f32.gmra.mxu0 %v2768
    %v3383 = vpop.f32.mrf.mxu0
    %v3384 = vadd.f32 %v3271, %v3383
    %3385 = vmatmul.f32.gmra.mxu0 %v2770
    %v3386 = vpop.f32.mrf.mxu0
    %v3387 = vadd.f32 %v3274, %v3386
    %3388 = vmatmul.f32.gmra.mxu0 %v2772
    %v3389 = vpop.f32.mrf.mxu0
    %v3390 = vadd.f32 %v3277, %v3389
    %3391 = vmatmul.f32.gmra.mxu0 %v2774
    %v3392 = vpop.f32.mrf.mxu0
    %v3393 = vadd.f32 %v3280, %v3392
    %3394 = vmatmul.f32.gmra.mxu0 %v2776
    %v3395 = vpop.f32.mrf.mxu0
    %v3396 = vadd.f32 %v3283, %v3395
    %3397 = vmatmul.f32.gmra.mxu0 %v2778
    %v3398 = vpop.f32.mrf.mxu0
    %v3399 = vadd.f32 %v3286, %v3398
    %3400 = vmatmul.f32.gmra.mxu0 %v2780
    %v3401 = vpop.f32.mrf.mxu0
    %v3402 = vadd.f32 %v3289, %v3401
    %3403 = vmatmul.f32.gmra.mxu0 %v2782
    %v3404 = vpop.f32.mrf.mxu0
    %v3405 = vadd.f32 %v3292, %v3404
    %3406 = vmatmul.f32.gmra.mxu0 %v2784
    %v3407 = vpop.f32.mrf.mxu0
    %v3408 = vadd.f32 %v3295, %v3407
    %3409 = vmatmul.f32.gmra.mxu0 %v2786
    %v3410 = vpop.f32.mrf.mxu0
    %v3411 = vadd.f32 %v3298, %v3410
    %3412 = vmatmul.f32.gmra.mxu0 %v2788
    %v3413 = vpop.f32.mrf.mxu0
    %v3414 = vadd.f32 %v3301, %v3413
    %3415 = vmatmul.f32.gmra.mxu0 %v2790
    %v3416 = vpop.f32.mrf.mxu0
    %v3417 = vadd.f32 %v3304, %v3416
    %3418 = vmatmul.f32.gmra.mxu0 %v2792
    %v3419 = vpop.f32.mrf.mxu0
    %v3420 = vadd.f32 %v3307, %v3419
    %3421 = vmatmul.f32.gmra.mxu0 %v2794
    %v3422 = vpop.f32.mrf.mxu0
    %v3423 = vadd.f32 %v3310, %v3422
    %3424 = vmatmul.f32.gmra.mxu0 %v2796
    %v3425 = vpop.f32.mrf.mxu0
    %v3426 = vadd.f32 %v3313, %v3425
    %3427 = vmatmul.f32.gmra.mxu0 %v2798
    %v3428 = vpop.f32.mrf.mxu0
    %v3429 = vadd.f32 %v3316, %v3428
    %3430 = vmatmul.f32.gmra.mxu0 %v2800
    %v3431 = vpop.f32.mrf.mxu0
    %v3432 = vadd.f32 %v3319, %v3431
    %3433 = vmatmul.f32.gmra.mxu0 %v2802
    %v3434 = vpop.f32.mrf.mxu0
    %v3435 = vadd.f32 %v3322, %v3434
    %3436 = vmatmul.f32.gmra.mxu0 %v2804
    %v3437 = vpop.f32.mrf.mxu0
    %v3438 = vadd.f32 %v3325, %v3437
    %3439 = vmatmul.f32.gmra.mxu0 %v2806
    %v3440 = vpop.f32.mrf.mxu0
    %v3441 = vadd.f32 %v3328, %v3440
    %3442 = vmatmul.f32.gmra.mxu0 %v2808
    %v3443 = vpop.f32.mrf.mxu0
    %v3444 = vadd.f32 %v3331, %v3443
    %3445 = vmatmul.f32.gmra.mxu0 %v2810
    %v3446 = vpop.f32.mrf.mxu0
    %v3447 = vadd.f32 %v3334, %v3446
    %3448 = vmatmul.f32.gmra.mxu0 %v2812
    %v3449 = vpop.f32.mrf.mxu0
    %v3450 = vadd.f32 %v3337, %v3449
    %3451 = vmatmul.f32.gmra.mxu0 %v2814
    %v3452 = vpop.f32.mrf.mxu0
    %v3453 = vadd.f32 %v3340, %v3452
    %3454 = vmatmul.f32.gmra.mxu0 %v2816
    %v3455 = vpop.f32.mrf.mxu0
    %v3456 = vadd.f32 %v3343, %v3455
    %3457 = vmatmul.f32.gmra.mxu0 %v2818
    %v3458 = vpop.f32.mrf.mxu0
    %v3459 = vadd.f32 %v3346, %v3458
    %3460 = vmatmul.f32.gmra.mxu0 %v2820
    %v3461 = vpop.f32.mrf.mxu0
    %v3462 = vadd.f32 %v3349, %v3461
    %3463 = vmatmul.f32.gmra.mxu0 %v2822
    %v3464 = vpop.f32.mrf.mxu0
    %v3465 = vadd.f32 %v3352, %v3464
    %3466 = vdwg.mxu0
    %3467 = vmatpush.msra.mxu0 %v2625
    %3468 = vmatpush.msra.mxu0 %v2617
    %3469 = vmatpush.msra.mxu0 %v2609
    %3470 = vmatpush.msra.mxu0 %v2601
    %3471 = vmatpush.msra.mxu0 %v2593
    %3472 = vmatpush.msra.mxu0 %v2585
    %3473 = vmatpush.msra.mxu0 %v2577
    %3474 = vmatpush.msra.mxu0 %v2569
    %3475 = vmatpush.msra.mxu0 %v2561
    %3476 = vmatpush.msra.mxu0 %v2553
    %3477 = vmatpush.msra.mxu0 %v2545
    %3478 = vmatpush.msra.mxu0 %v2537
    %3479 = vmatpush.msra.mxu0 %v2529
    %3480 = vmatpush.msra.mxu0 %v2521
    %3481 = vmatpush.msra.mxu0 %v2513
    %3482 = vmatpush.msra.mxu0 %v2505
    %3483 = vmatmul.f32.gmra.mxu0 %v2759
    %v3484 = vpop.f32.mrf.mxu0
    %v3485 = vadd.f32 %v2858, %v3484
    %3486 = vmatmul.f32.gmra.mxu0 %v2761
    %v3487 = vpop.f32.mrf.mxu0
    %v3488 = vadd.f32 %v2863, %v3487
    %3489 = vmatmul.f32.gmra.mxu0 %v2763
    %v3490 = vpop.f32.mrf.mxu0
    %v3491 = vadd.f32 %v2868, %v3490
    %3492 = vmatmul.f32.gmra.mxu0 %v2765
    %v3493 = vpop.f32.mrf.mxu0
    %v3494 = vadd.f32 %v2873, %v3493
    %3495 = vmatmul.f32.gmra.mxu0 %v2767
    %v3496 = vpop.f32.mrf.mxu0
    %v3497 = vadd.f32 %v2878, %v3496
    %3498 = vmatmul.f32.gmra.mxu0 %v2769
    %v3499 = vpop.f32.mrf.mxu0
    %v3500 = vadd.f32 %v2883, %v3499
    %3501 = vmatmul.f32.gmra.mxu0 %v2771
    %v3502 = vpop.f32.mrf.mxu0
    %v3503 = vadd.f32 %v2888, %v3502
    %3504 = vmatmul.f32.gmra.mxu0 %v2773
    %v3505 = vpop.f32.mrf.mxu0
    %v3506 = vadd.f32 %v2893, %v3505
    %3507 = vmatmul.f32.gmra.mxu0 %v2775
    %v3508 = vpop.f32.mrf.mxu0
    %v3509 = vadd.f32 %v2898, %v3508
    %3510 = vmatmul.f32.gmra.mxu0 %v2777
    %v3511 = vpop.f32.mrf.mxu0
    %v3512 = vadd.f32 %v2903, %v3511
    %3513 = vmatmul.f32.gmra.mxu0 %v2779
    %v3514 = vpop.f32.mrf.mxu0
    %v3515 = vadd.f32 %v2908, %v3514
    %3516 = vmatmul.f32.gmra.mxu0 %v2781
    %v3517 = vpop.f32.mrf.mxu0
    %v3518 = vadd.f32 %v2913, %v3517
    %3519 = vmatmul.f32.gmra.mxu0 %v2783
    %v3520 = vpop.f32.mrf.mxu0
    %v3521 = vadd.f32 %v2918, %v3520
    %3522 = vmatmul.f32.gmra.mxu0 %v2785
    %v3523 = vpop.f32.mrf.mxu0
    %v3524 = vadd.f32 %v2923, %v3523
    %3525 = vmatmul.f32.gmra.mxu0 %v2787
    %v3526 = vpop.f32.mrf.mxu0
    %v3527 = vadd.f32 %v2928, %v3526
    %3528 = vmatmul.f32.gmra.mxu0 %v2789
    %v3529 = vpop.f32.mrf.mxu0
    %v3530 = vadd.f32 %v2933, %v3529
    %3531 = vmatmul.f32.gmra.mxu0 %v2791
    %v3532 = vpop.f32.mrf.mxu0
    %v3533 = vadd.f32 %v2938, %v3532
    %3534 = vmatmul.f32.gmra.mxu0 %v2793
    %v3535 = vpop.f32.mrf.mxu0
    %v3536 = vadd.f32 %v2943, %v3535
    %3537 = vmatmul.f32.gmra.mxu0 %v2795
    %v3538 = vpop.f32.mrf.mxu0
    %v3539 = vadd.f32 %v2948, %v3538
    %3540 = vmatmul.f32.gmra.mxu0 %v2797
    %v3541 = vpop.f32.mrf.mxu0
    %v3542 = vadd.f32 %v2953, %v3541
    %3543 = vmatmul.f32.gmra.mxu0 %v2799
    %v3544 = vpop.f32.mrf.mxu0
    %v3545 = vadd.f32 %v2958, %v3544
    %3546 = vmatmul.f32.gmra.mxu0 %v2801
    %v3547 = vpop.f32.mrf.mxu0
    %v3548 = vadd.f32 %v2963, %v3547
    %3549 = vmatmul.f32.gmra.mxu0 %v2803
    %v3550 = vpop.f32.mrf.mxu0
    %v3551 = vadd.f32 %v2968, %v3550
    %3552 = vmatmul.f32.gmra.mxu0 %v2805
    %v3553 = vpop.f32.mrf.mxu0
    %v3554 = vadd.f32 %v2973, %v3553
    %3555 = vmatmul.f32.gmra.mxu0 %v2807
    %v3556 = vpop.f32.mrf.mxu0
    %v3557 = vadd.f32 %v2978, %v3556
    %3558 = vmatmul.f32.gmra.mxu0 %v2809
    %v3559 = vpop.f32.mrf.mxu0
    %v3560 = vadd.f32 %v2983, %v3559
    %3561 = vmatmul.f32.gmra.mxu0 %v2811
    %v3562 = vpop.f32.mrf.mxu0
    %v3563 = vadd.f32 %v2988, %v3562
    %3564 = vmatmul.f32.gmra.mxu0 %v2813
    %v3565 = vpop.f32.mrf.mxu0
    %v3566 = vadd.f32 %v2993, %v3565
    %3567 = vmatmul.f32.gmra.mxu0 %v2815
    %v3568 = vpop.f32.mrf.mxu0
    %v3569 = vadd.f32 %v2998, %v3568
    %3570 = vmatmul.f32.gmra.mxu0 %v2817
    %v3571 = vpop.f32.mrf.mxu0
    %v3572 = vadd.f32 %v3003, %v3571
    %3573 = vmatmul.f32.gmra.mxu0 %v2819
    %v3574 = vpop.f32.mrf.mxu0
    %v3575 = vadd.f32 %v3008, %v3574
    %3576 = vmatmul.f32.gmra.mxu0 %v2821
    %v3577 = vpop.f32.mrf.mxu0
    %v3578 = vadd.f32 %v3013, %v3577
    %3579 = vdwg.mxu0
    %3580 = vmatpush.msra.mxu0 %v2753
    %3581 = vmatpush.msra.mxu0 %v2745
    %3582 = vmatpush.msra.mxu0 %v2737
    %3583 = vmatpush.msra.mxu0 %v2729
    %3584 = vmatpush.msra.mxu0 %v2721
    %3585 = vmatpush.msra.mxu0 %v2713
    %3586 = vmatpush.msra.mxu0 %v2705
    %3587 = vmatpush.msra.mxu0 %v2697
    %3588 = vmatpush.msra.mxu0 %v2689
    %3589 = vmatpush.msra.mxu0 %v2681
    %3590 = vmatpush.msra.mxu0 %v2673
    %3591 = vmatpush.msra.mxu0 %v2665
    %3592 = vmatpush.msra.mxu0 %v2657
    %3593 = vmatpush.msra.mxu0 %v2649
    %3594 = vmatpush.msra.mxu0 %v2641
    %3595 = vmatpush.msra.mxu0 %v2633
    %3596 = vmatmul.f32.gmra.mxu0 %v2760
    %v3597 = vpop.f32.mrf.mxu0
    %v3598 = vadd.f32 %v3485, %v3597
    %3599 = vmatmul.f32.gmra.mxu0 %v2762
    %v3600 = vpop.f32.mrf.mxu0
    %v3601 = vadd.f32 %v3488, %v3600
    %3602 = vmatmul.f32.gmra.mxu0 %v2764
    %v3603 = vpop.f32.mrf.mxu0
    %v3604 = vadd.f32 %v3491, %v3603
    %3605 = vmatmul.f32.gmra.mxu0 %v2766
    %v3606 = vpop.f32.mrf.mxu0
    %v3607 = vadd.f32 %v3494, %v3606
    %3608 = vmatmul.f32.gmra.mxu0 %v2768
    %v3609 = vpop.f32.mrf.mxu0
    %v3610 = vadd.f32 %v3497, %v3609
    %3611 = vmatmul.f32.gmra.mxu0 %v2770
    %v3612 = vpop.f32.mrf.mxu0
    %v3613 = vadd.f32 %v3500, %v3612
    %3614 = vmatmul.f32.gmra.mxu0 %v2772
    %v3615 = vpop.f32.mrf.mxu0
    %v3616 = vadd.f32 %v3503, %v3615
    %3617 = vmatmul.f32.gmra.mxu0 %v2774
    %v3618 = vpop.f32.mrf.mxu0
    %v3619 = vadd.f32 %v3506, %v3618
    %3620 = vmatmul.f32.gmra.mxu0 %v2776
    %v3621 = vpop.f32.mrf.mxu0
    %v3622 = vadd.f32 %v3509, %v3621
    %3623 = vmatmul.f32.gmra.mxu0 %v2778
    %v3624 = vpop.f32.mrf.mxu0
    %v3625 = vadd.f32 %v3512, %v3624
    %3626 = vmatmul.f32.gmra.mxu0 %v2780
    %v3627 = vpop.f32.mrf.mxu0
    %v3628 = vadd.f32 %v3515, %v3627
    %3629 = vmatmul.f32.gmra.mxu0 %v2782
    %v3630 = vpop.f32.mrf.mxu0
    %v3631 = vadd.f32 %v3518, %v3630
    %3632 = vmatmul.f32.gmra.mxu0 %v2784
    %v3633 = vpop.f32.mrf.mxu0
    %v3634 = vadd.f32 %v3521, %v3633
    %3635 = vmatmul.f32.gmra.mxu0 %v2786
    %v3636 = vpop.f32.mrf.mxu0
    %v3637 = vadd.f32 %v3524, %v3636
    %3638 = vmatmul.f32.gmra.mxu0 %v2788
    %v3639 = vpop.f32.mrf.mxu0
    %v3640 = vadd.f32 %v3527, %v3639
    %3641 = vmatmul.f32.gmra.mxu0 %v2790
    %v3642 = vpop.f32.mrf.mxu0
    %v3643 = vadd.f32 %v3530, %v3642
    %3644 = vmatmul.f32.gmra.mxu0 %v2792
    %v3645 = vpop.f32.mrf.mxu0
    %v3646 = vadd.f32 %v3533, %v3645
    %3647 = vmatmul.f32.gmra.mxu0 %v2794
    %v3648 = vpop.f32.mrf.mxu0
    %v3649 = vadd.f32 %v3536, %v3648
    %3650 = vmatmul.f32.gmra.mxu0 %v2796
    %v3651 = vpop.f32.mrf.mxu0
    %v3652 = vadd.f32 %v3539, %v3651
    %3653 = vmatmul.f32.gmra.mxu0 %v2798
    %v3654 = vpop.f32.mrf.mxu0
    %v3655 = vadd.f32 %v3542, %v3654
    %3656 = vmatmul.f32.gmra.mxu0 %v2800
    %v3657 = vpop.f32.mrf.mxu0
    %v3658 = vadd.f32 %v3545, %v3657
    %3659 = vmatmul.f32.gmra.mxu0 %v2802
    %v3660 = vpop.f32.mrf.mxu0
    %v3661 = vadd.f32 %v3548, %v3660
    %3662 = vmatmul.f32.gmra.mxu0 %v2804
    %v3663 = vpop.f32.mrf.mxu0
    %v3664 = vadd.f32 %v3551, %v3663
    %3665 = vmatmul.f32.gmra.mxu0 %v2806
    %v3666 = vpop.f32.mrf.mxu0
    %v3667 = vadd.f32 %v3554, %v3666
    %3668 = vmatmul.f32.gmra.mxu0 %v2808
    %v3669 = vpop.f32.mrf.mxu0
    %v3670 = vadd.f32 %v3557, %v3669
    %3671 = vmatmul.f32.gmra.mxu0 %v2810
    %v3672 = vpop.f32.mrf.mxu0
    %v3673 = vadd.f32 %v3560, %v3672
    %3674 = vmatmul.f32.gmra.mxu0 %v2812
    %v3675 = vpop.f32.mrf.mxu0
    %v3676 = vadd.f32 %v3563, %v3675
    %3677 = vmatmul.f32.gmra.mxu0 %v2814
    %v3678 = vpop.f32.mrf.mxu0
    %v3679 = vadd.f32 %v3566, %v3678
    %3680 = vmatmul.f32.gmra.mxu0 %v2816
    %v3681 = vpop.f32.mrf.mxu0
    %v3682 = vadd.f32 %v3569, %v3681
    %3683 = vmatmul.f32.gmra.mxu0 %v2818
    %v3684 = vpop.f32.mrf.mxu0
    %v3685 = vadd.f32 %v3572, %v3684
    %3686 = vmatmul.f32.gmra.mxu0 %v2820
    %v3687 = vpop.f32.mrf.mxu0
    %v3688 = vadd.f32 %v3575, %v3687
    %3689 = vmatmul.f32.gmra.mxu0 %v2822
    %v3690 = vpop.f32.mrf.mxu0
    %v3691 = vadd.f32 %v3578, %v3690
    %3692 = vdwg.mxu0
    %3693 = vmatpush.msra.mxu0 %v2626
    %3694 = vmatpush.msra.mxu0 %v2618
    %3695 = vmatpush.msra.mxu0 %v2610
    %3696 = vmatpush.msra.mxu0 %v2602
    %3697 = vmatpush.msra.mxu0 %v2594
    %3698 = vmatpush.msra.mxu0 %v2586
    %3699 = vmatpush.msra.mxu0 %v2578
    %3700 = vmatpush.msra.mxu0 %v2570
    %3701 = vmatpush.msra.mxu0 %v2562
    %3702 = vmatpush.msra.mxu0 %v2554
    %3703 = vmatpush.msra.mxu0 %v2546
    %3704 = vmatpush.msra.mxu0 %v2538
    %3705 = vmatpush.msra.mxu0 %v2530
    %3706 = vmatpush.msra.mxu0 %v2522
    %3707 = vmatpush.msra.mxu0 %v2514
    %3708 = vmatpush.msra.mxu0 %v2506
    %3709 = vmatmul.f32.gmra.mxu0 %v2759
    %v3710 = vpop.f32.mrf.mxu0
    %v3711 = vadd.f32 %v2858, %v3710
    %3712 = vmatmul.f32.gmra.mxu0 %v2761
    %v3713 = vpop.f32.mrf.mxu0
    %v3714 = vadd.f32 %v2863, %v3713
    %3715 = vmatmul.f32.gmra.mxu0 %v2763
    %v3716 = vpop.f32.mrf.mxu0
    %v3717 = vadd.f32 %v2868, %v3716
    %3718 = vmatmul.f32.gmra.mxu0 %v2765
    %v3719 = vpop.f32.mrf.mxu0
    %v3720 = vadd.f32 %v2873, %v3719
    %3721 = vmatmul.f32.gmra.mxu0 %v2767
    %v3722 = vpop.f32.mrf.mxu0
    %v3723 = vadd.f32 %v2878, %v3722
    %3724 = vmatmul.f32.gmra.mxu0 %v2769
    %v3725 = vpop.f32.mrf.mxu0
    %v3726 = vadd.f32 %v2883, %v3725
    %3727 = vmatmul.f32.gmra.mxu0 %v2771
    %v3728 = vpop.f32.mrf.mxu0
    %v3729 = vadd.f32 %v2888, %v3728
    %3730 = vmatmul.f32.gmra.mxu0 %v2773
    %v3731 = vpop.f32.mrf.mxu0
    %v3732 = vadd.f32 %v2893, %v3731
    %3733 = vmatmul.f32.gmra.mxu0 %v2775
    %v3734 = vpop.f32.mrf.mxu0
    %v3735 = vadd.f32 %v2898, %v3734
    %3736 = vmatmul.f32.gmra.mxu0 %v2777
    %v3737 = vpop.f32.mrf.mxu0
    %v3738 = vadd.f32 %v2903, %v3737
    %3739 = vmatmul.f32.gmra.mxu0 %v2779
    %v3740 = vpop.f32.mrf.mxu0
    %v3741 = vadd.f32 %v2908, %v3740
    %3742 = vmatmul.f32.gmra.mxu0 %v2781
    %v3743 = vpop.f32.mrf.mxu0
    %v3744 = vadd.f32 %v2913, %v3743
    %3745 = vmatmul.f32.gmra.mxu0 %v2783
    %v3746 = vpop.f32.mrf.mxu0
    %v3747 = vadd.f32 %v2918, %v3746
    %3748 = vmatmul.f32.gmra.mxu0 %v2785
    %v3749 = vpop.f32.mrf.mxu0
    %v3750 = vadd.f32 %v2923, %v3749
    %3751 = vmatmul.f32.gmra.mxu0 %v2787
    %v3752 = vpop.f32.mrf.mxu0
    %v3753 = vadd.f32 %v2928, %v3752
    %3754 = vmatmul.f32.gmra.mxu0 %v2789
    %v3755 = vpop.f32.mrf.mxu0
    %v3756 = vadd.f32 %v2933, %v3755
    %3757 = vmatmul.f32.gmra.mxu0 %v2791
    %v3758 = vpop.f32.mrf.mxu0
    %v3759 = vadd.f32 %v2938, %v3758
    %3760 = vmatmul.f32.gmra.mxu0 %v2793
    %v3761 = vpop.f32.mrf.mxu0
    %v3762 = vadd.f32 %v2943, %v3761
    %3763 = vmatmul.f32.gmra.mxu0 %v2795
    %v3764 = vpop.f32.mrf.mxu0
    %v3765 = vadd.f32 %v2948, %v3764
    %3766 = vmatmul.f32.gmra.mxu0 %v2797
    %v3767 = vpop.f32.mrf.mxu0
    %v3768 = vadd.f32 %v2953, %v3767
    %3769 = vmatmul.f32.gmra.mxu0 %v2799
    %v3770 = vpop.f32.mrf.mxu0
    %v3771 = vadd.f32 %v2958, %v3770
    %3772 = vmatmul.f32.gmra.mxu0 %v2801
    %v3773 = vpop.f32.mrf.mxu0
    %v3774 = vadd.f32 %v2963, %v3773
    %3775 = vmatmul.f32.gmra.mxu0 %v2803
    %v3776 = vpop.f32.mrf.mxu0
    %v3777 = vadd.f32 %v2968, %v3776
    %3778 = vmatmul.f32.gmra.mxu0 %v2805
    %v3779 = vpop.f32.mrf.mxu0
    %v3780 = vadd.f32 %v2973, %v3779
    %3781 = vmatmul.f32.gmra.mxu0 %v2807
    %v3782 = vpop.f32.mrf.mxu0
    %v3783 = vadd.f32 %v2978, %v3782
    %3784 = vmatmul.f32.gmra.mxu0 %v2809
    %v3785 = vpop.f32.mrf.mxu0
    %v3786 = vadd.f32 %v2983, %v3785
    %3787 = vmatmul.f32.gmra.mxu0 %v2811
    %v3788 = vpop.f32.mrf.mxu0
    %v3789 = vadd.f32 %v2988, %v3788
    %3790 = vmatmul.f32.gmra.mxu0 %v2813
    %v3791 = vpop.f32.mrf.mxu0
    %v3792 = vadd.f32 %v2993, %v3791
    %3793 = vmatmul.f32.gmra.mxu0 %v2815
    %v3794 = vpop.f32.mrf.mxu0
    %v3795 = vadd.f32 %v2998, %v3794
    %3796 = vmatmul.f32.gmra.mxu0 %v2817
    %v3797 = vpop.f32.mrf.mxu0
    %v3798 = vadd.f32 %v3003, %v3797
    %3799 = vmatmul.f32.gmra.mxu0 %v2819
    %v3800 = vpop.f32.mrf.mxu0
    %v3801 = vadd.f32 %v3008, %v3800
    %3802 = vmatmul.f32.gmra.mxu0 %v2821
    %v3803 = vpop.f32.mrf.mxu0
    %v3804 = vadd.f32 %v3013, %v3803
    %3805 = vdwg.mxu0
    %3806 = vmatpush.msra.mxu0 %v2754
    %3807 = vmatpush.msra.mxu0 %v2746
    %3808 = vmatpush.msra.mxu0 %v2738
    %3809 = vmatpush.msra.mxu0 %v2730
    %3810 = vmatpush.msra.mxu0 %v2722
    %3811 = vmatpush.msra.mxu0 %v2714
    %3812 = vmatpush.msra.mxu0 %v2706
    %3813 = vmatpush.msra.mxu0 %v2698
    %3814 = vmatpush.msra.mxu0 %v2690
    %3815 = vmatpush.msra.mxu0 %v2682
    %3816 = vmatpush.msra.mxu0 %v2674
    %3817 = vmatpush.msra.mxu0 %v2666
    %3818 = vmatpush.msra.mxu0 %v2658
    %3819 = vmatpush.msra.mxu0 %v2650
    %3820 = vmatpush.msra.mxu0 %v2642
    %3821 = vmatpush.msra.mxu0 %v2634
    %3822 = vmatmul.f32.gmra.mxu0 %v2760
    %v3823 = vpop.f32.mrf.mxu0
    %v3824 = vadd.f32 %v3711, %v3823
    %3825 = vmatmul.f32.gmra.mxu0 %v2762
    %v3826 = vpop.f32.mrf.mxu0
    %v3827 = vadd.f32 %v3714, %v3826
    %3828 = vmatmul.f32.gmra.mxu0 %v2764
    %v3829 = vpop.f32.mrf.mxu0
    %v3830 = vadd.f32 %v3717, %v3829
    %3831 = vmatmul.f32.gmra.mxu0 %v2766
    %v3832 = vpop.f32.mrf.mxu0
    %v3833 = vadd.f32 %v3720, %v3832
    %3834 = vmatmul.f32.gmra.mxu0 %v2768
    %v3835 = vpop.f32.mrf.mxu0
    %v3836 = vadd.f32 %v3723, %v3835
    %3837 = vmatmul.f32.gmra.mxu0 %v2770
    %v3838 = vpop.f32.mrf.mxu0
    %v3839 = vadd.f32 %v3726, %v3838
    %3840 = vmatmul.f32.gmra.mxu0 %v2772
    %v3841 = vpop.f32.mrf.mxu0
    %v3842 = vadd.f32 %v3729, %v3841
    %3843 = vmatmul.f32.gmra.mxu0 %v2774
    %v3844 = vpop.f32.mrf.mxu0
    %v3845 = vadd.f32 %v3732, %v3844
    %3846 = vmatmul.f32.gmra.mxu0 %v2776
    %v3847 = vpop.f32.mrf.mxu0
    %v3848 = vadd.f32 %v3735, %v3847
    %3849 = vmatmul.f32.gmra.mxu0 %v2778
    %v3850 = vpop.f32.mrf.mxu0
    %v3851 = vadd.f32 %v3738, %v3850
    %3852 = vmatmul.f32.gmra.mxu0 %v2780
    %v3853 = vpop.f32.mrf.mxu0
    %v3854 = vadd.f32 %v3741, %v3853
    %3855 = vmatmul.f32.gmra.mxu0 %v2782
    %v3856 = vpop.f32.mrf.mxu0
    %v3857 = vadd.f32 %v3744, %v3856
    %3858 = vmatmul.f32.gmra.mxu0 %v2784
    %v3859 = vpop.f32.mrf.mxu0
    %v3860 = vadd.f32 %v3747, %v3859
    %3861 = vmatmul.f32.gmra.mxu0 %v2786
    %v3862 = vpop.f32.mrf.mxu0
    %v3863 = vadd.f32 %v3750, %v3862
    %3864 = vmatmul.f32.gmra.mxu0 %v2788
    %v3865 = vpop.f32.mrf.mxu0
    %v3866 = vadd.f32 %v3753, %v3865
    %3867 = vmatmul.f32.gmra.mxu0 %v2790
    %v3868 = vpop.f32.mrf.mxu0
    %v3869 = vadd.f32 %v3756, %v3868
    %3870 = vmatmul.f32.gmra.mxu0 %v2792
    %v3871 = vpop.f32.mrf.mxu0
    %v3872 = vadd.f32 %v3759, %v3871
    %3873 = vmatmul.f32.gmra.mxu0 %v2794
    %v3874 = vpop.f32.mrf.mxu0
    %v3875 = vadd.f32 %v3762, %v3874
    %3876 = vmatmul.f32.gmra.mxu0 %v2796
    %v3877 = vpop.f32.mrf.mxu0
    %v3878 = vadd.f32 %v3765, %v3877
    %3879 = vmatmul.f32.gmra.mxu0 %v2798
    %v3880 = vpop.f32.mrf.mxu0
    %v3881 = vadd.f32 %v3768, %v3880
    %3882 = vmatmul.f32.gmra.mxu0 %v2800
    %v3883 = vpop.f32.mrf.mxu0
    %v3884 = vadd.f32 %v3771, %v3883
    %3885 = vmatmul.f32.gmra.mxu0 %v2802
    %v3886 = vpop.f32.mrf.mxu0
    %v3887 = vadd.f32 %v3774, %v3886
    %3888 = vmatmul.f32.gmra.mxu0 %v2804
    %v3889 = vpop.f32.mrf.mxu0
    %v3890 = vadd.f32 %v3777, %v3889
    %3891 = vmatmul.f32.gmra.mxu0 %v2806
    %v3892 = vpop.f32.mrf.mxu0
    %v3893 = vadd.f32 %v3780, %v3892
    %3894 = vmatmul.f32.gmra.mxu0 %v2808
    %v3895 = vpop.f32.mrf.mxu0
    %v3896 = vadd.f32 %v3783, %v3895
    %3897 = vmatmul.f32.gmra.mxu0 %v2810
    %v3898 = vpop.f32.mrf.mxu0
    %v3899 = vadd.f32 %v3786, %v3898
    %3900 = vmatmul.f32.gmra.mxu0 %v2812
    %v3901 = vpop.f32.mrf.mxu0
    %v3902 = vadd.f32 %v3789, %v3901
    %3903 = vmatmul.f32.gmra.mxu0 %v2814
    %v3904 = vpop.f32.mrf.mxu0
    %v3905 = vadd.f32 %v3792, %v3904
    %3906 = vmatmul.f32.gmra.mxu0 %v2816
    %v3907 = vpop.f32.mrf.mxu0
    %v3908 = vadd.f32 %v3795, %v3907
    %3909 = vmatmul.f32.gmra.mxu0 %v2818
    %v3910 = vpop.f32.mrf.mxu0
    %v3911 = vadd.f32 %v3798, %v3910
    %3912 = vmatmul.f32.gmra.mxu0 %v2820
    %v3913 = vpop.f32.mrf.mxu0
    %v3914 = vadd.f32 %v3801, %v3913
    %3915 = vmatmul.f32.gmra.mxu0 %v2822
    %v3916 = vpop.f32.mrf.mxu0
    %v3917 = vadd.f32 %v3804, %v3916
    %3918 = vdwg.mxu0
    %3919 = vmatpush.msra.mxu0 %v2627
    %3920 = vmatpush.msra.mxu0 %v2619
    %3921 = vmatpush.msra.mxu0 %v2611
    %3922 = vmatpush.msra.mxu0 %v2603
    %3923 = vmatpush.msra.mxu0 %v2595
    %3924 = vmatpush.msra.mxu0 %v2587
    %3925 = vmatpush.msra.mxu0 %v2579
    %3926 = vmatpush.msra.mxu0 %v2571
    %3927 = vmatpush.msra.mxu0 %v2563
    %3928 = vmatpush.msra.mxu0 %v2555
    %3929 = vmatpush.msra.mxu0 %v2547
    %3930 = vmatpush.msra.mxu0 %v2539
    %3931 = vmatpush.msra.mxu0 %v2531
    %3932 = vmatpush.msra.mxu0 %v2523
    %3933 = vmatpush.msra.mxu0 %v2515
    %3934 = vmatpush.msra.mxu0 %v2507
    %3935 = vmatmul.f32.gmra.mxu0 %v2759
    %v3936 = vpop.f32.mrf.mxu0
    %v3937 = vadd.f32 %v2858, %v3936
    %3938 = vmatmul.f32.gmra.mxu0 %v2761
    %v3939 = vpop.f32.mrf.mxu0
    %v3940 = vadd.f32 %v2863, %v3939
    %3941 = vmatmul.f32.gmra.mxu0 %v2763
    %v3942 = vpop.f32.mrf.mxu0
    %v3943 = vadd.f32 %v2868, %v3942
    %3944 = vmatmul.f32.gmra.mxu0 %v2765
    %v3945 = vpop.f32.mrf.mxu0
    %v3946 = vadd.f32 %v2873, %v3945
    %3947 = vmatmul.f32.gmra.mxu0 %v2767
    %v3948 = vpop.f32.mrf.mxu0
    %v3949 = vadd.f32 %v2878, %v3948
    %3950 = vmatmul.f32.gmra.mxu0 %v2769
    %v3951 = vpop.f32.mrf.mxu0
    %v3952 = vadd.f32 %v2883, %v3951
    %3953 = vmatmul.f32.gmra.mxu0 %v2771
    %v3954 = vpop.f32.mrf.mxu0
    %v3955 = vadd.f32 %v2888, %v3954
    %3956 = vmatmul.f32.gmra.mxu0 %v2773
    %v3957 = vpop.f32.mrf.mxu0
    %v3958 = vadd.f32 %v2893, %v3957
    %3959 = vmatmul.f32.gmra.mxu0 %v2775
    %v3960 = vpop.f32.mrf.mxu0
    %v3961 = vadd.f32 %v2898, %v3960
    %3962 = vmatmul.f32.gmra.mxu0 %v2777
    %v3963 = vpop.f32.mrf.mxu0
    %v3964 = vadd.f32 %v2903, %v3963
    %3965 = vmatmul.f32.gmra.mxu0 %v2779
    %v3966 = vpop.f32.mrf.mxu0
    %v3967 = vadd.f32 %v2908, %v3966
    %3968 = vmatmul.f32.gmra.mxu0 %v2781
    %v3969 = vpop.f32.mrf.mxu0
    %v3970 = vadd.f32 %v2913, %v3969
    %3971 = vmatmul.f32.gmra.mxu0 %v2783
    %v3972 = vpop.f32.mrf.mxu0
    %v3973 = vadd.f32 %v2918, %v3972
    %3974 = vmatmul.f32.gmra.mxu0 %v2785
    %v3975 = vpop.f32.mrf.mxu0
    %v3976 = vadd.f32 %v2923, %v3975
    %3977 = vmatmul.f32.gmra.mxu0 %v2787
    %v3978 = vpop.f32.mrf.mxu0
    %v3979 = vadd.f32 %v2928, %v3978
    %3980 = vmatmul.f32.gmra.mxu0 %v2789
    %v3981 = vpop.f32.mrf.mxu0
    %v3982 = vadd.f32 %v2933, %v3981
    %3983 = vmatmul.f32.gmra.mxu0 %v2791
    %v3984 = vpop.f32.mrf.mxu0
    %v3985 = vadd.f32 %v2938, %v3984
    %3986 = vmatmul.f32.gmra.mxu0 %v2793
    %v3987 = vpop.f32.mrf.mxu0
    %v3988 = vadd.f32 %v2943, %v3987
    %3989 = vmatmul.f32.gmra.mxu0 %v2795
    %v3990 = vpop.f32.mrf.mxu0
    %v3991 = vadd.f32 %v2948, %v3990
    %3992 = vmatmul.f32.gmra.mxu0 %v2797
    %v3993 = vpop.f32.mrf.mxu0
    %v3994 = vadd.f32 %v2953, %v3993
    %3995 = vmatmul.f32.gmra.mxu0 %v2799
    %v3996 = vpop.f32.mrf.mxu0
    %v3997 = vadd.f32 %v2958, %v3996
    %3998 = vmatmul.f32.gmra.mxu0 %v2801
    %v3999 = vpop.f32.mrf.mxu0
    %v4000 = vadd.f32 %v2963, %v3999
    %4001 = vmatmul.f32.gmra.mxu0 %v2803
    %v4002 = vpop.f32.mrf.mxu0
    %v4003 = vadd.f32 %v2968, %v4002
    %4004 = vmatmul.f32.gmra.mxu0 %v2805
    %v4005 = vpop.f32.mrf.mxu0
    %v4006 = vadd.f32 %v2973, %v4005
    %4007 = vmatmul.f32.gmra.mxu0 %v2807
    %v4008 = vpop.f32.mrf.mxu0
    %v4009 = vadd.f32 %v2978, %v4008
    %4010 = vmatmul.f32.gmra.mxu0 %v2809
    %v4011 = vpop.f32.mrf.mxu0
    %v4012 = vadd.f32 %v2983, %v4011
    %4013 = vmatmul.f32.gmra.mxu0 %v2811
    %v4014 = vpop.f32.mrf.mxu0
    %v4015 = vadd.f32 %v2988, %v4014
    %4016 = vmatmul.f32.gmra.mxu0 %v2813
    %v4017 = vpop.f32.mrf.mxu0
    %v4018 = vadd.f32 %v2993, %v4017
    %4019 = vmatmul.f32.gmra.mxu0 %v2815
    %v4020 = vpop.f32.mrf.mxu0
    %v4021 = vadd.f32 %v2998, %v4020
    %4022 = vmatmul.f32.gmra.mxu0 %v2817
    %v4023 = vpop.f32.mrf.mxu0
    %v4024 = vadd.f32 %v3003, %v4023
    %4025 = vmatmul.f32.gmra.mxu0 %v2819
    %v4026 = vpop.f32.mrf.mxu0
    %v4027 = vadd.f32 %v3008, %v4026
    %4028 = vmatmul.f32.gmra.mxu0 %v2821
    %v4029 = vpop.f32.mrf.mxu0
    %v4030 = vadd.f32 %v3013, %v4029
    %4031 = vdwg.mxu0
    %4032 = vmatpush.msra.mxu0 %v2755
    %4033 = vmatpush.msra.mxu0 %v2747
    %4034 = vmatpush.msra.mxu0 %v2739
    %4035 = vmatpush.msra.mxu0 %v2731
    %4036 = vmatpush.msra.mxu0 %v2723
    %4037 = vmatpush.msra.mxu0 %v2715
    %4038 = vmatpush.msra.mxu0 %v2707
    %4039 = vmatpush.msra.mxu0 %v2699
    %4040 = vmatpush.msra.mxu0 %v2691
    %4041 = vmatpush.msra.mxu0 %v2683
    %4042 = vmatpush.msra.mxu0 %v2675
    %4043 = vmatpush.msra.mxu0 %v2667
    %4044 = vmatpush.msra.mxu0 %v2659
    %4045 = vmatpush.msra.mxu0 %v2651
    %4046 = vmatpush.msra.mxu0 %v2643
    %4047 = vmatpush.msra.mxu0 %v2635
    %4048 = vmatmul.f32.gmra.mxu0 %v2760
    %v4049 = vpop.f32.mrf.mxu0
    %v4050 = vadd.f32 %v3937, %v4049
    %4051 = vmatmul.f32.gmra.mxu0 %v2762
    %v4052 = vpop.f32.mrf.mxu0
    %v4053 = vadd.f32 %v3940, %v4052
    %4054 = vmatmul.f32.gmra.mxu0 %v2764
    %v4055 = vpop.f32.mrf.mxu0
    %v4056 = vadd.f32 %v3943, %v4055
    %4057 = vmatmul.f32.gmra.mxu0 %v2766
    %v4058 = vpop.f32.mrf.mxu0
    %v4059 = vadd.f32 %v3946, %v4058
    %4060 = vmatmul.f32.gmra.mxu0 %v2768
    %v4061 = vpop.f32.mrf.mxu0
    %v4062 = vadd.f32 %v3949, %v4061
    %4063 = vmatmul.f32.gmra.mxu0 %v2770
    %v4064 = vpop.f32.mrf.mxu0
    %v4065 = vadd.f32 %v3952, %v4064
    %4066 = vmatmul.f32.gmra.mxu0 %v2772
    %v4067 = vpop.f32.mrf.mxu0
    %v4068 = vadd.f32 %v3955, %v4067
    %4069 = vmatmul.f32.gmra.mxu0 %v2774
    %v4070 = vpop.f32.mrf.mxu0
    %v4071 = vadd.f32 %v3958, %v4070
    %4072 = vmatmul.f32.gmra.mxu0 %v2776
    %v4073 = vpop.f32.mrf.mxu0
    %v4074 = vadd.f32 %v3961, %v4073
    %4075 = vmatmul.f32.gmra.mxu0 %v2778
    %v4076 = vpop.f32.mrf.mxu0
    %v4077 = vadd.f32 %v3964, %v4076
    %4078 = vmatmul.f32.gmra.mxu0 %v2780
    %v4079 = vpop.f32.mrf.mxu0
    %v4080 = vadd.f32 %v3967, %v4079
    %4081 = vmatmul.f32.gmra.mxu0 %v2782
    %v4082 = vpop.f32.mrf.mxu0
    %v4083 = vadd.f32 %v3970, %v4082
    %4084 = vmatmul.f32.gmra.mxu0 %v2784
    %v4085 = vpop.f32.mrf.mxu0
    %v4086 = vadd.f32 %v3973, %v4085
    %4087 = vmatmul.f32.gmra.mxu0 %v2786
    %v4088 = vpop.f32.mrf.mxu0
    %v4089 = vadd.f32 %v3976, %v4088
    %4090 = vmatmul.f32.gmra.mxu0 %v2788
    %v4091 = vpop.f32.mrf.mxu0
    %v4092 = vadd.f32 %v3979, %v4091
    %4093 = vmatmul.f32.gmra.mxu0 %v2790
    %v4094 = vpop.f32.mrf.mxu0
    %v4095 = vadd.f32 %v3982, %v4094
    %4096 = vmatmul.f32.gmra.mxu0 %v2792
    %v4097 = vpop.f32.mrf.mxu0
    %v4098 = vadd.f32 %v3985, %v4097
    %4099 = vmatmul.f32.gmra.mxu0 %v2794
    %v4100 = vpop.f32.mrf.mxu0
    %v4101 = vadd.f32 %v3988, %v4100
    %4102 = vmatmul.f32.gmra.mxu0 %v2796
    %v4103 = vpop.f32.mrf.mxu0
    %v4104 = vadd.f32 %v3991, %v4103
    %4105 = vmatmul.f32.gmra.mxu0 %v2798
    %v4106 = vpop.f32.mrf.mxu0
    %v4107 = vadd.f32 %v3994, %v4106
    %4108 = vmatmul.f32.gmra.mxu0 %v2800
    %v4109 = vpop.f32.mrf.mxu0
    %v4110 = vadd.f32 %v3997, %v4109
    %4111 = vmatmul.f32.gmra.mxu0 %v2802
    %v4112 = vpop.f32.mrf.mxu0
    %v4113 = vadd.f32 %v4000, %v4112
    %4114 = vmatmul.f32.gmra.mxu0 %v2804
    %v4115 = vpop.f32.mrf.mxu0
    %v4116 = vadd.f32 %v4003, %v4115
    %4117 = vmatmul.f32.gmra.mxu0 %v2806
    %v4118 = vpop.f32.mrf.mxu0
    %v4119 = vadd.f32 %v4006, %v4118
    %4120 = vmatmul.f32.gmra.mxu0 %v2808
    %v4121 = vpop.f32.mrf.mxu0
    %v4122 = vadd.f32 %v4009, %v4121
    %4123 = vmatmul.f32.gmra.mxu0 %v2810
    %v4124 = vpop.f32.mrf.mxu0
    %v4125 = vadd.f32 %v4012, %v4124
    %4126 = vmatmul.f32.gmra.mxu0 %v2812
    %v4127 = vpop.f32.mrf.mxu0
    %v4128 = vadd.f32 %v4015, %v4127
    %4129 = vmatmul.f32.gmra.mxu0 %v2814
    %v4130 = vpop.f32.mrf.mxu0
    %v4131 = vadd.f32 %v4018, %v4130
    %4132 = vmatmul.f32.gmra.mxu0 %v2816
    %v4133 = vpop.f32.mrf.mxu0
    %v4134 = vadd.f32 %v4021, %v4133
    %4135 = vmatmul.f32.gmra.mxu0 %v2818
    %v4136 = vpop.f32.mrf.mxu0
    %v4137 = vadd.f32 %v4024, %v4136
    %4138 = vmatmul.f32.gmra.mxu0 %v2820
    %v4139 = vpop.f32.mrf.mxu0
    %v4140 = vadd.f32 %v4027, %v4139
    %4141 = vmatmul.f32.gmra.mxu0 %v2822
    %v4142 = vpop.f32.mrf.mxu0
    %v4143 = vadd.f32 %v4030, %v4142
    %4144 = vdwg.mxu0
    %4145 = vmatpush.msra.mxu0 %v2628
    %4146 = vmatpush.msra.mxu0 %v2620
    %4147 = vmatpush.msra.mxu0 %v2612
    %4148 = vmatpush.msra.mxu0 %v2604
    %4149 = vmatpush.msra.mxu0 %v2596
    %4150 = vmatpush.msra.mxu0 %v2588
    %4151 = vmatpush.msra.mxu0 %v2580
    %4152 = vmatpush.msra.mxu0 %v2572
    %4153 = vmatpush.msra.mxu0 %v2564
    %4154 = vmatpush.msra.mxu0 %v2556
    %4155 = vmatpush.msra.mxu0 %v2548
    %4156 = vmatpush.msra.mxu0 %v2540
    %4157 = vmatpush.msra.mxu0 %v2532
    %4158 = vmatpush.msra.mxu0 %v2524
    %4159 = vmatpush.msra.mxu0 %v2516
    %4160 = vmatpush.msra.mxu0 %v2508
    %4161 = vmatmul.f32.gmra.mxu0 %v2759
    %v4162 = vpop.f32.mrf.mxu0
    %v4163 = vadd.f32 %v2858, %v4162
    %4164 = vmatmul.f32.gmra.mxu0 %v2761
    %v4165 = vpop.f32.mrf.mxu0
    %v4166 = vadd.f32 %v2863, %v4165
    %4167 = vmatmul.f32.gmra.mxu0 %v2763
    %v4168 = vpop.f32.mrf.mxu0
    %v4169 = vadd.f32 %v2868, %v4168
    %4170 = vmatmul.f32.gmra.mxu0 %v2765
    %v4171 = vpop.f32.mrf.mxu0
    %v4172 = vadd.f32 %v2873, %v4171
    %4173 = vmatmul.f32.gmra.mxu0 %v2767
    %v4174 = vpop.f32.mrf.mxu0
    %v4175 = vadd.f32 %v2878, %v4174
    %4176 = vmatmul.f32.gmra.mxu0 %v2769
    %v4177 = vpop.f32.mrf.mxu0
    %v4178 = vadd.f32 %v2883, %v4177
    %4179 = vmatmul.f32.gmra.mxu0 %v2771
    %v4180 = vpop.f32.mrf.mxu0
    %v4181 = vadd.f32 %v2888, %v4180
    %4182 = vmatmul.f32.gmra.mxu0 %v2773
    %v4183 = vpop.f32.mrf.mxu0
    %v4184 = vadd.f32 %v2893, %v4183
    %4185 = vmatmul.f32.gmra.mxu0 %v2775
    %v4186 = vpop.f32.mrf.mxu0
    %v4187 = vadd.f32 %v2898, %v4186
    %4188 = vmatmul.f32.gmra.mxu0 %v2777
    %v4189 = vpop.f32.mrf.mxu0
    %v4190 = vadd.f32 %v2903, %v4189
    %4191 = vmatmul.f32.gmra.mxu0 %v2779
    %v4192 = vpop.f32.mrf.mxu0
    %v4193 = vadd.f32 %v2908, %v4192
    %4194 = vmatmul.f32.gmra.mxu0 %v2781
    %v4195 = vpop.f32.mrf.mxu0
    %v4196 = vadd.f32 %v2913, %v4195
    %4197 = vmatmul.f32.gmra.mxu0 %v2783
    %v4198 = vpop.f32.mrf.mxu0
    %v4199 = vadd.f32 %v2918, %v4198
    %4200 = vmatmul.f32.gmra.mxu0 %v2785
    %v4201 = vpop.f32.mrf.mxu0
    %v4202 = vadd.f32 %v2923, %v4201
    %4203 = vmatmul.f32.gmra.mxu0 %v2787
    %v4204 = vpop.f32.mrf.mxu0
    %v4205 = vadd.f32 %v2928, %v4204
    %4206 = vmatmul.f32.gmra.mxu0 %v2789
    %v4207 = vpop.f32.mrf.mxu0
    %v4208 = vadd.f32 %v2933, %v4207
    %4209 = vmatmul.f32.gmra.mxu0 %v2791
    %v4210 = vpop.f32.mrf.mxu0
    %v4211 = vadd.f32 %v2938, %v4210
    %4212 = vmatmul.f32.gmra.mxu0 %v2793
    %v4213 = vpop.f32.mrf.mxu0
    %v4214 = vadd.f32 %v2943, %v4213
    %4215 = vmatmul.f32.gmra.mxu0 %v2795
    %v4216 = vpop.f32.mrf.mxu0
    %v4217 = vadd.f32 %v2948, %v4216
    %4218 = vmatmul.f32.gmra.mxu0 %v2797
    %v4219 = vpop.f32.mrf.mxu0
    %v4220 = vadd.f32 %v2953, %v4219
    %4221 = vmatmul.f32.gmra.mxu0 %v2799
    %v4222 = vpop.f32.mrf.mxu0
    %v4223 = vadd.f32 %v2958, %v4222
    %4224 = vmatmul.f32.gmra.mxu0 %v2801
    %v4225 = vpop.f32.mrf.mxu0
    %v4226 = vadd.f32 %v2963, %v4225
    %4227 = vmatmul.f32.gmra.mxu0 %v2803
    %v4228 = vpop.f32.mrf.mxu0
    %v4229 = vadd.f32 %v2968, %v4228
    %4230 = vmatmul.f32.gmra.mxu0 %v2805
    %v4231 = vpop.f32.mrf.mxu0
    %v4232 = vadd.f32 %v2973, %v4231
    %4233 = vmatmul.f32.gmra.mxu0 %v2807
    %v4234 = vpop.f32.mrf.mxu0
    %v4235 = vadd.f32 %v2978, %v4234
    %4236 = vmatmul.f32.gmra.mxu0 %v2809
    %v4237 = vpop.f32.mrf.mxu0
    %v4238 = vadd.f32 %v2983, %v4237
    %4239 = vmatmul.f32.gmra.mxu0 %v2811
    %v4240 = vpop.f32.mrf.mxu0
    %v4241 = vadd.f32 %v2988, %v4240
    %4242 = vmatmul.f32.gmra.mxu0 %v2813
    %v4243 = vpop.f32.mrf.mxu0
    %v4244 = vadd.f32 %v2993, %v4243
    %4245 = vmatmul.f32.gmra.mxu0 %v2815
    %v4246 = vpop.f32.mrf.mxu0
    %v4247 = vadd.f32 %v2998, %v4246
    %4248 = vmatmul.f32.gmra.mxu0 %v2817
    %v4249 = vpop.f32.mrf.mxu0
    %v4250 = vadd.f32 %v3003, %v4249
    %4251 = vmatmul.f32.gmra.mxu0 %v2819
    %v4252 = vpop.f32.mrf.mxu0
    %v4253 = vadd.f32 %v3008, %v4252
    %4254 = vmatmul.f32.gmra.mxu0 %v2821
    %v4255 = vpop.f32.mrf.mxu0
    %v4256 = vadd.f32 %v3013, %v4255
    %4257 = vdwg.mxu0
    %4258 = vmatpush.msra.mxu0 %v2756
    %4259 = vmatpush.msra.mxu0 %v2748
    %4260 = vmatpush.msra.mxu0 %v2740
    %4261 = vmatpush.msra.mxu0 %v2732
    %4262 = vmatpush.msra.mxu0 %v2724
    %4263 = vmatpush.msra.mxu0 %v2716
    %4264 = vmatpush.msra.mxu0 %v2708
    %4265 = vmatpush.msra.mxu0 %v2700
    %4266 = vmatpush.msra.mxu0 %v2692
    %4267 = vmatpush.msra.mxu0 %v2684
    %4268 = vmatpush.msra.mxu0 %v2676
    %4269 = vmatpush.msra.mxu0 %v2668
    %4270 = vmatpush.msra.mxu0 %v2660
    %4271 = vmatpush.msra.mxu0 %v2652
    %4272 = vmatpush.msra.mxu0 %v2644
    %4273 = vmatpush.msra.mxu0 %v2636
    %4274 = vmatmul.f32.gmra.mxu0 %v2760
    %v4275 = vpop.f32.mrf.mxu0
    %v4276 = vadd.f32 %v4163, %v4275
    %4277 = vmatmul.f32.gmra.mxu0 %v2762
    %v4278 = vpop.f32.mrf.mxu0
    %v4279 = vadd.f32 %v4166, %v4278
    %4280 = vmatmul.f32.gmra.mxu0 %v2764
    %v4281 = vpop.f32.mrf.mxu0
    %v4282 = vadd.f32 %v4169, %v4281
    %4283 = vmatmul.f32.gmra.mxu0 %v2766
    %v4284 = vpop.f32.mrf.mxu0
    %v4285 = vadd.f32 %v4172, %v4284
    %4286 = vmatmul.f32.gmra.mxu0 %v2768
    %v4287 = vpop.f32.mrf.mxu0
    %v4288 = vadd.f32 %v4175, %v4287
    %4289 = vmatmul.f32.gmra.mxu0 %v2770
    %v4290 = vpop.f32.mrf.mxu0
    %v4291 = vadd.f32 %v4178, %v4290
    %4292 = vmatmul.f32.gmra.mxu0 %v2772
    %v4293 = vpop.f32.mrf.mxu0
    %v4294 = vadd.f32 %v4181, %v4293
    %4295 = vmatmul.f32.gmra.mxu0 %v2774
    %v4296 = vpop.f32.mrf.mxu0
    %v4297 = vadd.f32 %v4184, %v4296
    %4298 = vmatmul.f32.gmra.mxu0 %v2776
    %v4299 = vpop.f32.mrf.mxu0
    %v4300 = vadd.f32 %v4187, %v4299
    %4301 = vmatmul.f32.gmra.mxu0 %v2778
    %v4302 = vpop.f32.mrf.mxu0
    %v4303 = vadd.f32 %v4190, %v4302
    %4304 = vmatmul.f32.gmra.mxu0 %v2780
    %v4305 = vpop.f32.mrf.mxu0
    %v4306 = vadd.f32 %v4193, %v4305
    %4307 = vmatmul.f32.gmra.mxu0 %v2782
    %v4308 = vpop.f32.mrf.mxu0
    %v4309 = vadd.f32 %v4196, %v4308
    %4310 = vmatmul.f32.gmra.mxu0 %v2784
    %v4311 = vpop.f32.mrf.mxu0
    %v4312 = vadd.f32 %v4199, %v4311
    %4313 = vmatmul.f32.gmra.mxu0 %v2786
    %v4314 = vpop.f32.mrf.mxu0
    %v4315 = vadd.f32 %v4202, %v4314
    %4316 = vmatmul.f32.gmra.mxu0 %v2788
    %v4317 = vpop.f32.mrf.mxu0
    %v4318 = vadd.f32 %v4205, %v4317
    %4319 = vmatmul.f32.gmra.mxu0 %v2790
    %v4320 = vpop.f32.mrf.mxu0
    %v4321 = vadd.f32 %v4208, %v4320
    %4322 = vmatmul.f32.gmra.mxu0 %v2792
    %v4323 = vpop.f32.mrf.mxu0
    %v4324 = vadd.f32 %v4211, %v4323
    %4325 = vmatmul.f32.gmra.mxu0 %v2794
    %v4326 = vpop.f32.mrf.mxu0
    %v4327 = vadd.f32 %v4214, %v4326
    %4328 = vmatmul.f32.gmra.mxu0 %v2796
    %v4329 = vpop.f32.mrf.mxu0
    %v4330 = vadd.f32 %v4217, %v4329
    %4331 = vmatmul.f32.gmra.mxu0 %v2798
    %v4332 = vpop.f32.mrf.mxu0
    %v4333 = vadd.f32 %v4220, %v4332
    %4334 = vmatmul.f32.gmra.mxu0 %v2800
    %v4335 = vpop.f32.mrf.mxu0
    %v4336 = vadd.f32 %v4223, %v4335
    %4337 = vmatmul.f32.gmra.mxu0 %v2802
    %v4338 = vpop.f32.mrf.mxu0
    %v4339 = vadd.f32 %v4226, %v4338
    %4340 = vmatmul.f32.gmra.mxu0 %v2804
    %v4341 = vpop.f32.mrf.mxu0
    %v4342 = vadd.f32 %v4229, %v4341
    %4343 = vmatmul.f32.gmra.mxu0 %v2806
    %v4344 = vpop.f32.mrf.mxu0
    %v4345 = vadd.f32 %v4232, %v4344
    %4346 = vmatmul.f32.gmra.mxu0 %v2808
    %v4347 = vpop.f32.mrf.mxu0
    %v4348 = vadd.f32 %v4235, %v4347
    %4349 = vmatmul.f32.gmra.mxu0 %v2810
    %v4350 = vpop.f32.mrf.mxu0
    %v4351 = vadd.f32 %v4238, %v4350
    %4352 = vmatmul.f32.gmra.mxu0 %v2812
    %v4353 = vpop.f32.mrf.mxu0
    %v4354 = vadd.f32 %v4241, %v4353
    %4355 = vmatmul.f32.gmra.mxu0 %v2814
    %v4356 = vpop.f32.mrf.mxu0
    %v4357 = vadd.f32 %v4244, %v4356
    %4358 = vmatmul.f32.gmra.mxu0 %v2816
    %v4359 = vpop.f32.mrf.mxu0
    %v4360 = vadd.f32 %v4247, %v4359
    %4361 = vmatmul.f32.gmra.mxu0 %v2818
    %v4362 = vpop.f32.mrf.mxu0
    %v4363 = vadd.f32 %v4250, %v4362
    %4364 = vmatmul.f32.gmra.mxu0 %v2820
    %v4365 = vpop.f32.mrf.mxu0
    %v4366 = vadd.f32 %v4253, %v4365
    %4367 = vmatmul.f32.gmra.mxu0 %v2822
    %v4368 = vpop.f32.mrf.mxu0
    %v4369 = vadd.f32 %v4256, %v4368
    %4370 = vdwg.mxu0
    %4371 = vmatpush.msra.mxu0 %v2629
    %4372 = vmatpush.msra.mxu0 %v2621
    %4373 = vmatpush.msra.mxu0 %v2613
    %4374 = vmatpush.msra.mxu0 %v2605
    %4375 = vmatpush.msra.mxu0 %v2597
    %4376 = vmatpush.msra.mxu0 %v2589
    %4377 = vmatpush.msra.mxu0 %v2581
    %4378 = vmatpush.msra.mxu0 %v2573
    %4379 = vmatpush.msra.mxu0 %v2565
    %4380 = vmatpush.msra.mxu0 %v2557
    %4381 = vmatpush.msra.mxu0 %v2549
    %4382 = vmatpush.msra.mxu0 %v2541
    %4383 = vmatpush.msra.mxu0 %v2533
    %4384 = vmatpush.msra.mxu0 %v2525
    %4385 = vmatpush.msra.mxu0 %v2517
    %4386 = vmatpush.msra.mxu0 %v2509
    %4387 = vmatmul.f32.gmra.mxu0 %v2759
    %v4388 = vpop.f32.mrf.mxu0
    %v4389 = vadd.f32 %v2858, %v4388
    %4390 = vmatmul.f32.gmra.mxu0 %v2761
    %v4391 = vpop.f32.mrf.mxu0
    %v4392 = vadd.f32 %v2863, %v4391
    %4393 = vmatmul.f32.gmra.mxu0 %v2763
    %v4394 = vpop.f32.mrf.mxu0
    %v4395 = vadd.f32 %v2868, %v4394
    %4396 = vmatmul.f32.gmra.mxu0 %v2765
    %v4397 = vpop.f32.mrf.mxu0
    %v4398 = vadd.f32 %v2873, %v4397
    %4399 = vmatmul.f32.gmra.mxu0 %v2767
    %v4400 = vpop.f32.mrf.mxu0
    %v4401 = vadd.f32 %v2878, %v4400
    %4402 = vmatmul.f32.gmra.mxu0 %v2769
    %v4403 = vpop.f32.mrf.mxu0
    %v4404 = vadd.f32 %v2883, %v4403
    %4405 = vmatmul.f32.gmra.mxu0 %v2771
    %v4406 = vpop.f32.mrf.mxu0
    %v4407 = vadd.f32 %v2888, %v4406
    %4408 = vmatmul.f32.gmra.mxu0 %v2773
    %v4409 = vpop.f32.mrf.mxu0
    %v4410 = vadd.f32 %v2893, %v4409
    %4411 = vmatmul.f32.gmra.mxu0 %v2775
    %v4412 = vpop.f32.mrf.mxu0
    %v4413 = vadd.f32 %v2898, %v4412
    %4414 = vmatmul.f32.gmra.mxu0 %v2777
    %v4415 = vpop.f32.mrf.mxu0
    %v4416 = vadd.f32 %v2903, %v4415
    %4417 = vmatmul.f32.gmra.mxu0 %v2779
    %v4418 = vpop.f32.mrf.mxu0
    %v4419 = vadd.f32 %v2908, %v4418
    %4420 = vmatmul.f32.gmra.mxu0 %v2781
    %v4421 = vpop.f32.mrf.mxu0
    %v4422 = vadd.f32 %v2913, %v4421
    %4423 = vmatmul.f32.gmra.mxu0 %v2783
    %v4424 = vpop.f32.mrf.mxu0
    %v4425 = vadd.f32 %v2918, %v4424
    %4426 = vmatmul.f32.gmra.mxu0 %v2785
    %v4427 = vpop.f32.mrf.mxu0
    %v4428 = vadd.f32 %v2923, %v4427
    %4429 = vmatmul.f32.gmra.mxu0 %v2787
    %v4430 = vpop.f32.mrf.mxu0
    %v4431 = vadd.f32 %v2928, %v4430
    %4432 = vmatmul.f32.gmra.mxu0 %v2789
    %v4433 = vpop.f32.mrf.mxu0
    %v4434 = vadd.f32 %v2933, %v4433
    %4435 = vmatmul.f32.gmra.mxu0 %v2791
    %v4436 = vpop.f32.mrf.mxu0
    %v4437 = vadd.f32 %v2938, %v4436
    %4438 = vmatmul.f32.gmra.mxu0 %v2793
    %v4439 = vpop.f32.mrf.mxu0
    %v4440 = vadd.f32 %v2943, %v4439
    %4441 = vmatmul.f32.gmra.mxu0 %v2795
    %v4442 = vpop.f32.mrf.mxu0
    %v4443 = vadd.f32 %v2948, %v4442
    %4444 = vmatmul.f32.gmra.mxu0 %v2797
    %v4445 = vpop.f32.mrf.mxu0
    %v4446 = vadd.f32 %v2953, %v4445
    %4447 = vmatmul.f32.gmra.mxu0 %v2799
    %v4448 = vpop.f32.mrf.mxu0
    %v4449 = vadd.f32 %v2958, %v4448
    %4450 = vmatmul.f32.gmra.mxu0 %v2801
    %v4451 = vpop.f32.mrf.mxu0
    %v4452 = vadd.f32 %v2963, %v4451
    %4453 = vmatmul.f32.gmra.mxu0 %v2803
    %v4454 = vpop.f32.mrf.mxu0
    %v4455 = vadd.f32 %v2968, %v4454
    %4456 = vmatmul.f32.gmra.mxu0 %v2805
    %v4457 = vpop.f32.mrf.mxu0
    %v4458 = vadd.f32 %v2973, %v4457
    %4459 = vmatmul.f32.gmra.mxu0 %v2807
    %v4460 = vpop.f32.mrf.mxu0
    %v4461 = vadd.f32 %v2978, %v4460
    %4462 = vmatmul.f32.gmra.mxu0 %v2809
    %v4463 = vpop.f32.mrf.mxu0
    %v4464 = vadd.f32 %v2983, %v4463
    %4465 = vmatmul.f32.gmra.mxu0 %v2811
    %v4466 = vpop.f32.mrf.mxu0
    %v4467 = vadd.f32 %v2988, %v4466
    %4468 = vmatmul.f32.gmra.mxu0 %v2813
    %v4469 = vpop.f32.mrf.mxu0
    %v4470 = vadd.f32 %v2993, %v4469
    %4471 = vmatmul.f32.gmra.mxu0 %v2815
    %v4472 = vpop.f32.mrf.mxu0
    %v4473 = vadd.f32 %v2998, %v4472
    %4474 = vmatmul.f32.gmra.mxu0 %v2817
    %v4475 = vpop.f32.mrf.mxu0
    %v4476 = vadd.f32 %v3003, %v4475
    %4477 = vmatmul.f32.gmra.mxu0 %v2819
    %v4478 = vpop.f32.mrf.mxu0
    %v4479 = vadd.f32 %v3008, %v4478
    %4480 = vmatmul.f32.gmra.mxu0 %v2821
    %v4481 = vpop.f32.mrf.mxu0
    %v4482 = vadd.f32 %v3013, %v4481
    %4483 = vdwg.mxu0
    %4484 = vmatpush.msra.mxu0 %v2757
    %4485 = vmatpush.msra.mxu0 %v2749
    %4486 = vmatpush.msra.mxu0 %v2741
    %4487 = vmatpush.msra.mxu0 %v2733
    %4488 = vmatpush.msra.mxu0 %v2725
    %4489 = vmatpush.msra.mxu0 %v2717
    %4490 = vmatpush.msra.mxu0 %v2709
    %4491 = vmatpush.msra.mxu0 %v2701
    %4492 = vmatpush.msra.mxu0 %v2693
    %4493 = vmatpush.msra.mxu0 %v2685
    %4494 = vmatpush.msra.mxu0 %v2677
    %4495 = vmatpush.msra.mxu0 %v2669
    %4496 = vmatpush.msra.mxu0 %v2661
    %4497 = vmatpush.msra.mxu0 %v2653
    %4498 = vmatpush.msra.mxu0 %v2645
    %4499 = vmatpush.msra.mxu0 %v2637
    %4500 = vmatmul.f32.gmra.mxu0 %v2760
    %v4501 = vpop.f32.mrf.mxu0
    %v4502 = vadd.f32 %v4389, %v4501
    %4503 = vmatmul.f32.gmra.mxu0 %v2762
    %v4504 = vpop.f32.mrf.mxu0
    %v4505 = vadd.f32 %v4392, %v4504
    %4506 = vmatmul.f32.gmra.mxu0 %v2764
    %v4507 = vpop.f32.mrf.mxu0
    %v4508 = vadd.f32 %v4395, %v4507
    %4509 = vmatmul.f32.gmra.mxu0 %v2766
    %v4510 = vpop.f32.mrf.mxu0
    %v4511 = vadd.f32 %v4398, %v4510
    %4512 = vmatmul.f32.gmra.mxu0 %v2768
    %v4513 = vpop.f32.mrf.mxu0
    %v4514 = vadd.f32 %v4401, %v4513
    %4515 = vmatmul.f32.gmra.mxu0 %v2770
    %v4516 = vpop.f32.mrf.mxu0
    %v4517 = vadd.f32 %v4404, %v4516
    %4518 = vmatmul.f32.gmra.mxu0 %v2772
    %v4519 = vpop.f32.mrf.mxu0
    %v4520 = vadd.f32 %v4407, %v4519
    %4521 = vmatmul.f32.gmra.mxu0 %v2774
    %v4522 = vpop.f32.mrf.mxu0
    %v4523 = vadd.f32 %v4410, %v4522
    %4524 = vmatmul.f32.gmra.mxu0 %v2776
    %v4525 = vpop.f32.mrf.mxu0
    %v4526 = vadd.f32 %v4413, %v4525
    %4527 = vmatmul.f32.gmra.mxu0 %v2778
    %v4528 = vpop.f32.mrf.mxu0
    %v4529 = vadd.f32 %v4416, %v4528
    %4530 = vmatmul.f32.gmra.mxu0 %v2780
    %v4531 = vpop.f32.mrf.mxu0
    %v4532 = vadd.f32 %v4419, %v4531
    %4533 = vmatmul.f32.gmra.mxu0 %v2782
    %v4534 = vpop.f32.mrf.mxu0
    %v4535 = vadd.f32 %v4422, %v4534
    %4536 = vmatmul.f32.gmra.mxu0 %v2784
    %v4537 = vpop.f32.mrf.mxu0
    %v4538 = vadd.f32 %v4425, %v4537
    %4539 = vmatmul.f32.gmra.mxu0 %v2786
    %v4540 = vpop.f32.mrf.mxu0
    %v4541 = vadd.f32 %v4428, %v4540
    %4542 = vmatmul.f32.gmra.mxu0 %v2788
    %v4543 = vpop.f32.mrf.mxu0
    %v4544 = vadd.f32 %v4431, %v4543
    %4545 = vmatmul.f32.gmra.mxu0 %v2790
    %v4546 = vpop.f32.mrf.mxu0
    %v4547 = vadd.f32 %v4434, %v4546
    %4548 = vmatmul.f32.gmra.mxu0 %v2792
    %v4549 = vpop.f32.mrf.mxu0
    %v4550 = vadd.f32 %v4437, %v4549
    %4551 = vmatmul.f32.gmra.mxu0 %v2794
    %v4552 = vpop.f32.mrf.mxu0
    %v4553 = vadd.f32 %v4440, %v4552
    %4554 = vmatmul.f32.gmra.mxu0 %v2796
    %v4555 = vpop.f32.mrf.mxu0
    %v4556 = vadd.f32 %v4443, %v4555
    %4557 = vmatmul.f32.gmra.mxu0 %v2798
    %v4558 = vpop.f32.mrf.mxu0
    %v4559 = vadd.f32 %v4446, %v4558
    %4560 = vmatmul.f32.gmra.mxu0 %v2800
    %v4561 = vpop.f32.mrf.mxu0
    %v4562 = vadd.f32 %v4449, %v4561
    %4563 = vmatmul.f32.gmra.mxu0 %v2802
    %v4564 = vpop.f32.mrf.mxu0
    %v4565 = vadd.f32 %v4452, %v4564
    %4566 = vmatmul.f32.gmra.mxu0 %v2804
    %v4567 = vpop.f32.mrf.mxu0
    %v4568 = vadd.f32 %v4455, %v4567
    %4569 = vmatmul.f32.gmra.mxu0 %v2806
    %v4570 = vpop.f32.mrf.mxu0
    %v4571 = vadd.f32 %v4458, %v4570
    %4572 = vmatmul.f32.gmra.mxu0 %v2808
    %v4573 = vpop.f32.mrf.mxu0
    %v4574 = vadd.f32 %v4461, %v4573
    %4575 = vmatmul.f32.gmra.mxu0 %v2810
    %v4576 = vpop.f32.mrf.mxu0
    %v4577 = vadd.f32 %v4464, %v4576
    %4578 = vmatmul.f32.gmra.mxu0 %v2812
    %v4579 = vpop.f32.mrf.mxu0
    %v4580 = vadd.f32 %v4467, %v4579
    %4581 = vmatmul.f32.gmra.mxu0 %v2814
    %v4582 = vpop.f32.mrf.mxu0
    %v4583 = vadd.f32 %v4470, %v4582
    %4584 = vmatmul.f32.gmra.mxu0 %v2816
    %v4585 = vpop.f32.mrf.mxu0
    %v4586 = vadd.f32 %v4473, %v4585
    %4587 = vmatmul.f32.gmra.mxu0 %v2818
    %v4588 = vpop.f32.mrf.mxu0
    %v4589 = vadd.f32 %v4476, %v4588
    %4590 = vmatmul.f32.gmra.mxu0 %v2820
    %v4591 = vpop.f32.mrf.mxu0
    %v4592 = vadd.f32 %v4479, %v4591
    %4593 = vmatmul.f32.gmra.mxu0 %v2822
    %v4594 = vpop.f32.mrf.mxu0
    %v4595 = vadd.f32 %v4482, %v4594
    %4596 = vdwg.mxu0
    %4597 = vmatpush.msra.mxu0 %v2630
    %4598 = vmatpush.msra.mxu0 %v2622
    %4599 = vmatpush.msra.mxu0 %v2614
    %4600 = vmatpush.msra.mxu0 %v2606
    %4601 = vmatpush.msra.mxu0 %v2598
    %4602 = vmatpush.msra.mxu0 %v2590
    %4603 = vmatpush.msra.mxu0 %v2582
    %4604 = vmatpush.msra.mxu0 %v2574
    %4605 = vmatpush.msra.mxu0 %v2566
    %4606 = vmatpush.msra.mxu0 %v2558
    %4607 = vmatpush.msra.mxu0 %v2550
    %4608 = vmatpush.msra.mxu0 %v2542
    %4609 = vmatpush.msra.mxu0 %v2534
    %4610 = vmatpush.msra.mxu0 %v2526
    %4611 = vmatpush.msra.mxu0 %v2518
    %4612 = vmatpush.msra.mxu0 %v2510
    %4613 = vmatmul.f32.gmra.mxu0 %v2759
    %v4614 = vpop.f32.mrf.mxu0
    %v4615 = vadd.f32 %v2858, %v4614
    %4616 = vmatmul.f32.gmra.mxu0 %v2761
    %v4617 = vpop.f32.mrf.mxu0
    %v4618 = vadd.f32 %v2863, %v4617
    %4619 = vmatmul.f32.gmra.mxu0 %v2763
    %v4620 = vpop.f32.mrf.mxu0
    %v4621 = vadd.f32 %v2868, %v4620
    %4622 = vmatmul.f32.gmra.mxu0 %v2765
    %v4623 = vpop.f32.mrf.mxu0
    %v4624 = vadd.f32 %v2873, %v4623
    %4625 = vmatmul.f32.gmra.mxu0 %v2767
    %v4626 = vpop.f32.mrf.mxu0
    %v4627 = vadd.f32 %v2878, %v4626
    %4628 = vmatmul.f32.gmra.mxu0 %v2769
    %v4629 = vpop.f32.mrf.mxu0
    %v4630 = vadd.f32 %v2883, %v4629
    %4631 = vmatmul.f32.gmra.mxu0 %v2771
    %v4632 = vpop.f32.mrf.mxu0
    %v4633 = vadd.f32 %v2888, %v4632
    %4634 = vmatmul.f32.gmra.mxu0 %v2773
    %v4635 = vpop.f32.mrf.mxu0
    %v4636 = vadd.f32 %v2893, %v4635
    %4637 = vmatmul.f32.gmra.mxu0 %v2775
    %v4638 = vpop.f32.mrf.mxu0
    %v4639 = vadd.f32 %v2898, %v4638
    %4640 = vmatmul.f32.gmra.mxu0 %v2777
    %v4641 = vpop.f32.mrf.mxu0
    %v4642 = vadd.f32 %v2903, %v4641
    %4643 = vmatmul.f32.gmra.mxu0 %v2779
    %v4644 = vpop.f32.mrf.mxu0
    %v4645 = vadd.f32 %v2908, %v4644
    %4646 = vmatmul.f32.gmra.mxu0 %v2781
    %v4647 = vpop.f32.mrf.mxu0
    %v4648 = vadd.f32 %v2913, %v4647
    %4649 = vmatmul.f32.gmra.mxu0 %v2783
    %v4650 = vpop.f32.mrf.mxu0
    %v4651 = vadd.f32 %v2918, %v4650
    %4652 = vmatmul.f32.gmra.mxu0 %v2785
    %v4653 = vpop.f32.mrf.mxu0
    %v4654 = vadd.f32 %v2923, %v4653
    %4655 = vmatmul.f32.gmra.mxu0 %v2787
    %v4656 = vpop.f32.mrf.mxu0
    %v4657 = vadd.f32 %v2928, %v4656
    %4658 = vmatmul.f32.gmra.mxu0 %v2789
    %v4659 = vpop.f32.mrf.mxu0
    %v4660 = vadd.f32 %v2933, %v4659
    %4661 = vmatmul.f32.gmra.mxu0 %v2791
    %v4662 = vpop.f32.mrf.mxu0
    %v4663 = vadd.f32 %v2938, %v4662
    %4664 = vmatmul.f32.gmra.mxu0 %v2793
    %v4665 = vpop.f32.mrf.mxu0
    %v4666 = vadd.f32 %v2943, %v4665
    %4667 = vmatmul.f32.gmra.mxu0 %v2795
    %v4668 = vpop.f32.mrf.mxu0
    %v4669 = vadd.f32 %v2948, %v4668
    %4670 = vmatmul.f32.gmra.mxu0 %v2797
    %v4671 = vpop.f32.mrf.mxu0
    %v4672 = vadd.f32 %v2953, %v4671
    %4673 = vmatmul.f32.gmra.mxu0 %v2799
    %v4674 = vpop.f32.mrf.mxu0
    %v4675 = vadd.f32 %v2958, %v4674
    %4676 = vmatmul.f32.gmra.mxu0 %v2801
    %v4677 = vpop.f32.mrf.mxu0
    %v4678 = vadd.f32 %v2963, %v4677
    %4679 = vmatmul.f32.gmra.mxu0 %v2803
    %v4680 = vpop.f32.mrf.mxu0
    %v4681 = vadd.f32 %v2968, %v4680
    %4682 = vmatmul.f32.gmra.mxu0 %v2805
    %v4683 = vpop.f32.mrf.mxu0
    %v4684 = vadd.f32 %v2973, %v4683
    %4685 = vmatmul.f32.gmra.mxu0 %v2807
    %v4686 = vpop.f32.mrf.mxu0
    %v4687 = vadd.f32 %v2978, %v4686
    %4688 = vmatmul.f32.gmra.mxu0 %v2809
    %v4689 = vpop.f32.mrf.mxu0
    %v4690 = vadd.f32 %v2983, %v4689
    %4691 = vmatmul.f32.gmra.mxu0 %v2811
    %v4692 = vpop.f32.mrf.mxu0
    %v4693 = vadd.f32 %v2988, %v4692
    %4694 = vmatmul.f32.gmra.mxu0 %v2813
    %v4695 = vpop.f32.mrf.mxu0
    %v4696 = vadd.f32 %v2993, %v4695
    %4697 = vmatmul.f32.gmra.mxu0 %v2815
    %v4698 = vpop.f32.mrf.mxu0
    %v4699 = vadd.f32 %v2998, %v4698
    %4700 = vmatmul.f32.gmra.mxu0 %v2817
    %v4701 = vpop.f32.mrf.mxu0
    %v4702 = vadd.f32 %v3003, %v4701
    %4703 = vmatmul.f32.gmra.mxu0 %v2819
    %v4704 = vpop.f32.mrf.mxu0
    %v4705 = vadd.f32 %v3008, %v4704
    %4706 = vmatmul.f32.gmra.mxu0 %v2821
    %v4707 = vpop.f32.mrf.mxu0
    %v4708 = vadd.f32 %v3013, %v4707
    %4709 = vdwg.mxu0
    %4710 = vmatpush.msra.mxu0 %v2758
    %4711 = vmatpush.msra.mxu0 %v2750
    %4712 = vmatpush.msra.mxu0 %v2742
    %4713 = vmatpush.msra.mxu0 %v2734
    %4714 = vmatpush.msra.mxu0 %v2726
    %4715 = vmatpush.msra.mxu0 %v2718
    %4716 = vmatpush.msra.mxu0 %v2710
    %4717 = vmatpush.msra.mxu0 %v2702
    %4718 = vmatpush.msra.mxu0 %v2694
    %4719 = vmatpush.msra.mxu0 %v2686
    %4720 = vmatpush.msra.mxu0 %v2678
    %4721 = vmatpush.msra.mxu0 %v2670
    %4722 = vmatpush.msra.mxu0 %v2662
    %4723 = vmatpush.msra.mxu0 %v2654
    %4724 = vmatpush.msra.mxu0 %v2646
    %4725 = vmatpush.msra.mxu0 %v2638
    %4726 = vmatmul.f32.gmra.mxu0 %v2760
    %v4727 = vpop.f32.mrf.mxu0
    %v4728 = vadd.f32 %v4615, %v4727
    %4729 = vmatmul.f32.gmra.mxu0 %v2762
    %v4730 = vpop.f32.mrf.mxu0
    %v4731 = vadd.f32 %v4618, %v4730
    %4732 = vmatmul.f32.gmra.mxu0 %v2764
    %v4733 = vpop.f32.mrf.mxu0
    %v4734 = vadd.f32 %v4621, %v4733
    %4735 = vmatmul.f32.gmra.mxu0 %v2766
    %v4736 = vpop.f32.mrf.mxu0
    %v4737 = vadd.f32 %v4624, %v4736
    %4738 = vmatmul.f32.gmra.mxu0 %v2768
    %v4739 = vpop.f32.mrf.mxu0
    %v4740 = vadd.f32 %v4627, %v4739
    %4741 = vmatmul.f32.gmra.mxu0 %v2770
    %v4742 = vpop.f32.mrf.mxu0
    %v4743 = vadd.f32 %v4630, %v4742
    %4744 = vmatmul.f32.gmra.mxu0 %v2772
    %v4745 = vpop.f32.mrf.mxu0
    %v4746 = vadd.f32 %v4633, %v4745
    %4747 = vmatmul.f32.gmra.mxu0 %v2774
    %v4748 = vpop.f32.mrf.mxu0
    %v4749 = vadd.f32 %v4636, %v4748
    %4750 = vmatmul.f32.gmra.mxu0 %v2776
    %v4751 = vpop.f32.mrf.mxu0
    %v4752 = vadd.f32 %v4639, %v4751
    %4753 = vmatmul.f32.gmra.mxu0 %v2778
    %v4754 = vpop.f32.mrf.mxu0
    %v4755 = vadd.f32 %v4642, %v4754
    %4756 = vmatmul.f32.gmra.mxu0 %v2780
    %v4757 = vpop.f32.mrf.mxu0
    %v4758 = vadd.f32 %v4645, %v4757
    %4759 = vmatmul.f32.gmra.mxu0 %v2782
    %v4760 = vpop.f32.mrf.mxu0
    %v4761 = vadd.f32 %v4648, %v4760
    %4762 = vmatmul.f32.gmra.mxu0 %v2784
    %v4763 = vpop.f32.mrf.mxu0
    %v4764 = vadd.f32 %v4651, %v4763
    %4765 = vmatmul.f32.gmra.mxu0 %v2786
    %v4766 = vpop.f32.mrf.mxu0
    %v4767 = vadd.f32 %v4654, %v4766
    %4768 = vmatmul.f32.gmra.mxu0 %v2788
    %v4769 = vpop.f32.mrf.mxu0
    %v4770 = vadd.f32 %v4657, %v4769
    %4771 = vmatmul.f32.gmra.mxu0 %v2790
    %v4772 = vpop.f32.mrf.mxu0
    %v4773 = vadd.f32 %v4660, %v4772
    %4774 = vmatmul.f32.gmra.mxu0 %v2792
    %v4775 = vpop.f32.mrf.mxu0
    %v4776 = vadd.f32 %v4663, %v4775
    %4777 = vmatmul.f32.gmra.mxu0 %v2794
    %v4778 = vpop.f32.mrf.mxu0
    %v4779 = vadd.f32 %v4666, %v4778
    %4780 = vmatmul.f32.gmra.mxu0 %v2796
    %v4781 = vpop.f32.mrf.mxu0
    %v4782 = vadd.f32 %v4669, %v4781
    %4783 = vmatmul.f32.gmra.mxu0 %v2798
    %v4784 = vpop.f32.mrf.mxu0
    %v4785 = vadd.f32 %v4672, %v4784
    %4786 = vmatmul.f32.gmra.mxu0 %v2800
    %v4787 = vpop.f32.mrf.mxu0
    %v4788 = vadd.f32 %v4675, %v4787
    %4789 = vmatmul.f32.gmra.mxu0 %v2802
    %v4790 = vpop.f32.mrf.mxu0
    %v4791 = vadd.f32 %v4678, %v4790
    %4792 = vmatmul.f32.gmra.mxu0 %v2804
    %v4793 = vpop.f32.mrf.mxu0
    %v4794 = vadd.f32 %v4681, %v4793
    %4795 = vmatmul.f32.gmra.mxu0 %v2806
    %v4796 = vpop.f32.mrf.mxu0
    %v4797 = vadd.f32 %v4684, %v4796
    %4798 = vmatmul.f32.gmra.mxu0 %v2808
    %v4799 = vpop.f32.mrf.mxu0
    %v4800 = vadd.f32 %v4687, %v4799
    %4801 = vmatmul.f32.gmra.mxu0 %v2810
    %v4802 = vpop.f32.mrf.mxu0
    %v4803 = vadd.f32 %v4690, %v4802
    %4804 = vmatmul.f32.gmra.mxu0 %v2812
    %v4805 = vpop.f32.mrf.mxu0
    %v4806 = vadd.f32 %v4693, %v4805
    %4807 = vmatmul.f32.gmra.mxu0 %v2814
    %v4808 = vpop.f32.mrf.mxu0
    %v4809 = vadd.f32 %v4696, %v4808
    %4810 = vmatmul.f32.gmra.mxu0 %v2816
    %v4811 = vpop.f32.mrf.mxu0
    %v4812 = vadd.f32 %v4699, %v4811
    %4813 = vmatmul.f32.gmra.mxu0 %v2818
    %v4814 = vpop.f32.mrf.mxu0
    %v4815 = vadd.f32 %v4702, %v4814
    %4816 = vmatmul.f32.gmra.mxu0 %v2820
    %v4817 = vpop.f32.mrf.mxu0
    %v4818 = vadd.f32 %v4705, %v4817
    %4819 = vmatmul.f32.gmra.mxu0 %v2822
    %v4820 = vpop.f32.mrf.mxu0
    %v4821 = vadd.f32 %v4708, %v4820
    %4822 = vdwg.mxu0
    %v4823 = vtanh.pop %v3146
    %v4824 = vtanh.pop %v3372
    %v4825 = vtanh.pop %v3598
    %v4826 = vtanh.pop %v3824
    %v4827 = vtanh.pop %v4050
    %v4828 = vtanh.pop %v4276
    %v4829 = vtanh.pop %v4502
    %v4830 = vtanh.pop %v4728
    %v4831 = vtanh.pop %v3149
    %v4832 = vtanh.pop %v3375
    %v4833 = vtanh.pop %v3601
    %v4834 = vtanh.pop %v3827
    %v4835 = vtanh.pop %v4053
    %v4836 = vtanh.pop %v4279
    %v4837 = vtanh.pop %v4505
    %v4838 = vtanh.pop %v4731
    %v4839 = vtanh.pop %v3152
    %v4840 = vtanh.pop %v3378
    %v4841 = vtanh.pop %v3604
    %v4842 = vtanh.pop %v3830
    %v4843 = vtanh.pop %v4056
    %v4844 = vtanh.pop %v4282
    %v4845 = vtanh.pop %v4508
    %v4846 = vtanh.pop %v4734
    %v4847 = vtanh.pop %v3155
    %v4848 = vtanh.pop %v3381
    %v4849 = vtanh.pop %v3607
    %v4850 = vtanh.pop %v3833
    %v4851 = vtanh.pop %v4059
    %v4852 = vtanh.pop %v4285
    %v4853 = vtanh.pop %v4511
    %v4854 = vtanh.pop %v4737
    %v4855 = vtanh.pop %v3158
    %v4856 = vtanh.pop %v3384
    %v4857 = vtanh.pop %v3610
    %v4858 = vtanh.pop %v3836
    %v4859 = vtanh.pop %v4062
    %v4860 = vtanh.pop %v4288
    %v4861 = vtanh.pop %v4514
    %v4862 = vtanh.pop %v4740
    %v4863 = vtanh.pop %v3161
    %v4864 = vtanh.pop %v3387
    %v4865 = vtanh.pop %v3613
    %v4866 = vtanh.pop %v3839
    %v4867 = vtanh.pop %v4065
    %v4868 = vtanh.pop %v4291
    %v4869 = vtanh.pop %v4517
    %v4870 = vtanh.pop %v4743
    %v4871 = vtanh.pop %v3164
    %v4872 = vtanh.pop %v3390
    %v4873 = vtanh.pop %v3616
    %v4874 = vtanh.pop %v3842
    %v4875 = vtanh.pop %v4068
    %v4876 = vtanh.pop %v4294
    %v4877 = vtanh.pop %v4520
    %v4878 = vtanh.pop %v4746
    %v4879 = vtanh.pop %v3167
    %v4880 = vtanh.pop %v3393
    %v4881 = vtanh.pop %v3619
    %v4882 = vtanh.pop %v3845
    %v4883 = vtanh.pop %v4071
    %v4884 = vtanh.pop %v4297
    %v4885 = vtanh.pop %v4523
    %v4886 = vtanh.pop %v4749
    %v4887 = vtanh.pop %v3170
    %v4888 = vtanh.pop %v3396
    %v4889 = vtanh.pop %v3622
    %v4890 = vtanh.pop %v3848
    %v4891 = vtanh.pop %v4074
    %v4892 = vtanh.pop %v4300
    %v4893 = vtanh.pop %v4526
    %v4894 = vtanh.pop %v4752
    %v4895 = vtanh.pop %v3173
    %v4896 = vtanh.pop %v3399
    %v4897 = vtanh.pop %v3625
    %v4898 = vtanh.pop %v3851
    %v4899 = vtanh.pop %v4077
    %v4900 = vtanh.pop %v4303
    %v4901 = vtanh.pop %v4529
    %v4902 = vtanh.pop %v4755
    %v4903 = vtanh.pop %v3176
    %v4904 = vtanh.pop %v3402
    %v4905 = vtanh.pop %v3628
    %v4906 = vtanh.pop %v3854
    %v4907 = vtanh.pop %v4080
    %v4908 = vtanh.pop %v4306
    %v4909 = vtanh.pop %v4532
    %v4910 = vtanh.pop %v4758
    %v4911 = vtanh.pop %v3179
    %v4912 = vtanh.pop %v3405
    %v4913 = vtanh.pop %v3631
    %v4914 = vtanh.pop %v3857
    %v4915 = vtanh.pop %v4083
    %v4916 = vtanh.pop %v4309
    %v4917 = vtanh.pop %v4535
    %v4918 = vtanh.pop %v4761
    %v4919 = vtanh.pop %v3182
    %v4920 = vtanh.pop %v3408
    %v4921 = vtanh.pop %v3634
    %v4922 = vtanh.pop %v3860
    %v4923 = vtanh.pop %v4086
    %v4924 = vtanh.pop %v4312
    %v4925 = vtanh.pop %v4538
    %v4926 = vtanh.pop %v4764
    %v4927 = vtanh.pop %v3185
    %v4928 = vtanh.pop %v3411
    %v4929 = vtanh.pop %v3637
    %v4930 = vtanh.pop %v3863
    %v4931 = vtanh.pop %v4089
    %v4932 = vtanh.pop %v4315
    %v4933 = vtanh.pop %v4541
    %v4934 = vtanh.pop %v4767
    %v4935 = vtanh.pop %v3188
    %v4936 = vtanh.pop %v3414
    %v4937 = vtanh.pop %v3640
    %v4938 = vtanh.pop %v3866
    %v4939 = vtanh.pop %v4092
    %v4940 = vtanh.pop %v4318
    %v4941 = vtanh.pop %v4544
    %v4942 = vtanh.pop %v4770
    %v4943 = vtanh.pop %v3191
    %v4944 = vtanh.pop %v3417
    %v4945 = vtanh.pop %v3643
    %v4946 = vtanh.pop %v3869
    %v4947 = vtanh.pop %v4095
    %v4948 = vtanh.pop %v4321
    %v4949 = vtanh.pop %v4547
    %v4950 = vtanh.pop %v4773
    %v4951 = vtanh.pop %v3194
    %v4952 = vtanh.pop %v3420
    %v4953 = vtanh.pop %v3646
    %v4954 = vtanh.pop %v3872
    %v4955 = vtanh.pop %v4098
    %v4956 = vtanh.pop %v4324
    %v4957 = vtanh.pop %v4550
    %v4958 = vtanh.pop %v4776
    %v4959 = vtanh.pop %v3197
    %v4960 = vtanh.pop %v3423
    %v4961 = vtanh.pop %v3649
    %v4962 = vtanh.pop %v3875
    %v4963 = vtanh.pop %v4101
    %v4964 = vtanh.pop %v4327
    %v4965 = vtanh.pop %v4553
    %v4966 = vtanh.pop %v4779
    %v4967 = vtanh.pop %v3200
    %v4968 = vtanh.pop %v3426
    %v4969 = vtanh.pop %v3652
    %v4970 = vtanh.pop %v3878
    %v4971 = vtanh.pop %v4104
    %v4972 = vtanh.pop %v4330
    %v4973 = vtanh.pop %v4556
    %v4974 = vtanh.pop %v4782
    %v4975 = vtanh.pop %v3203
    %v4976 = vtanh.pop %v3429
    %v4977 = vtanh.pop %v3655
    %v4978 = vtanh.pop %v3881
    %v4979 = vtanh.pop %v4107
    %v4980 = vtanh.pop %v4333
    %v4981 = vtanh.pop %v4559
    %v4982 = vtanh.pop %v4785
    %v4983 = vtanh.pop %v3206
    %v4984 = vtanh.pop %v3432
    %v4985 = vtanh.pop %v3658
    %v4986 = vtanh.pop %v3884
    %v4987 = vtanh.pop %v4110
    %v4988 = vtanh.pop %v4336
    %v4989 = vtanh.pop %v4562
    %v4990 = vtanh.pop %v4788
    %v4991 = vtanh.pop %v3209
    %v4992 = vtanh.pop %v3435
    %v4993 = vtanh.pop %v3661
    %v4994 = vtanh.pop %v3887
    %v4995 = vtanh.pop %v4113
    %v4996 = vtanh.pop %v4339
    %v4997 = vtanh.pop %v4565
    %v4998 = vtanh.pop %v4791
    %v4999 = vtanh.pop %v3212
    %v5000 = vtanh.pop %v3438
    %v5001 = vtanh.pop %v3664
    %v5002 = vtanh.pop %v3890
    %v5003 = vtanh.pop %v4116
    %v5004 = vtanh.pop %v4342
    %v5005 = vtanh.pop %v4568
    %v5006 = vtanh.pop %v4794
    %v5007 = vtanh.pop %v3215
    %v5008 = vtanh.pop %v3441
    %v5009 = vtanh.pop %v3667
    %v5010 = vtanh.pop %v3893
    %v5011 = vtanh.pop %v4119
    %v5012 = vtanh.pop %v4345
    %v5013 = vtanh.pop %v4571
    %v5014 = vtanh.pop %v4797
    %v5015 = vtanh.pop %v3218
    %v5016 = vtanh.pop %v3444
    %v5017 = vtanh.pop %v3670
    %v5018 = vtanh.pop %v3896
    %v5019 = vtanh.pop %v4122
    %v5020 = vtanh.pop %v4348
    %v5021 = vtanh.pop %v4574
    %v5022 = vtanh.pop %v4800
    %v5023 = vtanh.pop %v3221
    %v5024 = vtanh.pop %v3447
    %v5025 = vtanh.pop %v3673
    %v5026 = vtanh.pop %v3899
    %v5027 = vtanh.pop %v4125
    %v5028 = vtanh.pop %v4351
    %v5029 = vtanh.pop %v4577
    %v5030 = vtanh.pop %v4803
    %v5031 = vtanh.pop %v3224
    %v5032 = vtanh.pop %v3450
    %v5033 = vtanh.pop %v3676
    %v5034 = vtanh.pop %v3902
    %v5035 = vtanh.pop %v4128
    %v5036 = vtanh.pop %v4354
    %v5037 = vtanh.pop %v4580
    %v5038 = vtanh.pop %v4806
    %v5039 = vtanh.pop %v3227
    %v5040 = vtanh.pop %v3453
    %v5041 = vtanh.pop %v3679
    %v5042 = vtanh.pop %v3905
    %v5043 = vtanh.pop %v4131
    %v5044 = vtanh.pop %v4357
    %v5045 = vtanh.pop %v4583
    %v5046 = vtanh.pop %v4809
    %v5047 = vtanh.pop %v3230
    %v5048 = vtanh.pop %v3456
    %v5049 = vtanh.pop %v3682
    %v5050 = vtanh.pop %v3908
    %v5051 = vtanh.pop %v4134
    %v5052 = vtanh.pop %v4360
    %v5053 = vtanh.pop %v4586
    %v5054 = vtanh.pop %v4812
    %v5055 = vtanh.pop %v3233
    %v5056 = vtanh.pop %v3459
    %v5057 = vtanh.pop %v3685
    %v5058 = vtanh.pop %v3911
    %v5059 = vtanh.pop %v4137
    %v5060 = vtanh.pop %v4363
    %v5061 = vtanh.pop %v4589
    %v5062 = vtanh.pop %v4815
    %v5063 = vtanh.pop %v3236
    %v5064 = vtanh.pop %v3462
    %v5065 = vtanh.pop %v3688
    %v5066 = vtanh.pop %v3914
    %v5067 = vtanh.pop %v4140
    %v5068 = vtanh.pop %v4366
    %v5069 = vtanh.pop %v4592
    %v5070 = vtanh.pop %v4818
    %v5071 = vtanh.pop %v3239
    %v5072 = vtanh.pop %v3465
    %v5073 = vtanh.pop %v3691
    %v5074 = vtanh.pop %v3917
    %v5075 = vtanh.pop %v4143
    %v5076 = vtanh.pop %v4369
    %v5077 = vtanh.pop %v4595
    %v5078 = vtanh.pop %v4821
    %v5079 = vld [vmem:[%s6] sm:$0xff]
    %v5080 = vld [vmem:[%s6 + $0x8] sm:$0xff]
    %v5081 = vld [vmem:[%s6 + $0x10] sm:$0xff]
    %v5082 = vld [vmem:[%s6 + $0x18] sm:$0xff]
    %v5083 = vld [vmem:[%s6 + $0x20] sm:$0xff]
    %v5084 = vld [vmem:[%s6 + $0x28] sm:$0xff]
    %v5085 = vld [vmem:[%s6 + $0x30] sm:$0xff]
    %v5086 = vld [vmem:[%s6 + $0x38] sm:$0xff]
    %v5087 = vld [vmem:[%s6 + $0x40] sm:$0xff]
    %v5088 = vld [vmem:[%s6 + $0x48] sm:$0xff]
    %v5089 = vld [vmem:[%s6 + $0x50] sm:$0xff]
    %v5090 = vld [vmem:[%s6 + $0x58] sm:$0xff]
    %v5091 = vld [vmem:[%s6 + $0x60] sm:$0xff]
    %v5092 = vld [vmem:[%s6 + $0x68] sm:$0xff]
    %v5093 = vld [vmem:[%s6 + $0x70] sm:$0xff]
    %v5094 = vld [vmem:[%s6 + $0x78] sm:$0xff]
    %v5095 = vld [vmem:[%s6 + $0x80] sm:$0xff]
    %v5096 = vld [vmem:[%s6 + $0x88] sm:$0xff]
    %v5097 = vld [vmem:[%s6 + $0x90] sm:$0xff]
    %v5098 = vld [vmem:[%s6 + $0x98] sm:$0xff]
    %v5099 = vld [vmem:[%s7] sm:$0xff]
    %v5100 = vld [vmem:[%s7 + $0x8] sm:$0xff]
    %v5101 = vld [vmem:[%s7 + $0x10] sm:$0xff]
    %v5102 = vld [vmem:[%s7 + $0x18] sm:$0xff]
    %v5103 = vld [vmem:[%s7 + $0x20] sm:$0xff]
    %v5104 = vld [vmem:[%s7 + $0x28] sm:$0xff]
    %v5105 = vld [vmem:[%s7 + $0x30] sm:$0xff]
    %v5106 = vld [vmem:[%s7 + $0x38] sm:$0xff]
    %v5107 = vld [vmem:[%s7 + $0x40] sm:$0xff]
    %v5108 = vld [vmem:[%s7 + $0x48] sm:$0xff]
    %5110 = vset.pattern.permute.xlu0 0
    %5111 = vperm.xlu0 %5110, %v5099
    %v5112 = vpop.permute.xlu0 %5111
    %5115 = vset.pattern.permute.xlu0 0
    %5116 = vperm.xlu0 %5115, %v5100
    %v5117 = vpop.permute.xlu0 %5116
    %5120 = vset.pattern.permute.xlu0 0
    %5121 = vperm.xlu0 %5120, %v5101
    %v5122 = vpop.permute.xlu0 %5121
    %5125 = vset.pattern.permute.xlu0 0
    %5126 = vperm.xlu0 %5125, %v5102
    %v5127 = vpop.permute.xlu0 %5126
    %5130 = vset.pattern.permute.xlu0 0
    %5131 = vperm.xlu0 %5130, %v5103
    %v5132 = vpop.permute.xlu0 %5131
    %5135 = vset.pattern.permute.xlu0 0
    %5136 = vperm.xlu0 %5135, %v5104
    %v5137 = vpop.permute.xlu0 %5136
    %5140 = vset.pattern.permute.xlu0 0
    %5141 = vperm.xlu0 %5140, %v5105
    %v5142 = vpop.permute.xlu0 %5141
    %5145 = vset.pattern.permute.xlu0 0
    %5146 = vperm.xlu0 %5145, %v5106
    %v5147 = vpop.permute.xlu0 %5146
    %5150 = vset.pattern.permute.xlu0 0
    %5151 = vperm.xlu0 %5150, %v5107
    %v5152 = vpop.permute.xlu0 %5151
    %5155 = vset.pattern.permute.xlu0 0
    %5156 = vperm.xlu0 %5155, %v5108
    %v5157 = vpop.permute.xlu0 %5156
    %5159 = vmatpush.msra.mxu0 %v4943
    %5160 = vmatpush.msra.mxu0 %v4935
    %5161 = vmatpush.msra.mxu0 %v4927
    %5162 = vmatpush.msra.mxu0 %v4919
    %5163 = vmatpush.msra.mxu0 %v4911
    %5164 = vmatpush.msra.mxu0 %v4903
    %5165 = vmatpush.msra.mxu0 %v4895
    %5166 = vmatpush.msra.mxu0 %v4887
    %5167 = vmatpush.msra.mxu0 %v4879
    %5168 = vmatpush.msra.mxu0 %v4871
    %5169 = vmatpush.msra.mxu0 %v4863
    %5170 = vmatpush.msra.mxu0 %v4855
    %5171 = vmatpush.msra.mxu0 %v4847
    %5172 = vmatpush.msra.mxu0 %v4839
    %5173 = vmatpush.msra.mxu0 %v4831
    %5174 = vmatpush.msra.mxu0 %v4823
    %5175 = vmatmul.f32.gmra.mxu0 %v5079
    %v5176 = vpop.f32.mrf.mxu0
    %v5177 = vadd.f32 %v5112, %v5176
    %5178 = vmatmul.f32.gmra.mxu0 %v5081
    %v5179 = vpop.f32.mrf.mxu0
    %v5180 = vadd.f32 %v5117, %v5179
    %5181 = vmatmul.f32.gmra.mxu0 %v5083
    %v5182 = vpop.f32.mrf.mxu0
    %v5183 = vadd.f32 %v5122, %v5182
    %5184 = vmatmul.f32.gmra.mxu0 %v5085
    %v5185 = vpop.f32.mrf.mxu0
    %v5186 = vadd.f32 %v5127, %v5185
    %5187 = vmatmul.f32.gmra.mxu0 %v5087
    %v5188 = vpop.f32.mrf.mxu0
    %v5189 = vadd.f32 %v5132, %v5188
    %5190 = vmatmul.f32.gmra.mxu0 %v5089
    %v5191 = vpop.f32.mrf.mxu0
    %v5192 = vadd.f32 %v5137, %v5191
    %5193 = vmatmul.f32.gmra.mxu0 %v5091
    %v5194 = vpop.f32.mrf.mxu0
    %v5195 = vadd.f32 %v5142, %v5194
    %5196 = vmatmul.f32.gmra.mxu0 %v5093
    %v5197 = vpop.f32.mrf.mxu0
    %v5198 = vadd.f32 %v5147, %v5197
    %5199 = vmatmul.f32.gmra.mxu0 %v5095
    %v5200 = vpop.f32.mrf.mxu0
    %v5201 = vadd.f32 %v5152, %v5200
    %5202 = vmatmul.f32.gmra.mxu0 %v5097
    %v5203 = vpop.f32.mrf.mxu0
    %v5204 = vadd.f32 %v5157, %v5203
    %5205 = vdwg.mxu0
    %5206 = vmatpush.msra.mxu0 %v5071
    %5207 = vmatpush.msra.mxu0 %v5063
    %5208 = vmatpush.msra.mxu0 %v5055
    %5209 = vmatpush.msra.mxu0 %v5047
    %5210 = vmatpush.msra.mxu0 %v5039
    %5211 = vmatpush.msra.mxu0 %v5031
    %5212 = vmatpush.msra.mxu0 %v5023
    %5213 = vmatpush.msra.mxu0 %v5015
    %5214 = vmatpush.msra.mxu0 %v5007
    %5215 = vmatpush.msra.mxu0 %v4999
    %5216 = vmatpush.msra.mxu0 %v4991
    %5217 = vmatpush.msra.mxu0 %v4983
    %5218 = vmatpush.msra.mxu0 %v4975
    %5219 = vmatpush.msra.mxu0 %v4967
    %5220 = vmatpush.msra.mxu0 %v4959
    %5221 = vmatpush.msra.mxu0 %v4951
    %5222 = vmatmul.f32.gmra.mxu0 %v5080
    %v5223 = vpop.f32.mrf.mxu0
    %v5224 = vadd.f32 %v5177, %v5223
    %5225 = vmatmul.f32.gmra.mxu0 %v5082
    %v5226 = vpop.f32.mrf.mxu0
    %v5227 = vadd.f32 %v5180, %v5226
    %5228 = vmatmul.f32.gmra.mxu0 %v5084
    %v5229 = vpop.f32.mrf.mxu0
    %v5230 = vadd.f32 %v5183, %v5229
    %5231 = vmatmul.f32.gmra.mxu0 %v5086
    %v5232 = vpop.f32.mrf.mxu0
    %v5233 = vadd.f32 %v5186, %v5232
    %5234 = vmatmul.f32.gmra.mxu0 %v5088
    %v5235 = vpop.f32.mrf.mxu0
    %v5236 = vadd.f32 %v5189, %v5235
    %5237 = vmatmul.f32.gmra.mxu0 %v5090
    %v5238 = vpop.f32.mrf.mxu0
    %v5239 = vadd.f32 %v5192, %v5238
    %5240 = vmatmul.f32.gmra.mxu0 %v5092
    %v5241 = vpop.f32.mrf.mxu0
    %v5242 = vadd.f32 %v5195, %v5241
    %5243 = vmatmul.f32.gmra.mxu0 %v5094
    %v5244 = vpop.f32.mrf.mxu0
    %v5245 = vadd.f32 %v5198, %v5244
    %5246 = vmatmul.f32.gmra.mxu0 %v5096
    %v5247 = vpop.f32.mrf.mxu0
    %v5248 = vadd.f32 %v5201, %v5247
    %5249 = vmatmul.f32.gmra.mxu0 %v5098
    %v5250 = vpop.f32.mrf.mxu0
    %v5251 = vadd.f32 %v5204, %v5250
    %5252 = vdwg.mxu0
    %5253 = vmatpush.msra.mxu0 %v4944
    %5254 = vmatpush.msra.mxu0 %v4936
    %5255 = vmatpush.msra.mxu0 %v4928
    %5256 = vmatpush.msra.mxu0 %v4920
    %5257 = vmatpush.msra.mxu0 %v4912
    %5258 = vmatpush.msra.mxu0 %v4904
    %5259 = vmatpush.msra.mxu0 %v4896
    %5260 = vmatpush.msra.mxu0 %v4888
    %5261 = vmatpush.msra.mxu0 %v4880
    %5262 = vmatpush.msra.mxu0 %v4872
    %5263 = vmatpush.msra.mxu0 %v4864
    %5264 = vmatpush.msra.mxu0 %v4856
    %5265 = vmatpush.msra.mxu0 %v4848
    %5266 = vmatpush.msra.mxu0 %v4840
    %5267 = vmatpush.msra.mxu0 %v4832
    %5268 = vmatpush.msra.mxu0 %v4824
    %5269 = vmatmul.f32.gmra.mxu0 %v5079
    %v5270 = vpop.f32.mrf.mxu0
    %v5271 = vadd.f32 %v5112, %v5270
    %5272 = vmatmul.f32.gmra.mxu0 %v5081
    %v5273 = vpop.f32.mrf.mxu0
    %v5274 = vadd.f32 %v5117, %v5273
    %5275 = vmatmul.f32.gmra.mxu0 %v5083
    %v5276 = vpop.f32.mrf.mxu0
    %v5277 = vadd.f32 %v5122, %v5276
    %5278 = vmatmul.f32.gmra.mxu0 %v5085
    %v5279 = vpop.f32.mrf.mxu0
    %v5280 = vadd.f32 %v5127, %v5279
    %5281 = vmatmul.f32.gmra.mxu0 %v5087
    %v5282 = vpop.f32.mrf.mxu0
    %v5283 = vadd.f32 %v5132, %v5282
    %5284 = vmatmul.f32.gmra.mxu0 %v5089
    %v5285 = vpop.f32.mrf.mxu0
    %v5286 = vadd.f32 %v5137, %v5285
    %5287 = vmatmul.f32.gmra.mxu0 %v5091
    %v5288 = vpop.f32.mrf.mxu0
    %v5289 = vadd.f32 %v5142, %v5288
    %5290 = vmatmul.f32.gmra.mxu0 %v5093
    %v5291 = vpop.f32.mrf.mxu0
    %v5292 = vadd.f32 %v5147, %v5291
    %5293 = vmatmul.f32.gmra.mxu0 %v5095
    %v5294 = vpop.f32.mrf.mxu0
    %v5295 = vadd.f32 %v5152, %v5294
    %5296 = vmatmul.f32.gmra.mxu0 %v5097
    %v5297 = vpop.f32.mrf.mxu0
    %v5298 = vadd.f32 %v5157, %v5297
    %5299 = vdwg.mxu0
    %5300 = vmatpush.msra.mxu0 %v5072
    %5301 = vmatpush.msra.mxu0 %v5064
    %5302 = vmatpush.msra.mxu0 %v5056
    %5303 = vmatpush.msra.mxu0 %v5048
    %5304 = vmatpush.msra.mxu0 %v5040
    %5305 = vmatpush.msra.mxu0 %v5032
    %5306 = vmatpush.msra.mxu0 %v5024
    %5307 = vmatpush.msra.mxu0 %v5016
    %5308 = vmatpush.msra.mxu0 %v5008
    %5309 = vmatpush.msra.mxu0 %v5000
    %5310 = vmatpush.msra.mxu0 %v4992
    %5311 = vmatpush.msra.mxu0 %v4984
    %5312 = vmatpush.msra.mxu0 %v4976
    %5313 = vmatpush.msra.mxu0 %v4968
    %5314 = vmatpush.msra.mxu0 %v4960
    %5315 = vmatpush.msra.mxu0 %v4952
    %5316 = vmatmul.f32.gmra.mxu0 %v5080
    %v5317 = vpop.f32.mrf.mxu0
    %v5318 = vadd.f32 %v5271, %v5317
    %5319 = vmatmul.f32.gmra.mxu0 %v5082
    %v5320 = vpop.f32.mrf.mxu0
    %v5321 = vadd.f32 %v5274, %v5320
    %5322 = vmatmul.f32.gmra.mxu0 %v5084
    %v5323 = vpop.f32.mrf.mxu0
    %v5324 = vadd.f32 %v5277, %v5323
    %5325 = vmatmul.f32.gmra.mxu0 %v5086
    %v5326 = vpop.f32.mrf.mxu0
    %v5327 = vadd.f32 %v5280, %v5326
    %5328 = vmatmul.f32.gmra.mxu0 %v5088
    %v5329 = vpop.f32.mrf.mxu0
    %v5330 = vadd.f32 %v5283, %v5329
    %5331 = vmatmul.f32.gmra.mxu0 %v5090
    %v5332 = vpop.f32.mrf.mxu0
    %v5333 = vadd.f32 %v5286, %v5332
    %5334 = vmatmul.f32.gmra.mxu0 %v5092
    %v5335 = vpop.f32.mrf.mxu0
    %v5336 = vadd.f32 %v5289, %v5335
    %5337 = vmatmul.f32.gmra.mxu0 %v5094
    %v5338 = vpop.f32.mrf.mxu0
    %v5339 = vadd.f32 %v5292, %v5338
    %5340 = vmatmul.f32.gmra.mxu0 %v5096
    %v5341 = vpop.f32.mrf.mxu0
    %v5342 = vadd.f32 %v5295, %v5341
    %5343 = vmatmul.f32.gmra.mxu0 %v5098
    %v5344 = vpop.f32.mrf.mxu0
    %v5345 = vadd.f32 %v5298, %v5344
    %5346 = vdwg.mxu0
    %5347 = vmatpush.msra.mxu0 %v4945
    %5348 = vmatpush.msra.mxu0 %v4937
    %5349 = vmatpush.msra.mxu0 %v4929
    %5350 = vmatpush.msra.mxu0 %v4921
    %5351 = vmatpush.msra.mxu0 %v4913
    %5352 = vmatpush.msra.mxu0 %v4905
    %5353 = vmatpush.msra.mxu0 %v4897
    %5354 = vmatpush.msra.mxu0 %v4889
    %5355 = vmatpush.msra.mxu0 %v4881
    %5356 = vmatpush.msra.mxu0 %v4873
    %5357 = vmatpush.msra.mxu0 %v4865
    %5358 = vmatpush.msra.mxu0 %v4857
    %5359 = vmatpush.msra.mxu0 %v4849
    %5360 = vmatpush.msra.mxu0 %v4841
    %5361 = vmatpush.msra.mxu0 %v4833
    %5362 = vmatpush.msra.mxu0 %v4825
    %5363 = vmatmul.f32.gmra.mxu0 %v5079
    %v5364 = vpop.f32.mrf.mxu0
    %v5365 = vadd.f32 %v5112, %v5364
    %5366 = vmatmul.f32.gmra.mxu0 %v5081
    %v5367 = vpop.f32.mrf.mxu0
    %v5368 = vadd.f32 %v5117, %v5367
    %5369 = vmatmul.f32.gmra.mxu0 %v5083
    %v5370 = vpop.f32.mrf.mxu0
    %v5371 = vadd.f32 %v5122, %v5370
    %5372 = vmatmul.f32.gmra.mxu0 %v5085
    %v5373 = vpop.f32.mrf.mxu0
    %v5374 = vadd.f32 %v5127, %v5373
    %5375 = vmatmul.f32.gmra.mxu0 %v5087
    %v5376 = vpop.f32.mrf.mxu0
    %v5377 = vadd.f32 %v5132, %v5376
    %5378 = vmatmul.f32.gmra.mxu0 %v5089
    %v5379 = vpop.f32.mrf.mxu0
    %v5380 = vadd.f32 %v5137, %v5379
    %5381 = vmatmul.f32.gmra.mxu0 %v5091
    %v5382 = vpop.f32.mrf.mxu0
    %v5383 = vadd.f32 %v5142, %v5382
    %5384 = vmatmul.f32.gmra.mxu0 %v5093
    %v5385 = vpop.f32.mrf.mxu0
    %v5386 = vadd.f32 %v5147, %v5385
    %5387 = vmatmul.f32.gmra.mxu0 %v5095
    %v5388 = vpop.f32.mrf.mxu0
    %v5389 = vadd.f32 %v5152, %v5388
    %5390 = vmatmul.f32.gmra.mxu0 %v5097
    %v5391 = vpop.f32.mrf.mxu0
    %v5392 = vadd.f32 %v5157, %v5391
    %5393 = vdwg.mxu0
    %5394 = vmatpush.msra.mxu0 %v5073
    %5395 = vmatpush.msra.mxu0 %v5065
    %5396 = vmatpush.msra.mxu0 %v5057
    %5397 = vmatpush.msra.mxu0 %v5049
    %5398 = vmatpush.msra.mxu0 %v5041
    %5399 = vmatpush.msra.mxu0 %v5033
    %5400 = vmatpush.msra.mxu0 %v5025
    %5401 = vmatpush.msra.mxu0 %v5017
    %5402 = vmatpush.msra.mxu0 %v5009
    %5403 = vmatpush.msra.mxu0 %v5001
    %5404 = vmatpush.msra.mxu0 %v4993
    %5405 = vmatpush.msra.mxu0 %v4985
    %5406 = vmatpush.msra.mxu0 %v4977
    %5407 = vmatpush.msra.mxu0 %v4969
    %5408 = vmatpush.msra.mxu0 %v4961
    %5409 = vmatpush.msra.mxu0 %v4953
    %5410 = vmatmul.f32.gmra.mxu0 %v5080
    %v5411 = vpop.f32.mrf.mxu0
    %v5412 = vadd.f32 %v5365, %v5411
    %5413 = vmatmul.f32.gmra.mxu0 %v5082
    %v5414 = vpop.f32.mrf.mxu0
    %v5415 = vadd.f32 %v5368, %v5414
    %5416 = vmatmul.f32.gmra.mxu0 %v5084
    %v5417 = vpop.f32.mrf.mxu0
    %v5418 = vadd.f32 %v5371, %v5417
    %5419 = vmatmul.f32.gmra.mxu0 %v5086
    %v5420 = vpop.f32.mrf.mxu0
    %v5421 = vadd.f32 %v5374, %v5420
    %5422 = vmatmul.f32.gmra.mxu0 %v5088
    %v5423 = vpop.f32.mrf.mxu0
    %v5424 = vadd.f32 %v5377, %v5423
    %5425 = vmatmul.f32.gmra.mxu0 %v5090
    %v5426 = vpop.f32.mrf.mxu0
    %v5427 = vadd.f32 %v5380, %v5426
    %5428 = vmatmul.f32.gmra.mxu0 %v5092
    %v5429 = vpop.f32.mrf.mxu0
    %v5430 = vadd.f32 %v5383, %v5429
    %5431 = vmatmul.f32.gmra.mxu0 %v5094
    %v5432 = vpop.f32.mrf.mxu0
    %v5433 = vadd.f32 %v5386, %v5432
    %5434 = vmatmul.f32.gmra.mxu0 %v5096
    %v5435 = vpop.f32.mrf.mxu0
    %v5436 = vadd.f32 %v5389, %v5435
    %5437 = vmatmul.f32.gmra.mxu0 %v5098
    %v5438 = vpop.f32.mrf.mxu0
    %v5439 = vadd.f32 %v5392, %v5438
    %5440 = vdwg.mxu0
    %5441 = vmatpush.msra.mxu0 %v4946
    %5442 = vmatpush.msra.mxu0 %v4938
    %5443 = vmatpush.msra.mxu0 %v4930
    %5444 = vmatpush.msra.mxu0 %v4922
    %5445 = vmatpush.msra.mxu0 %v4914
    %5446 = vmatpush.msra.mxu0 %v4906
    %5447 = vmatpush.msra.mxu0 %v4898
    %5448 = vmatpush.msra.mxu0 %v4890
    %5449 = vmatpush.msra.mxu0 %v4882
    %5450 = vmatpush.msra.mxu0 %v4874
    %5451 = vmatpush.msra.mxu0 %v4866
    %5452 = vmatpush.msra.mxu0 %v4858
    %5453 = vmatpush.msra.mxu0 %v4850
    %5454 = vmatpush.msra.mxu0 %v4842
    %5455 = vmatpush.msra.mxu0 %v4834
    %5456 = vmatpush.msra.mxu0 %v4826
    %5457 = vmatmul.f32.gmra.mxu0 %v5079
    %v5458 = vpop.f32.mrf.mxu0
    %v5459 = vadd.f32 %v5112, %v5458
    %5460 = vmatmul.f32.gmra.mxu0 %v5081
    %v5461 = vpop.f32.mrf.mxu0
    %v5462 = vadd.f32 %v5117, %v5461
    %5463 = vmatmul.f32.gmra.mxu0 %v5083
    %v5464 = vpop.f32.mrf.mxu0
    %v5465 = vadd.f32 %v5122, %v5464
    %5466 = vmatmul.f32.gmra.mxu0 %v5085
    %v5467 = vpop.f32.mrf.mxu0
    %v5468 = vadd.f32 %v5127, %v5467
    %5469 = vmatmul.f32.gmra.mxu0 %v5087
    %v5470 = vpop.f32.mrf.mxu0
    %v5471 = vadd.f32 %v5132, %v5470
    %5472 = vmatmul.f32.gmra.mxu0 %v5089
    %v5473 = vpop.f32.mrf.mxu0
    %v5474 = vadd.f32 %v5137, %v5473
    %5475 = vmatmul.f32.gmra.mxu0 %v5091
    %v5476 = vpop.f32.mrf.mxu0
    %v5477 = vadd.f32 %v5142, %v5476
    %5478 = vmatmul.f32.gmra.mxu0 %v5093
    %v5479 = vpop.f32.mrf.mxu0
    %v5480 = vadd.f32 %v5147, %v5479
    %5481 = vmatmul.f32.gmra.mxu0 %v5095
    %v5482 = vpop.f32.mrf.mxu0
    %v5483 = vadd.f32 %v5152, %v5482
    %5484 = vmatmul.f32.gmra.mxu0 %v5097
    %v5485 = vpop.f32.mrf.mxu0
    %v5486 = vadd.f32 %v5157, %v5485
    %5487 = vdwg.mxu0
    %5488 = vmatpush.msra.mxu0 %v5074
    %5489 = vmatpush.msra.mxu0 %v5066
    %5490 = vmatpush.msra.mxu0 %v5058
    %5491 = vmatpush.msra.mxu0 %v5050
    %5492 = vmatpush.msra.mxu0 %v5042
    %5493 = vmatpush.msra.mxu0 %v5034
    %5494 = vmatpush.msra.mxu0 %v5026
    %5495 = vmatpush.msra.mxu0 %v5018
    %5496 = vmatpush.msra.mxu0 %v5010
    %5497 = vmatpush.msra.mxu0 %v5002
    %5498 = vmatpush.msra.mxu0 %v4994
    %5499 = vmatpush.msra.mxu0 %v4986
    %5500 = vmatpush.msra.mxu0 %v4978
    %5501 = vmatpush.msra.mxu0 %v4970
    %5502 = vmatpush.msra.mxu0 %v4962
    %5503 = vmatpush.msra.mxu0 %v4954
    %5504 = vmatmul.f32.gmra.mxu0 %v5080
    %v5505 = vpop.f32.mrf.mxu0
    %v5506 = vadd.f32 %v5459, %v5505
    %5507 = vmatmul.f32.gmra.mxu0 %v5082
    %v5508 = vpop.f32.mrf.mxu0
    %v5509 = vadd.f32 %v5462, %v5508
    %5510 = vmatmul.f32.gmra.mxu0 %v5084
    %v5511 = vpop.f32.mrf.mxu0
    %v5512 = vadd.f32 %v5465, %v5511
    %5513 = vmatmul.f32.gmra.mxu0 %v5086
    %v5514 = vpop.f32.mrf.mxu0
    %v5515 = vadd.f32 %v5468, %v5514
    %5516 = vmatmul.f32.gmra.mxu0 %v5088
    %v5517 = vpop.f32.mrf.mxu0
    %v5518 = vadd.f32 %v5471, %v5517
    %5519 = vmatmul.f32.gmra.mxu0 %v5090
    %v5520 = vpop.f32.mrf.mxu0
    %v5521 = vadd.f32 %v5474, %v5520
    %5522 = vmatmul.f32.gmra.mxu0 %v5092
    %v5523 = vpop.f32.mrf.mxu0
    %v5524 = vadd.f32 %v5477, %v5523
    %5525 = vmatmul.f32.gmra.mxu0 %v5094
    %v5526 = vpop.f32.mrf.mxu0
    %v5527 = vadd.f32 %v5480, %v5526
    %5528 = vmatmul.f32.gmra.mxu0 %v5096
    %v5529 = vpop.f32.mrf.mxu0
    %v5530 = vadd.f32 %v5483, %v5529
    %5531 = vmatmul.f32.gmra.mxu0 %v5098
    %v5532 = vpop.f32.mrf.mxu0
    %v5533 = vadd.f32 %v5486, %v5532
    %5534 = vdwg.mxu0
    %5535 = vmatpush.msra.mxu0 %v4947
    %5536 = vmatpush.msra.mxu0 %v4939
    %5537 = vmatpush.msra.mxu0 %v4931
    %5538 = vmatpush.msra.mxu0 %v4923
    %5539 = vmatpush.msra.mxu0 %v4915
    %5540 = vmatpush.msra.mxu0 %v4907
    %5541 = vmatpush.msra.mxu0 %v4899
    %5542 = vmatpush.msra.mxu0 %v4891
    %5543 = vmatpush.msra.mxu0 %v4883
    %5544 = vmatpush.msra.mxu0 %v4875
    %5545 = vmatpush.msra.mxu0 %v4867
    %5546 = vmatpush.msra.mxu0 %v4859
    %5547 = vmatpush.msra.mxu0 %v4851
    %5548 = vmatpush.msra.mxu0 %v4843
    %5549 = vmatpush.msra.mxu0 %v4835
    %5550 = vmatpush.msra.mxu0 %v4827
    %5551 = vmatmul.f32.gmra.mxu0 %v5079
    %v5552 = vpop.f32.mrf.mxu0
    %v5553 = vadd.f32 %v5112, %v5552
    %5554 = vmatmul.f32.gmra.mxu0 %v5081
    %v5555 = vpop.f32.mrf.mxu0
    %v5556 = vadd.f32 %v5117, %v5555
    %5557 = vmatmul.f32.gmra.mxu0 %v5083
    %v5558 = vpop.f32.mrf.mxu0
    %v5559 = vadd.f32 %v5122, %v5558
    %5560 = vmatmul.f32.gmra.mxu0 %v5085
    %v5561 = vpop.f32.mrf.mxu0
    %v5562 = vadd.f32 %v5127, %v5561
    %5563 = vmatmul.f32.gmra.mxu0 %v5087
    %v5564 = vpop.f32.mrf.mxu0
    %v5565 = vadd.f32 %v5132, %v5564
    %5566 = vmatmul.f32.gmra.mxu0 %v5089
    %v5567 = vpop.f32.mrf.mxu0
    %v5568 = vadd.f32 %v5137, %v5567
    %5569 = vmatmul.f32.gmra.mxu0 %v5091
    %v5570 = vpop.f32.mrf.mxu0
    %v5571 = vadd.f32 %v5142, %v5570
    %5572 = vmatmul.f32.gmra.mxu0 %v5093
    %v5573 = vpop.f32.mrf.mxu0
    %v5574 = vadd.f32 %v5147, %v5573
    %5575 = vmatmul.f32.gmra.mxu0 %v5095
    %v5576 = vpop.f32.mrf.mxu0
    %v5577 = vadd.f32 %v5152, %v5576
    %5578 = vmatmul.f32.gmra.mxu0 %v5097
    %v5579 = vpop.f32.mrf.mxu0
    %v5580 = vadd.f32 %v5157, %v5579
    %5581 = vdwg.mxu0
    %5582 = vmatpush.msra.mxu0 %v5075
    %5583 = vmatpush.msra.mxu0 %v5067
    %5584 = vmatpush.msra.mxu0 %v5059
    %5585 = vmatpush.msra.mxu0 %v5051
    %5586 = vmatpush.msra.mxu0 %v5043
    %5587 = vmatpush.msra.mxu0 %v5035
    %5588 = vmatpush.msra.mxu0 %v5027
    %5589 = vmatpush.msra.mxu0 %v5019
    %5590 = vmatpush.msra.mxu0 %v5011
    %5591 = vmatpush.msra.mxu0 %v5003
    %5592 = vmatpush.msra.mxu0 %v4995
    %5593 = vmatpush.msra.mxu0 %v4987
    %5594 = vmatpush.msra.mxu0 %v4979
    %5595 = vmatpush.msra.mxu0 %v4971
    %5596 = vmatpush.msra.mxu0 %v4963
    %5597 = vmatpush.msra.mxu0 %v4955
    %5598 = vmatmul.f32.gmra.mxu0 %v5080
    %v5599 = vpop.f32.mrf.mxu0
    %v5600 = vadd.f32 %v5553, %v5599
    %5601 = vmatmul.f32.gmra.mxu0 %v5082
    %v5602 = vpop.f32.mrf.mxu0
    %v5603 = vadd.f32 %v5556, %v5602
    %5604 = vmatmul.f32.gmra.mxu0 %v5084
    %v5605 = vpop.f32.mrf.mxu0
    %v5606 = vadd.f32 %v5559, %v5605
    %5607 = vmatmul.f32.gmra.mxu0 %v5086
    %v5608 = vpop.f32.mrf.mxu0
    %v5609 = vadd.f32 %v5562, %v5608
    %5610 = vmatmul.f32.gmra.mxu0 %v5088
    %v5611 = vpop.f32.mrf.mxu0
    %v5612 = vadd.f32 %v5565, %v5611
    %5613 = vmatmul.f32.gmra.mxu0 %v5090
    %v5614 = vpop.f32.mrf.mxu0
    %v5615 = vadd.f32 %v5568, %v5614
    %5616 = vmatmul.f32.gmra.mxu0 %v5092
    %v5617 = vpop.f32.mrf.mxu0
    %v5618 = vadd.f32 %v5571, %v5617
    %5619 = vmatmul.f32.gmra.mxu0 %v5094
    %v5620 = vpop.f32.mrf.mxu0
    %v5621 = vadd.f32 %v5574, %v5620
    %5622 = vmatmul.f32.gmra.mxu0 %v5096
    %v5623 = vpop.f32.mrf.mxu0
    %v5624 = vadd.f32 %v5577, %v5623
    %5625 = vmatmul.f32.gmra.mxu0 %v5098
    %v5626 = vpop.f32.mrf.mxu0
    %v5627 = vadd.f32 %v5580, %v5626
    %5628 = vdwg.mxu0
    %5629 = vmatpush.msra.mxu0 %v4948
    %5630 = vmatpush.msra.mxu0 %v4940
    %5631 = vmatpush.msra.mxu0 %v4932
    %5632 = vmatpush.msra.mxu0 %v4924
    %5633 = vmatpush.msra.mxu0 %v4916
    %5634 = vmatpush.msra.mxu0 %v4908
    %5635 = vmatpush.msra.mxu0 %v4900
    %5636 = vmatpush.msra.mxu0 %v4892
    %5637 = vmatpush.msra.mxu0 %v4884
    %5638 = vmatpush.msra.mxu0 %v4876
    %5639 = vmatpush.msra.mxu0 %v4868
    %5640 = vmatpush.msra.mxu0 %v4860
    %5641 = vmatpush.msra.mxu0 %v4852
    %5642 = vmatpush.msra.mxu0 %v4844
    %5643 = vmatpush.msra.mxu0 %v4836
    %5644 = vmatpush.msra.mxu0 %v4828
    %5645 = vmatmul.f32.gmra.mxu0 %v5079
    %v5646 = vpop.f32.mrf.mxu0
    %v5647 = vadd.f32 %v5112, %v5646
    %5648 = vmatmul.f32.gmra.mxu0 %v5081
    %v5649 = vpop.f32.mrf.mxu0
    %v5650 = vadd.f32 %v5117, %v5649
    %5651 = vmatmul.f32.gmra.mxu0 %v5083
    %v5652 = vpop.f32.mrf.mxu0
    %v5653 = vadd.f32 %v5122, %v5652
    %5654 = vmatmul.f32.gmra.mxu0 %v5085
    %v5655 = vpop.f32.mrf.mxu0
    %v5656 = vadd.f32 %v5127, %v5655
    %5657 = vmatmul.f32.gmra.mxu0 %v5087
    %v5658 = vpop.f32.mrf.mxu0
    %v5659 = vadd.f32 %v5132, %v5658
    %5660 = vmatmul.f32.gmra.mxu0 %v5089
    %v5661 = vpop.f32.mrf.mxu0
    %v5662 = vadd.f32 %v5137, %v5661
    %5663 = vmatmul.f32.gmra.mxu0 %v5091
    %v5664 = vpop.f32.mrf.mxu0
    %v5665 = vadd.f32 %v5142, %v5664
    %5666 = vmatmul.f32.gmra.mxu0 %v5093
    %v5667 = vpop.f32.mrf.mxu0
    %v5668 = vadd.f32 %v5147, %v5667
    %5669 = vmatmul.f32.gmra.mxu0 %v5095
    %v5670 = vpop.f32.mrf.mxu0
    %v5671 = vadd.f32 %v5152, %v5670
    %5672 = vmatmul.f32.gmra.mxu0 %v5097
    %v5673 = vpop.f32.mrf.mxu0
    %v5674 = vadd.f32 %v5157, %v5673
    %5675 = vdwg.mxu0
    %5676 = vmatpush.msra.mxu0 %v5076
    %5677 = vmatpush.msra.mxu0 %v5068
    %5678 = vmatpush.msra.mxu0 %v5060
    %5679 = vmatpush.msra.mxu0 %v5052
    %5680 = vmatpush.msra.mxu0 %v5044
    %5681 = vmatpush.msra.mxu0 %v5036
    %5682 = vmatpush.msra.mxu0 %v5028
    %5683 = vmatpush.msra.mxu0 %v5020
    %5684 = vmatpush.msra.mxu0 %v5012
    %5685 = vmatpush.msra.mxu0 %v5004
    %5686 = vmatpush.msra.mxu0 %v4996
    %5687 = vmatpush.msra.mxu0 %v4988
    %5688 = vmatpush.msra.mxu0 %v4980
    %5689 = vmatpush.msra.mxu0 %v4972
    %5690 = vmatpush.msra.mxu0 %v4964
    %5691 = vmatpush.msra.mxu0 %v4956
    %5692 = vmatmul.f32.gmra.mxu0 %v5080
    %v5693 = vpop.f32.mrf.mxu0
    %v5694 = vadd.f32 %v5647, %v5693
    %5695 = vmatmul.f32.gmra.mxu0 %v5082
    %v5696 = vpop.f32.mrf.mxu0
    %v5697 = vadd.f32 %v5650, %v5696
    %5698 = vmatmul.f32.gmra.mxu0 %v5084
    %v5699 = vpop.f32.mrf.mxu0
    %v5700 = vadd.f32 %v5653, %v5699
    %5701 = vmatmul.f32.gmra.mxu0 %v5086
    %v5702 = vpop.f32.mrf.mxu0
    %v5703 = vadd.f32 %v5656, %v5702
    %5704 = vmatmul.f32.gmra.mxu0 %v5088
    %v5705 = vpop.f32.mrf.mxu0
    %v5706 = vadd.f32 %v5659, %v5705
    %5707 = vmatmul.f32.gmra.mxu0 %v5090
    %v5708 = vpop.f32.mrf.mxu0
    %v5709 = vadd.f32 %v5662, %v5708
    %5710 = vmatmul.f32.gmra.mxu0 %v5092
    %v5711 = vpop.f32.mrf.mxu0
    %v5712 = vadd.f32 %v5665, %v5711
    %5713 = vmatmul.f32.gmra.mxu0 %v5094
    %v5714 = vpop.f32.mrf.mxu0
    %v5715 = vadd.f32 %v5668, %v5714
    %5716 = vmatmul.f32.gmra.mxu0 %v5096
    %v5717 = vpop.f32.mrf.mxu0
    %v5718 = vadd.f32 %v5671, %v5717
    %5719 = vmatmul.f32.gmra.mxu0 %v5098
    %v5720 = vpop.f32.mrf.mxu0
    %v5721 = vadd.f32 %v5674, %v5720
    %5722 = vdwg.mxu0
    %5723 = vmatpush.msra.mxu0 %v4949
    %5724 = vmatpush.msra.mxu0 %v4941
    %5725 = vmatpush.msra.mxu0 %v4933
    %5726 = vmatpush.msra.mxu0 %v4925
    %5727 = vmatpush.msra.mxu0 %v4917
    %5728 = vmatpush.msra.mxu0 %v4909
    %5729 = vmatpush.msra.mxu0 %v4901
    %5730 = vmatpush.msra.mxu0 %v4893
    %5731 = vmatpush.msra.mxu0 %v4885
    %5732 = vmatpush.msra.mxu0 %v4877
    %5733 = vmatpush.msra.mxu0 %v4869
    %5734 = vmatpush.msra.mxu0 %v4861
    %5735 = vmatpush.msra.mxu0 %v4853
    %5736 = vmatpush.msra.mxu0 %v4845
    %5737 = vmatpush.msra.mxu0 %v4837
    %5738 = vmatpush.msra.mxu0 %v4829
    %5739 = vmatmul.f32.gmra.mxu0 %v5079
    %v5740 = vpop.f32.mrf.mxu0
    %v5741 = vadd.f32 %v5112, %v5740
    %5742 = vmatmul.f32.gmra.mxu0 %v5081
    %v5743 = vpop.f32.mrf.mxu0
    %v5744 = vadd.f32 %v5117, %v5743
    %5745 = vmatmul.f32.gmra.mxu0 %v5083
    %v5746 = vpop.f32.mrf.mxu0
    %v5747 = vadd.f32 %v5122, %v5746
    %5748 = vmatmul.f32.gmra.mxu0 %v5085
    %v5749 = vpop.f32.mrf.mxu0
    %v5750 = vadd.f32 %v5127, %v5749
    %5751 = vmatmul.f32.gmra.mxu0 %v5087
    %v5752 = vpop.f32.mrf.mxu0
    %v5753 = vadd.f32 %v5132, %v5752
    %5754 = vmatmul.f32.gmra.mxu0 %v5089
    %v5755 = vpop.f32.mrf.mxu0
    %v5756 = vadd.f32 %v5137, %v5755
    %5757 = vmatmul.f32.gmra.mxu0 %v5091
    %v5758 = vpop.f32.mrf.mxu0
    %v5759 = vadd.f32 %v5142, %v5758
    %5760 = vmatmul.f32.gmra.mxu0 %v5093
    %v5761 = vpop.f32.mrf.mxu0
    %v5762 = vadd.f32 %v5147, %v5761
    %5763 = vmatmul.f32.gmra.mxu0 %v5095
    %v5764 = vpop.f32.mrf.mxu0
    %v5765 = vadd.f32 %v5152, %v5764
    %5766 = vmatmul.f32.gmra.mxu0 %v5097
    %v5767 = vpop.f32.mrf.mxu0
    %v5768 = vadd.f32 %v5157, %v5767
    %5769 = vdwg.mxu0
    %5770 = vmatpush.msra.mxu0 %v5077
    %5771 = vmatpush.msra.mxu0 %v5069
    %5772 = vmatpush.msra.mxu0 %v5061
    %5773 = vmatpush.msra.mxu0 %v5053
    %5774 = vmatpush.msra.mxu0 %v5045
    %5775 = vmatpush.msra.mxu0 %v5037
    %5776 = vmatpush.msra.mxu0 %v5029
    %5777 = vmatpush.msra.mxu0 %v5021
    %5778 = vmatpush.msra.mxu0 %v5013
    %5779 = vmatpush.msra.mxu0 %v5005
    %5780 = vmatpush.msra.mxu0 %v4997
    %5781 = vmatpush.msra.mxu0 %v4989
    %5782 = vmatpush.msra.mxu0 %v4981
    %5783 = vmatpush.msra.mxu0 %v4973
    %5784 = vmatpush.msra.mxu0 %v4965
    %5785 = vmatpush.msra.mxu0 %v4957
    %5786 = vmatmul.f32.gmra.mxu0 %v5080
    %v5787 = vpop.f32.mrf.mxu0
    %v5788 = vadd.f32 %v5741, %v5787
    %5789 = vmatmul.f32.gmra.mxu0 %v5082
    %v5790 = vpop.f32.mrf.mxu0
    %v5791 = vadd.f32 %v5744, %v5790
    %5792 = vmatmul.f32.gmra.mxu0 %v5084
    %v5793 = vpop.f32.mrf.mxu0
    %v5794 = vadd.f32 %v5747, %v5793
    %5795 = vmatmul.f32.gmra.mxu0 %v5086
    %v5796 = vpop.f32.mrf.mxu0
    %v5797 = vadd.f32 %v5750, %v5796
    %5798 = vmatmul.f32.gmra.mxu0 %v5088
    %v5799 = vpop.f32.mrf.mxu0
    %v5800 = vadd.f32 %v5753, %v5799
    %5801 = vmatmul.f32.gmra.mxu0 %v5090
    %v5802 = vpop.f32.mrf.mxu0
    %v5803 = vadd.f32 %v5756, %v5802
    %5804 = vmatmul.f32.gmra.mxu0 %v5092
    %v5805 = vpop.f32.mrf.mxu0
    %v5806 = vadd.f32 %v5759, %v5805
    %5807 = vmatmul.f32.gmra.mxu0 %v5094
    %v5808 = vpop.f32.mrf.mxu0
    %v5809 = vadd.f32 %v5762, %v5808
    %5810 = vmatmul.f32.gmra.mxu0 %v5096
    %v5811 = vpop.f32.mrf.mxu0
    %v5812 = vadd.f32 %v5765, %v5811
    %5813 = vmatmul.f32.gmra.mxu0 %v5098
    %v5814 = vpop.f32.mrf.mxu0
    %v5815 = vadd.f32 %v5768, %v5814
    %5816 = vdwg.mxu0
    %5817 = vmatpush.msra.mxu0 %v4950
    %5818 = vmatpush.msra.mxu0 %v4942
    %5819 = vmatpush.msra.mxu0 %v4934
    %5820 = vmatpush.msra.mxu0 %v4926
    %5821 = vmatpush.msra.mxu0 %v4918
    %5822 = vmatpush.msra.mxu0 %v4910
    %5823 = vmatpush.msra.mxu0 %v4902
    %5824 = vmatpush.msra.mxu0 %v4894
    %5825 = vmatpush.msra.mxu0 %v4886
    %5826 = vmatpush.msra.mxu0 %v4878
    %5827 = vmatpush.msra.mxu0 %v4870
    %5828 = vmatpush.msra.mxu0 %v4862
    %5829 = vmatpush.msra.mxu0 %v4854
    %5830 = vmatpush.msra.mxu0 %v4846
    %5831 = vmatpush.msra.mxu0 %v4838
    %5832 = vmatpush.msra.mxu0 %v4830
    %5833 = vmatmul.f32.gmra.mxu0 %v5079
    %v5834 = vpop.f32.mrf.mxu0
    %v5835 = vadd.f32 %v5112, %v5834
    %5836 = vmatmul.f32.gmra.mxu0 %v5081
    %v5837 = vpop.f32.mrf.mxu0
    %v5838 = vadd.f32 %v5117, %v5837
    %5839 = vmatmul.f32.gmra.mxu0 %v5083
    %v5840 = vpop.f32.mrf.mxu0
    %v5841 = vadd.f32 %v5122, %v5840
    %5842 = vmatmul.f32.gmra.mxu0 %v5085
    %v5843 = vpop.f32.mrf.mxu0
    %v5844 = vadd.f32 %v5127, %v5843
    %5845 = vmatmul.f32.gmra.mxu0 %v5087
    %v5846 = vpop.f32.mrf.mxu0
    %v5847 = vadd.f32 %v5132, %v5846
    %5848 = vmatmul.f32.gmra.mxu0 %v5089
    %v5849 = vpop.f32.mrf.mxu0
    %v5850 = vadd.f32 %v5137, %v5849
    %5851 = vmatmul.f32.gmra.mxu0 %v5091
    %v5852 = vpop.f32.mrf.mxu0
    %v5853 = vadd.f32 %v5142, %v5852
    %5854 = vmatmul.f32.gmra.mxu0 %v5093
    %v5855 = vpop.f32.mrf.mxu0
    %v5856 = vadd.f32 %v5147, %v5855
    %5857 = vmatmul.f32.gmra.mxu0 %v5095
    %v5858 = vpop.f32.mrf.mxu0
    %v5859 = vadd.f32 %v5152, %v5858
    %5860 = vmatmul.f32.gmra.mxu0 %v5097
    %v5861 = vpop.f32.mrf.mxu0
    %v5862 = vadd.f32 %v5157, %v5861
    %5863 = vdwg.mxu0
    %5864 = vmatpush.msra.mxu0 %v5078
    %5865 = vmatpush.msra.mxu0 %v5070
    %5866 = vmatpush.msra.mxu0 %v5062
    %5867 = vmatpush.msra.mxu0 %v5054
    %5868 = vmatpush.msra.mxu0 %v5046
    %5869 = vmatpush.msra.mxu0 %v5038
    %5870 = vmatpush.msra.mxu0 %v5030
    %5871 = vmatpush.msra.mxu0 %v5022
    %5872 = vmatpush.msra.mxu0 %v5014
    %5873 = vmatpush.msra.mxu0 %v5006
    %5874 = vmatpush.msra.mxu0 %v4998
    %5875 = vmatpush.msra.mxu0 %v4990
    %5876 = vmatpush.msra.mxu0 %v4982
    %5877 = vmatpush.msra.mxu0 %v4974
    %5878 = vmatpush.msra.mxu0 %v4966
    %5879 = vmatpush.msra.mxu0 %v4958
    %5880 = vmatmul.f32.gmra.mxu0 %v5080
    %v5881 = vpop.f32.mrf.mxu0
    %v5882 = vadd.f32 %v5835, %v5881
    %5883 = vmatmul.f32.gmra.mxu0 %v5082
    %v5884 = vpop.f32.mrf.mxu0
    %v5885 = vadd.f32 %v5838, %v5884
    %5886 = vmatmul.f32.gmra.mxu0 %v5084
    %v5887 = vpop.f32.mrf.mxu0
    %v5888 = vadd.f32 %v5841, %v5887
    %5889 = vmatmul.f32.gmra.mxu0 %v5086
    %v5890 = vpop.f32.mrf.mxu0
    %v5891 = vadd.f32 %v5844, %v5890
    %5892 = vmatmul.f32.gmra.mxu0 %v5088
    %v5893 = vpop.f32.mrf.mxu0
    %v5894 = vadd.f32 %v5847, %v5893
    %5895 = vmatmul.f32.gmra.mxu0 %v5090
    %v5896 = vpop.f32.mrf.mxu0
    %v5897 = vadd.f32 %v5850, %v5896
    %5898 = vmatmul.f32.gmra.mxu0 %v5092
    %v5899 = vpop.f32.mrf.mxu0
    %v5900 = vadd.f32 %v5853, %v5899
    %5901 = vmatmul.f32.gmra.mxu0 %v5094
    %v5902 = vpop.f32.mrf.mxu0
    %v5903 = vadd.f32 %v5856, %v5902
    %5904 = vmatmul.f32.gmra.mxu0 %v5096
    %v5905 = vpop.f32.mrf.mxu0
    %v5906 = vadd.f32 %v5859, %v5905
    %5907 = vmatmul.f32.gmra.mxu0 %v5098
    %v5908 = vpop.f32.mrf.mxu0
    %v5909 = vadd.f32 %v5862, %v5908
    %5910 = vdwg.mxu0
    %v5911 = vmul.f32 %v199, 1.5
    %v5912 = vmul.f32 %v353, 1.5
    %v5913 = vmul.f32 %v507, 1.5
    %v5914 = vmul.f32 %v661, 1.5
    %v5915 = vmul.f32 %v815, 1.5
    %v5916 = vmul.f32 %v969, 1.5
    %v5917 = vmul.f32 %v1123, 1.5
    %v5918 = vmul.f32 %v1277, 1.5
    %v5919 = vmul.f32 %v5911, %v199
    %v5920 = vmul.f32 %v5912, %v353
    %v5921 = vmul.f32 %v5913, %v507
    %v5922 = vmul.f32 %v5914, %v661
    %v5923 = vmul.f32 %v5915, %v815
    %v5924 = vmul.f32 %v5916, %v969
    %v5925 = vmul.f32 %v5917, %v1123
    %v5926 = vmul.f32 %v5918, %v1277
    %v5927 = vsub.f32 %v5919, 0.5
    %v5928 = vsub.f32 %v5920, 0.5
    %v5929 = vsub.f32 %v5921, 0.5
    %v5930 = vsub.f32 %v5922, 0.5
    %v5931 = vsub.f32 %v5923, 0.5
    %v5932 = vsub.f32 %v5924, 0.5
    %v5933 = vsub.f32 %v5925, 0.5
    %v5934 = vsub.f32 %v5926, 0.5
    %v5935 = vmul.f32 %v199, 1.6666666
    %v5936 = vmul.f32 %v353, 1.6666666
    %v5937 = vmul.f32 %v507, 1.6666666
    %v5938 = vmul.f32 %v661, 1.6666666
    %v5939 = vmul.f32 %v815, 1.6666666
    %v5940 = vmul.f32 %v969, 1.6666666
    %v5941 = vmul.f32 %v1123, 1.6666666
    %v5942 = vmul.f32 %v1277, 1.6666666
    %v5943 = vmul.f32 %v5935, %v5927
    %v5944 = vmul.f32 %v5936, %v5928
    %v5945 = vmul.f32 %v5937, %v5929
    %v5946 = vmul.f32 %v5938, %v5930
    %v5947 = vmul.f32 %v5939, %v5931
    %v5948 = vmul.f32 %v5940, %v5932
    %v5949 = vmul.f32 %v5941, %v5933
    %v5950 = vmul.f32 %v5942, %v5934
    %v5951 = vmul.f32 %v199, 0.6666667
    %v5952 = vmul.f32 %v353, 0.6666667
    %v5953 = vmul.f32 %v507, 0.6666667
    %v5954 = vmul.f32 %v661, 0.6666667
    %v5955 = vmul.f32 %v815, 0.6666667
    %v5956 = vmul.f32 %v969, 0.6666667
    %v5957 = vmul.f32 %v1123, 0.6666667
    %v5958 = vmul.f32 %v1277, 0.6666667
    %v5959 = vsub.f32 %v5943, %v5951
    %v5960 = vsub.f32 %v5944, %v5952
    %v5961 = vsub.f32 %v5945, %v5953
    %v5962 = vsub.f32 %v5946, %v5954
    %v5963 = vsub.f32 %v5947, %v5955
    %v5964 = vsub.f32 %v5948, %v5956
    %v5965 = vsub.f32 %v5949, %v5957
    %v5966 = vsub.f32 %v5950, %v5958
    %v5967 = vmul.f32 %v199, 1.75
    %v5968 = vmul.f32 %v353, 1.75
    %v5969 = vmul.f32 %v507, 1.75
    %v5970 = vmul.f32 %v661, 1.75
    %v5971 = vmul.f32 %v815, 1.75
    %v5972 = vmul.f32 %v969, 1.75
    %v5973 = vmul.f32 %v1123, 1.75
    %v5974 = vmul.f32 %v1277, 1.75
    %v5975 = vmul.f32 %v5967, %v5959
    %v5976 = vmul.f32 %v5968, %v5960
    %v5977 = vmul.f32 %v5969, %v5961
    %v5978 = vmul.f32 %v5970, %v5962
    %v5979 = vmul.f32 %v5971, %v5963
    %v5980 = vmul.f32 %v5972, %v5964
    %v5981 = vmul.f32 %v5973, %v5965
    %v5982 = vmul.f32 %v5974, %v5966
    %v5983 = vmul.f32 %v5927, 0.75
    %v5984 = vmul.f32 %v5928, 0.75
    %v5985 = vmul.f32 %v5929, 0.75
    %v5986 = vmul.f32 %v5930, 0.75
    %v5987 = vmul.f32 %v5931, 0.75
    %v5988 = vmul.f32 %v5932, 0.75
    %v5989 = vmul.f32 %v5933, 0.75
    %v5990 = vmul.f32 %v5934, 0.75
    %v5991 = vsub.f32 %v5975, %v5983
    %v5992 = vsub.f32 %v5976, %v5984
    %v5993 = vsub.f32 %v5977, %v5985
    %v5994 = vsub.f32 %v5978, %v5986
    %v5995 = vsub.f32 %v5979, %v5987
    %v5996 = vsub.f32 %v5980, %v5988
    %v5997 = vsub.f32 %v5981, %v5989
    %v5998 = vsub.f32 %v5982, %v5990
    %v5999 = vmul.f32 %v199, 1.8
    %v6000 = vmul.f32 %v353, 1.8
    %v6001 = vmul.f32 %v507, 1.8
    %v6002 = vmul.f32 %v661, 1.8
    %v6003 = vmul.f32 %v815, 1.8
    %v6004 = vmul.f32 %v969, 1.8
    %v6005 = vmul.f32 %v1123, 1.8
    %v6006 = vmul.f32 %v1277, 1.8
    %v6007 = vmul.f32 %v5999, %v5991
    %v6008 = vmul.f32 %v6000, %v5992
    %v6009 = vmul.f32 %v6001, %v5993
    %v6010 = vmul.f32 %v6002, %v5994
    %v6011 = vmul.f32 %v6003, %v5995
    %v6012 = vmul.f32 %v6004, %v5996
    %v6013 = vmul.f32 %v6005, %v5997
    %v6014 = vmul.f32 %v6006, %v5998
    %v6015 = vmul.f32 %v5959, 0.8
    %v6016 = vmul.f32 %v5960, 0.8
    %v6017 = vmul.f32 %v5961, 0.8
    %v6018 = vmul.f32 %v5962, 0.8
    %v6019 = vmul.f32 %v5963, 0.8
    %v6020 = vmul.f32 %v5964, 0.8
    %v6021 = vmul.f32 %v5965, 0.8
    %v6022 = vmul.f32 %v5966, 0.8
    %v6023 = vsub.f32 %v6007, %v6015
    %v6024 = vsub.f32 %v6008, %v6016
    %v6025 = vsub.f32 %v6009, %v6017
    %v6026 = vsub.f32 %v6010, %v6018
    %v6027 = vsub.f32 %v6011, %v6019
    %v6028 = vsub.f32 %v6012, %v6020
    %v6029 = vsub.f32 %v6013, %v6021
    %v6030 = vsub.f32 %v6014, %v6022
    %v6031 = vmul.f32 %v199, 1.8333334
    %v6032 = vmul.f32 %v353, 1.8333334
    %v6033 = vmul.f32 %v507, 1.8333334
    %v6034 = vmul.f32 %v661, 1.8333334
    %v6035 = vmul.f32 %v815, 1.8333334
    %v6036 = vmul.f32 %v969, 1.8333334
    %v6037 = vmul.f32 %v1123, 1.8333334
    %v6038 = vmul.f32 %v1277, 1.8333334
    %v6039 = vmul.f32 %v6031, %v6023
    %v6040 = vmul.f32 %v6032, %v6024
    %v6041 = vmul.f32 %v6033, %v6025
    %v6042 = vmul.f32 %v6034, %v6026
    %v6043 = vmul.f32 %v6035, %v6027
    %v6044 = vmul.f32 %v6036, %v6028
    %v6045 = vmul.f32 %v6037, %v6029
    %v6046 = vmul.f32 %v6038, %v6030
    %v6047 = vmul.f32 %v5991, 0.8333333
    %v6048 = vmul.f32 %v5992, 0.8333333
    %v6049 = vmul.f32 %v5993, 0.8333333
    %v6050 = vmul.f32 %v5994, 0.8333333
    %v6051 = vmul.f32 %v5995, 0.8333333
    %v6052 = vmul.f32 %v5996, 0.8333333
    %v6053 = vmul.f32 %v5997, 0.8333333
    %v6054 = vmul.f32 %v5998, 0.8333333
    %v6055 = vsub.f32 %v6039, %v6047
    %v6056 = vsub.f32 %v6040, %v6048
    %v6057 = vsub.f32 %v6041, %v6049
    %v6058 = vsub.f32 %v6042, %v6050
    %v6059 = vsub.f32 %v6043, %v6051
    %v6060 = vsub.f32 %v6044, %v6052
    %v6061 = vsub.f32 %v6045, %v6053
    %v6062 = vsub.f32 %v6046, %v6054
    %v6063 = vmul.f32 %v199, 1.8571428
    %v6064 = vmul.f32 %v353, 1.8571428
    %v6065 = vmul.f32 %v507, 1.8571428
    %v6066 = vmul.f32 %v661, 1.8571428
    %v6067 = vmul.f32 %v815, 1.8571428
    %v6068 = vmul.f32 %v969, 1.8571428
    %v6069 = vmul.f32 %v1123, 1.8571428
    %v6070 = vmul.f32 %v1277, 1.8571428
    %v6071 = vmul.f32 %v6063, %v6055
    %v6072 = vmul.f32 %v6064, %v6056
    %v6073 = vmul.f32 %v6065, %v6057
    %v6074 = vmul.f32 %v6066, %v6058
    %v6075 = vmul.f32 %v6067, %v6059
    %v6076 = vmul.f32 %v6068, %v6060
    %v6077 = vmul.f32 %v6069, %v6061
    %v6078 = vmul.f32 %v6070, %v6062
    %v6079 = vmul.f32 %v6023, 0.85714287
    %v6080 = vmul.f32 %v6024, 0.85714287
    %v6081 = vmul.f32 %v6025, 0.85714287
    %v6082 = vmul.f32 %v6026, 0.85714287
    %v6083 = vmul.f32 %v6027, 0.85714287
    %v6084 = vmul.f32 %v6028, 0.85714287
    %v6085 = vmul.f32 %v6029, 0.85714287
    %v6086 = vmul.f32 %v6030, 0.85714287
    %v6087 = vsub.f32 %v6071, %v6079
    %v6088 = vsub.f32 %v6072, %v6080
    %v6089 = vsub.f32 %v6073, %v6081
    %v6090 = vsub.f32 %v6074, %v6082
    %v6091 = vsub.f32 %v6075, %v6083
    %v6092 = vsub.f32 %v6076, %v6084
    %v6093 = vsub.f32 %v6077, %v6085
    %v6094 = vsub.f32 %v6078, %v6086
    %v6095 = vmul.f32 %v199, 1.875
    %v6096 = vmul.f32 %v353, 1.875
    %v6097 = vmul.f32 %v507, 1.875
    %v6098 = vmul.f32 %v661, 1.875
    %v6099 = vmul.f32 %v815, 1.875
    %v6100 = vmul.f32 %v969, 1.875
    %v6101 = vmul.f32 %v1123, 1.875
    %v6102 = vmul.f32 %v1277, 1.875
    %v6103 = vmul.f32 %v6095, %v6087
    %v6104 = vmul.f32 %v6096, %v6088
    %v6105 = vmul.f32 %v6097, %v6089
    %v6106 = vmul.f32 %v6098, %v6090
    %v6107 = vmul.f32 %v6099, %v6091
    %v6108 = vmul.f32 %v6100, %v6092
    %v6109 = vmul.f32 %v6101, %v6093
    %v6110 = vmul.f32 %v6102, %v6094
    %v6111 = vmul.f32 %v6055, 0.875
    %v6112 = vmul.f32 %v6056, 0.875
    %v6113 = vmul.f32 %v6057, 0.875
    %v6114 = vmul.f32 %v6058, 0.875
    %v6115 = vmul.f32 %v6059, 0.875
    %v6116 = vmul.f32 %v6060, 0.875
    %v6117 = vmul.f32 %v6061, 0.875
    %v6118 = vmul.f32 %v6062, 0.875
    %v6119 = vsub.f32 %v6103, %v6111
    %v6120 = vsub.f32 %v6104, %v6112
    %v6121 = vsub.f32 %v6105, %v6113
    %v6122 = vsub.f32 %v6106, %v6114
    %v6123 = vsub.f32 %v6107, %v6115
    %v6124 = vsub.f32 %v6108, %v6116
    %v6125 = vsub.f32 %v6109, %v6117
    %v6126 = vsub.f32 %v6110, %v6118
    %v6127 = vmul.f32 %v199, 1.8888888
    %v6128 = vmul.f32 %v353, 1.8888888
    %v6129 = vmul.f32 %v507, 1.8888888
    %v6130 = vmul.f32 %v661, 1.8888888
    %v6131 = vmul.f32 %v815, 1.8888888
    %v6132 = vmul.f32 %v969, 1.8888888
    %v6133 = vmul.f32 %v1123, 1.8888888
    %v6134 = vmul.f32 %v1277, 1.8888888
    %v6135 = vmul.f32 %v6127, %v6119
    %v6136 = vmul.f32 %v6128, %v6120
    %v6137 = vmul.f32 %v6129, %v6121
    %v6138 = vmul.f32 %v6130, %v6122
    %v6139 = vmul.f32 %v6131, %v6123
    %v6140 = vmul.f32 %v6132, %v6124
    %v6141 = vmul.f32 %v6133, %v6125
    %v6142 = vmul.f32 %v6134, %v6126
    %v6143 = vmul.f32 %v6087, 0.8888889
    %v6144 = vmul.f32 %v6088, 0.8888889
    %v6145 = vmul.f32 %v6089, 0.8888889
    %v6146 = vmul.f32 %v6090, 0.8888889
    %v6147 = vmul.f32 %v6091, 0.8888889
    %v6148 = vmul.f32 %v6092, 0.8888889
    %v6149 = vmul.f32 %v6093, 0.8888889
    %v6150 = vmul.f32 %v6094, 0.8888889
    %v6151 = vsub.f32 %v6135, %v6143
    %v6152 = vsub.f32 %v6136, %v6144
    %v6153 = vsub.f32 %v6137, %v6145
    %v6154 = vsub.f32 %v6138, %v6146
    %v6155 = vsub.f32 %v6139, %v6147
    %v6156 = vsub.f32 %v6140, %v6148
    %v6157 = vsub.f32 %v6141, %v6149
    %v6158 = vsub.f32 %v6142, %v6150
    %v6159 = vadd.f32 %v5224, 0.0
    %v6160 = vadd.f32 %v5318, 0.0
    %v6161 = vadd.f32 %v5412, 0.0
    %v6162 = vadd.f32 %v5506, 0.0
    %v6163 = vadd.f32 %v5600, 0.0
    %v6164 = vadd.f32 %v5694, 0.0
    %v6165 = vadd.f32 %v5788, 0.0
    %v6166 = vadd.f32 %v5882, 0.0
    %v6167 = vmul.f32 %v5227, %v199
    %v6168 = vmul.f32 %v5321, %v353
    %v6169 = vmul.f32 %v5415, %v507
    %v6170 = vmul.f32 %v5509, %v661
    %v6171 = vmul.f32 %v5603, %v815
    %v6172 = vmul.f32 %v5697, %v969
    %v6173 = vmul.f32 %v5791, %v1123
    %v6174 = vmul.f32 %v5885, %v1277
    %v6175 = vadd.f32 %v6159, %v6167
    %v6176 = vadd.f32 %v6160, %v6168
    %v6177 = vadd.f32 %v6161, %v6169
    %v6178 = vadd.f32 %v6162, %v6170
    %v6179 = vadd.f32 %v6163, %v6171
    %v6180 = vadd.f32 %v6164, %v6172
    %v6181 = vadd.f32 %v6165, %v6173
    %v6182 = vadd.f32 %v6166, %v6174
    %v6183 = vmul.f32 %v5230, %v5927
    %v6184 = vmul.f32 %v5324, %v5928
    %v6185 = vmul.f32 %v5418, %v5929
    %v6186 = vmul.f32 %v5512, %v5930
    %v6187 = vmul.f32 %v5606, %v5931
    %v6188 = vmul.f32 %v5700, %v5932
    %v6189 = vmul.f32 %v5794, %v5933
    %v6190 = vmul.f32 %v5888, %v5934
    %v6191 = vadd.f32 %v6175, %v6183
    %v6192 = vadd.f32 %v6176, %v6184
    %v6193 = vadd.f32 %v6177, %v6185
    %v6194 = vadd.f32 %v6178, %v6186
    %v6195 = vadd.f32 %v6179, %v6187
    %v6196 = vadd.f32 %v6180, %v6188
    %v6197 = vadd.f32 %v6181, %v6189
    %v6198 = vadd.f32 %v6182, %v6190
    %v6199 = vmul.f32 %v5233, %v5959
    %v6200 = vmul.f32 %v5327, %v5960
    %v6201 = vmul.f32 %v5421, %v5961
    %v6202 = vmul.f32 %v5515, %v5962
    %v6203 = vmul.f32 %v5609, %v5963
    %v6204 = vmul.f32 %v5703, %v5964
    %v6205 = vmul.f32 %v5797, %v5965
    %v6206 = vmul.f32 %v5891, %v5966
    %v6207 = vadd.f32 %v6191, %v6199
    %v6208 = vadd.f32 %v6192, %v6200
    %v6209 = vadd.f32 %v6193, %v6201
    %v6210 = vadd.f32 %v6194, %v6202
    %v6211 = vadd.f32 %v6195, %v6203
    %v6212 = vadd.f32 %v6196, %v6204
    %v6213 = vadd.f32 %v6197, %v6205
    %v6214 = vadd.f32 %v6198, %v6206
    %v6215 = vmul.f32 %v5236, %v5991
    %v6216 = vmul.f32 %v5330, %v5992
    %v6217 = vmul.f32 %v5424, %v5993
    %v6218 = vmul.f32 %v5518, %v5994
    %v6219 = vmul.f32 %v5612, %v5995
    %v6220 = vmul.f32 %v5706, %v5996
    %v6221 = vmul.f32 %v5800, %v5997
    %v6222 = vmul.f32 %v5894, %v5998
    %v6223 = vadd.f32 %v6207, %v6215
    %v6224 = vadd.f32 %v6208, %v6216
    %v6225 = vadd.f32 %v6209, %v6217
    %v6226 = vadd.f32 %v6210, %v6218
    %v6227 = vadd.f32 %v6211, %v6219
    %v6228 = vadd.f32 %v6212, %v6220
    %v6229 = vadd.f32 %v6213, %v6221
    %v6230 = vadd.f32 %v6214, %v6222
    %v6231 = vmul.f32 %v5239, %v6023
    %v6232 = vmul.f32 %v5333, %v6024
    %v6233 = vmul.f32 %v5427, %v6025
    %v6234 = vmul.f32 %v5521, %v6026
    %v6235 = vmul.f32 %v5615, %v6027
    %v6236 = vmul.f32 %v5709, %v6028
    %v6237 = vmul.f32 %v5803, %v6029
    %v6238 = vmul.f32 %v5897, %v6030
    %v6239 = vadd.f32 %v6223, %v6231
    %v6240 = vadd.f32 %v6224, %v6232
    %v6241 = vadd.f32 %v6225, %v6233
    %v6242 = vadd.f32 %v6226, %v6234
    %v6243 = vadd.f32 %v6227, %v6235
    %v6244 = vadd.f32 %v6228, %v6236
    %v6245 = vadd.f32 %v6229, %v6237
    %v6246 = vadd.f32 %v6230, %v6238
    %v6247 = vmul.f32 %v5242, %v6055
    %v6248 = vmul.f32 %v5336, %v6056
    %v6249 = vmul.f32 %v5430, %v6057
    %v6250 = vmul.f32 %v5524, %v6058
    %v6251 = vmul.f32 %v5618, %v6059
    %v6252 = vmul.f32 %v5712, %v6060
    %v6253 = vmul.f32 %v5806, %v6061
    %v6254 = vmul.f32 %v5900, %v6062
    %v6255 = vadd.f32 %v6239, %v6247
    %v6256 = vadd.f32 %v6240, %v6248
    %v6257 = vadd.f32 %v6241, %v6249
    %v6258 = vadd.f32 %v6242, %v6250
    %v6259 = vadd.f32 %v6243, %v6251
    %v6260 = vadd.f32 %v6244, %v6252
    %v6261 = vadd.f32 %v6245, %v6253
    %v6262 = vadd.f32 %v6246, %v6254
    %v6263 = vmul.f32 %v5245, %v6087
    %v6264 = vmul.f32 %v5339, %v6088
    %v6265 = vmul.f32 %v5433, %v6089
    %v6266 = vmul.f32 %v5527, %v6090
    %v6267 = vmul.f32 %v5621, %v6091
    %v6268 = vmul.f32 %v5715, %v6092
    %v6269 = vmul.f32 %v5809, %v6093
    %v6270 = vmul.f32 %v5903, %v6094
    %v6271 = vadd.f32 %v6255, %v6263
    %v6272 = vadd.f32 %v6256, %v6264
    %v6273 = vadd.f32 %v6257, %v6265
    %v6274 = vadd.f32 %v6258, %v6266
    %v6275 = vadd.f32 %v6259, %v6267
    %v6276 = vadd.f32 %v6260, %v6268
    %v6277 = vadd.f32 %v6261, %v6269
    %v6278 = vadd.f32 %v6262, %v6270
    %v6279 = vmul.f32 %v5248, %v6119
    %v6280 = vmul.f32 %v5342, %v6120
    %v6281 = vmul.f32 %v5436, %v6121
    %v6282 = vmul.f32 %v5530, %v6122
    %v6283 = vmul.f32 %v5624, %v6123
    %v6284 = vmul.f32 %v5718, %v6124
    %v6285 = vmul.f32 %v5812, %v6125
    %v6286 = vmul.f32 %v5906, %v6126
    %v6287 = vadd.f32 %v6271, %v6279
    %v6288 = vadd.f32 %v6272, %v6280
    %v6289 = vadd.f32 %v6273, %v6281
    %v6290 = vadd.f32 %v6274, %v6282
    %v6291 = vadd.f32 %v6275, %v6283
    %v6292 = vadd.f32 %v6276, %v6284
    %v6293 = vadd.f32 %v6277, %v6285
    %v6294 = vadd.f32 %v6278, %v6286
    %v6295 = vmul.f32 %v5251, %v6151
    %v6296 = vmul.f32 %v5345, %v6152
    %v6297 = vmul.f32 %v5439, %v6153
    %v6298 = vmul.f32 %v5533, %v6154
    %v6299 = vmul.f32 %v5627, %v6155
    %v6300 = vmul.f32 %v5721, %v6156
    %v6301 = vmul.f32 %v5815, %v6157
    %v6302 = vmul.f32 %v5909, %v6158
    %v6303 = vadd.f32 %v6287, %v6295
    %v6304 = vadd.f32 %v6288, %v6296
    %v6305 = vadd.f32 %v6289, %v6297
    %v6306 = vadd.f32 %v6290, %v6298
    %v6307 = vadd.f32 %v6291, %v6299
    %v6308 = vadd.f32 %v6292, %v6300
    %v6309 = vadd.f32 %v6293, %v6301
    %v6310 = vadd.f32 %v6294, %v6302
    %6311 = vst [vmem:[#allocation2] sm:$0xff] %v6303
    %6312 = vst [vmem:[#allocation2 + $0x8] sm:$0xff] %v6304
    %6313 = vst [vmem:[#allocation2 + $0x10] sm:$0xff] %v6305
    %6314 = vst [vmem:[#allocation2 + $0x18] sm:$0xff] %v6306
    %6315 = vst [vmem:[#allocation2 + $0x20] sm:$0xff] %v6307
    %6316 = vst [vmem:[#allocation2 + $0x28] sm:$0xff] %v6308
    %6317 = vst [vmem:[#allocation2 + $0x30] sm:$0xff] %v6309
    %6318 = vst [vmem:[#allocation2 + $0x38] sm:$0xff] %v6310
    // Predicated region
    $region34: #{tpu_custom_call.1} parent=1 // pred_check
      _
    $region35: #{tpu_custom_call.1} parent=1 // pred_check_branch
      %6320 = sbr.rel (0) target = $region37
    $region36: #{tpu_custom_call.1} parent=1 // pred_region
      %6322 = vsyncadd [#allocation3], 0
      %s6324 = sshll.u32 [#allocation2], 4
      %s6325 = int_to_ptr.vmem [resolvable:$true] %s6324
      %s6326 = sshll.u32 %s8, 4
      %s6327 = int_to_ptr.hbm [resolvable:$true] %s6326
      %6329 = dma.vmem_to_hbm [thread:$0]  %s6325, 1024, %s6327, [#allocation3]
    $region37: #{tpu_custom_call.1} parent=1 // pred_fallthru
      _
    // Predicated region
    $region38: #{tpu_custom_call.1} parent=1 // pred_check
      _
    $region39: #{tpu_custom_call.1} parent=1 // pred_check_branch
      %6331 = sbr.rel (0) target = $region41
    $region40: #{tpu_custom_call.1} parent=1 // pred_region
      %6333 = dma.done [#allocation3], 1024
    $region41: #{tpu_custom_call.1} parent=1 // pred_fallthru
      _
    %6334 = vsyncpa [#allocation3], 1

</llo_original>
